<compile_context>
chip_gen: v7x
topology: tpu7x:2x2x1
jax: 0.10.0
libtpu: 0.0.40
codegen_flags: <defaults>
</compile_context>

<pallas_src>
import jax
import jax.numpy as jnp
from jax.experimental import pallas as pl
from jax.experimental.pallas import tpu as pltpu

# ---- small config consistent with the module's constructor ------------------
VOCAB = 100     # vocab_size
EMB = 32        # emb_dims
HID = 32        # hidden
HEADS = 4       # heads  (2*HID divisible by HEADS)
CLASSES = 6
B = 2
T = 8
E2 = 2 * HID    # bi-GRU output dim == attention embed dim
HD = E2 // HEADS
H3 = 3 * HID    # r|z|n gate block width per direction

_VMEM = pl.BlockSpec(memory_space=pltpu.MemorySpace.VMEM)


# =============================================================================
# Fused kernel: bi-GRU (packed-sequence semantics) + MHA + pool + MLP head
# =============================================================================
def fused_kernel(len_ref, x_ref,
                 wih_ref, bih_ref, whh_ref, bhh_ref,
                 wqkv_ref, bqkv_ref, wo_ref, bo_ref,
                 w1_ref, b1_ref, w2_ref, b2_ref,
                 out_ref, gru_scr):
    f32 = jnp.float32

    # ------------------- stage 1: bidirectional GRU --------------------------
    lengths = len_ref[...]                                  # (B, 1) int32
    len2 = jnp.concatenate([lengths, lengths], axis=0)      # (2B, 1) fwd|bwd rows

    # Hoisted input projection for both directions (one lane-dense matmul):
    #   columns = [fwd r | fwd z | fwd n | bwd r | bwd z | bwd n]
    x2 = x_ref[...].reshape(T * B, EMB)                     # time-major rows t*B+b
    gi = (jnp.dot(x2, wih_ref[...], preferred_element_type=f32)
          + bih_ref[...]).reshape(T, B, 2 * H3)             # (T, B, 6*HID)

    # Hoisted hidden-state weights / biases (stacked fwd over rows 0:B, bwd B:2B)
    whh = whh_ref[...]                                      # (HID, 6*HID)
    bhh = bhh_ref[...]                                      # (2, 3*HID)
    bhh_stack = jnp.concatenate(
        [jnp.broadcast_to(bhh[0:1], (B, H3)),
         jnp.broadcast_to(bhh[1:2], (B, H3))], axis=0)      # (2B, 3*HID)

    h_all = jnp.zeros((2 * B, HID), f32)                    # rows 0:B fwd, B:2B bwd

    for i in range(T):                                      # fully unrolled, static
        tf = i                                              # forward time index
        tb = T - 1 - i                                      # backward time index

        # gate inputs for this step, stacked (2B, 3H): [fwd@tf ; bwd@tb]
        gi_step = jnp.concatenate([gi[tf, :, 0:H3], gi[tb, :, H3:2 * H3]], axis=0)

        # single hidden-state matmul for both directions: (2B,HID)@(HID,6H)
        hh = jnp.dot(h_all, whh, preferred_element_type=f32)
        gh_step = jnp.concatenate(
            [hh[0:B, 0:H3], hh[B:2 * B, H3:2 * H3]], axis=0) + bhh_stack

        r = jax.nn.sigmoid(gi_step[:, 0:HID] + gh_step[:, 0:HID])
        z = jax.nn.sigmoid(gi_step[:, HID:2 * HID] + gh_step[:, HID:2 * HID])
        n = jnp.tanh(gi_step[:, 2 * HID:H3] + r * gh_step[:, 2 * HID:H3])
        h_new = (1.0 - z) * n + z * h_all

        # packed-sequence mask: update only inside each sequence (tvec is a
        # compile-time constant because tf/tb are Python ints).
        tvec = jnp.concatenate([jnp.full((B, 1), tf, jnp.int32),
                                jnp.full((B, 1), tb, jnp.int32)], axis=0)
        mask = len2 > tvec                                  # (2B, 1) bool
        h_all = jnp.where(mask, h_new, h_all)
        out_step = jnp.where(mask, h_all, 0.0)              # padded positions -> 0

        # write directly into the lane-dense (B, T, 2*HID) slab
        gru_scr[:, tf:tf + 1, 0:HID] = out_step[0:B].reshape(B, 1, HID)
        gru_scr[:, tb:tb + 1, HID:E2] = out_step[B:2 * B].reshape(B, 1, HID)

    # ------------------- stage 2: multi-head self-attention ------------------
    xg = gru_scr[...]                                       # (B, T, E2)
    x_flat = xg.reshape(B * T, E2)                          # rows b*T + t

    # fused QKV projection: (B*T, E2) @ (E2, 3*E2)
    qkv = jnp.dot(x_flat, wqkv_ref[...], preferred_element_type=f32) + bqkv_ref[...]

    scale = 1.0 / float(HD) ** 0.5
    ctx_heads = []
    for h in range(HEADS):                                  # static, HD-wide slices
        q = qkv[:, h * HD:(h + 1) * HD].reshape(B, T, HD)
        k = qkv[:, E2 + h * HD:E2 + (h + 1) * HD].reshape(B, T, HD)
        v = qkv[:, 2 * E2 + h * HD:2 * E2 + (h + 1) * HD].reshape(B, T, HD)
        s = jnp.einsum("btd,bsd->bts", q, k, preferred_element_type=f32) * scale
        s = s - jnp.max(s, axis=-1, keepdims=True)
        e = jnp.exp(s)
        p_attn = e * pl.reciprocal(jnp.sum(e, axis=-1, keepdims=True), approx=True)
        ctx = jnp.einsum("bts,bsd->btd", p_attn, v, preferred_element_type=f32)
        ctx_heads.append(ctx.reshape(B * T, HD))

    ctx_all = jnp.concatenate(ctx_heads, axis=-1)           # (B*T, E2), head-concat
    attn = (jnp.dot(ctx_all, wo_ref[...], preferred_element_type=f32)
            + bo_ref[...]).reshape(B, T, E2)                # out-proj bias added once

    # ------------------- stage 3: mean/max pooling + MLP head ----------------
    mean_t = jnp.mean(attn, axis=1)                         # (B, E2)  (time axis)
    max_t = jnp.max(attn, axis=1)                           # (B, E2)
    feat = jnp.concatenate([mean_t, max_t], axis=-1)        # (B, 4*HID) lane-dense
    h1 = jnp.maximum(
        jnp.dot(feat, w1_ref[...], preferred_element_type=f32) + b1_ref[...], 0.0)
    out_ref[...] = (jnp.dot(h1, w2_ref[...], preferred_element_type=f32)
                    + b2_ref[...])


# =============================================================================
# Wrapper / glue
# =============================================================================
def forward(tokens, lengths, p):
    # embedding lookup in XLA glue (gather), emitted directly time-major (T,B,EMB)
    x_tbe = jnp.take(p["emb"], tokens.T, axis=0)
    return pl.pallas_call(
        fused_kernel,
        out_shape=jax.ShapeDtypeStruct((B, CLASSES), jnp.float32),
        in_specs=[_VMEM] * 14,
        out_specs=_VMEM,
        scratch_shapes=[pltpu.VMEM((B, T, E2), jnp.float32)],  # bi-GRU output slab
    )(lengths.reshape(B, 1).astype(jnp.int32), x_tbe,
      p["wih"], p["bih"], p["whh"], p["bhh"],
      p["wqkv"], p["bqkv"], p["wo"], p["bo"],
      p["w1"], p["b1"], p["w2"], p["b2"])


# =============================================================================
# Parameter init (synthetic, deterministic)
# =============================================================================
def init_params(key):
    ks = jax.random.split(key, 16)
    s = 0.1
    n = lambda i, shape: jax.random.normal(ks[i], shape, jnp.float32) * s
    return {
        "emb":  n(0, (VOCAB, EMB)),
        # GRU weights, pre-transposed for x @ W; columns [fwd r,z,n | bwd r,z,n]
        "wih":  n(1, (EMB, 2 * H3)),
        "bih":  n(2, (1, 2 * H3)),
        "whh":  n(3, (HID, 2 * H3)),
        "bhh":  n(4, (2, H3)),            # row 0 fwd bias, row 1 bwd bias
        # MultiheadAttention: fused in-projection (q|k|v) and out-projection
        "wqkv": n(5, (E2, 3 * E2)),
        "bqkv": n(6, (1, 3 * E2)),
        "wo":   n(7, (E2, E2)),
        "bo":   n(8, (1, E2)),
        # MLP head: Linear(4H, H) and Linear(H, classes), pre-transposed
        "w1":   n(9, (4 * HID, HID)),
        "b1":   n(10, (1, HID)),
        "w2":   n(11, (HID, CLASSES)),
        "b2":   n(12, (1, CLASSES)),
    }


if __name__ == "__main__":
    key = jax.random.PRNGKey(0)
    pkey, tkey = jax.random.split(key)
    params = init_params(pkey)
    tokens = jax.random.randint(tkey, (B, T), 0, VOCAB, dtype=jnp.int32)
    # pack_padded_sequence (enforce_sorted=True) requires descending lengths;
    # max length == T so pad_packed_sequence keeps the full time extent.
    lengths = jnp.array([T, 5], dtype=jnp.int32)

    logits = jax.jit(forward)(tokens, lengths, params)
    jax.block_until_ready(logits)
    assert logits.shape == (B, CLASSES)
    assert bool(jnp.all(jnp.isfinite(logits)))
    print("KERNEL_OK")
</pallas_src>

<mosaic_0001>
module attributes {stable_mosaic.version = 11 : i64} {
  func.func @fused_kernel(%arg0: memref<2x1xi32, #tpu.memory_space<vmem>>, %arg1: memref<8x2x32xf32, #tpu.memory_space<vmem>>, %arg2: memref<32x192xf32, #tpu.memory_space<vmem>>, %arg3: memref<1x192xf32, #tpu.memory_space<vmem>>, %arg4: memref<32x192xf32, #tpu.memory_space<vmem>>, %arg5: memref<2x96xf32, #tpu.memory_space<vmem>>, %arg6: memref<64x192xf32, #tpu.memory_space<vmem>>, %arg7: memref<1x192xf32, #tpu.memory_space<vmem>>, %arg8: memref<64x64xf32, #tpu.memory_space<vmem>>, %arg9: memref<1x64xf32, #tpu.memory_space<vmem>>, %arg10: memref<128x32xf32, #tpu.memory_space<vmem>>, %arg11: memref<1x32xf32, #tpu.memory_space<vmem>>, %arg12: memref<32x6xf32, #tpu.memory_space<vmem>>, %arg13: memref<1x6xf32, #tpu.memory_space<vmem>>, %arg14: memref<2x6xf32, #tpu.memory_space<vmem>>, %arg15: memref<2x8x64xf32, #tpu.memory_space<vmem>>) attributes {dimension_semantics = [], scalar_prefetch = 0 : i64, scratch_operands = 1 : i64, tpu.core_type = #tpu.core_type<tc>} {
    %c0 = arith.constant 0 : index
    %c0_0 = arith.constant 0 : index
    %0 = vector.load %arg0[%c0, %c0_0] : memref<2x1xi32, #tpu.memory_space<vmem>>, vector<2x1xi32>
    %1 = tpu.concatenate %0, %0 in 0 : vector<2x1xi32>, vector<2x1xi32> -> vector<4x1xi32>
    %c0_1 = arith.constant 0 : index
    %c0_2 = arith.constant 0 : index
    %c0_3 = arith.constant 0 : index
    %2 = vector.load %arg1[%c0_1, %c0_2, %c0_3] : memref<8x2x32xf32, #tpu.memory_space<vmem>>, vector<8x2x32xf32>
    %3 = vector.shape_cast %2 : vector<8x2x32xf32> to vector<16x32xf32>
    %c0_4 = arith.constant 0 : index
    %c0_5 = arith.constant 0 : index
    %4 = vector.load %arg2[%c0_4, %c0_5] : memref<32x192xf32, #tpu.memory_space<vmem>>, vector<32x192xf32>
    %cst = arith.constant dense<0.000000e+00> : vector<16x192xf32>
    %5 = tpu.matmul %3, %4, %cst {dimension_numbers = #tpu.dot_dimension_numbers<[1], [0], [0], [1], [0, 0, 1, 1], [], []>} : vector<16x32xf32>, vector<32x192xf32>, vector<16x192xf32> -> vector<16x192xf32>
    %c0_6 = arith.constant 0 : index
    %c0_7 = arith.constant 0 : index
    %6 = vector.load %arg3[%c0_6, %c0_7] : memref<1x192xf32, #tpu.memory_space<vmem>>, vector<1x192xf32>
    %7 = vector.broadcast %6 : vector<1x192xf32> to vector<16x192xf32>
    %8 = arith.addf %5, %7 : vector<16x192xf32>
    %9 = vector.shape_cast %8 : vector<16x192xf32> to vector<8x2x192xf32>
    %c0_8 = arith.constant 0 : index
    %c0_9 = arith.constant 0 : index
    %10 = vector.load %arg4[%c0_8, %c0_9] : memref<32x192xf32, #tpu.memory_space<vmem>>, vector<32x192xf32>
    %c0_10 = arith.constant 0 : index
    %c0_11 = arith.constant 0 : index
    %11 = vector.load %arg5[%c0_10, %c0_11] : memref<2x96xf32, #tpu.memory_space<vmem>>, vector<2x96xf32>
    %12 = vector.extract_strided_slice %11 {offsets = [0, 0], sizes = [1, 96], strides = [1, 1]} : vector<2x96xf32> to vector<1x96xf32>
    %13 = vector.shape_cast %12 : vector<1x96xf32> to vector<1x96xf32>
    %14 = vector.broadcast %13 : vector<1x96xf32> to vector<2x96xf32>
    %15 = vector.extract_strided_slice %11 {offsets = [1, 0], sizes = [1, 96], strides = [1, 1]} : vector<2x96xf32> to vector<1x96xf32>
    %16 = vector.shape_cast %15 : vector<1x96xf32> to vector<1x96xf32>
    %17 = vector.broadcast %16 : vector<1x96xf32> to vector<2x96xf32>
    %18 = tpu.concatenate %14, %17 in 0 : vector<2x96xf32>, vector<2x96xf32> -> vector<4x96xf32>
    %cst_12 = arith.constant 0.000000e+00 : f32
    %19 = vector.broadcast %cst_12 : f32 to vector<4x32xf32>
    %20 = vector.extract_strided_slice %9 {offsets = [0, 0, 0], sizes = [1, 2, 96], strides = [1, 1, 1]} : vector<8x2x192xf32> to vector<1x2x96xf32>
    %21 = vector.shape_cast %20 : vector<1x2x96xf32> to vector<2x96xf32>
    %22 = vector.extract_strided_slice %9 {offsets = [7, 0, 96], sizes = [1, 2, 96], strides = [1, 1, 1]} : vector<8x2x192xf32> to vector<1x2x96xf32>
    %23 = vector.shape_cast %22 : vector<1x2x96xf32> to vector<2x96xf32>
    %24 = tpu.concatenate %21, %23 in 0 : vector<2x96xf32>, vector<2x96xf32> -> vector<4x96xf32>
    %cst_13 = arith.constant dense<0.000000e+00> : vector<4x192xf32>
    %25 = tpu.matmul %19, %10, %cst_13 {dimension_numbers = #tpu.dot_dimension_numbers<[1], [0], [0], [1], [0, 0, 1, 1], [], []>} : vector<4x32xf32>, vector<32x192xf32>, vector<4x192xf32> -> vector<4x192xf32>
    %26 = vector.extract_strided_slice %25 {offsets = [0, 0], sizes = [2, 96], strides = [1, 1]} : vector<4x192xf32> to vector<2x96xf32>
    %27 = vector.extract_strided_slice %25 {offsets = [2, 96], sizes = [2, 96], strides = [1, 1]} : vector<4x192xf32> to vector<2x96xf32>
    %28 = tpu.concatenate %26, %27 in 0 : vector<2x96xf32>, vector<2x96xf32> -> vector<4x96xf32>
    %29 = arith.addf %28, %18 : vector<4x96xf32>
    %30 = vector.extract_strided_slice %24 {offsets = [0, 0], sizes = [4, 32], strides = [1, 1]} : vector<4x96xf32> to vector<4x32xf32>
    %31 = vector.extract_strided_slice %29 {offsets = [0, 0], sizes = [4, 32], strides = [1, 1]} : vector<4x96xf32> to vector<4x32xf32>
    %32 = arith.addf %30, %31 : vector<4x32xf32>
    %33 = arith.negf %32 : vector<4x32xf32>
    %34 = math.exp %33 : vector<4x32xf32>
    %cst_14 = arith.constant 1.000000e+00 : f32
    %35 = vector.broadcast %cst_14 : f32 to vector<4x32xf32>
    %36 = arith.addf %35, %34 : vector<4x32xf32>
    %37 = arith.divf %35, %36 : vector<4x32xf32>
    %38 = vector.extract_strided_slice %24 {offsets = [0, 32], sizes = [4, 32], strides = [1, 1]} : vector<4x96xf32> to vector<4x32xf32>
    %39 = vector.extract_strided_slice %29 {offsets = [0, 32], sizes = [4, 32], strides = [1, 1]} : vector<4x96xf32> to vector<4x32xf32>
    %40 = arith.addf %38, %39 : vector<4x32xf32>
    %41 = arith.negf %40 : vector<4x32xf32>
    %42 = math.exp %41 : vector<4x32xf32>
    %cst_15 = arith.constant 1.000000e+00 : f32
    %43 = vector.broadcast %cst_15 : f32 to vector<4x32xf32>
    %44 = arith.addf %43, %42 : vector<4x32xf32>
    %45 = arith.divf %43, %44 : vector<4x32xf32>
    %46 = vector.extract_strided_slice %24 {offsets = [0, 64], sizes = [4, 32], strides = [1, 1]} : vector<4x96xf32> to vector<4x32xf32>
    %47 = vector.extract_strided_slice %29 {offsets = [0, 64], sizes = [4, 32], strides = [1, 1]} : vector<4x96xf32> to vector<4x32xf32>
    %48 = arith.mulf %37, %47 : vector<4x32xf32>
    %49 = arith.addf %46, %48 : vector<4x32xf32>
    %50 = math.tanh %49 : vector<4x32xf32>
    %cst_16 = arith.constant 1.000000e+00 : f32
    %51 = vector.broadcast %cst_16 : f32 to vector<4x32xf32>
    %52 = arith.subf %51, %45 : vector<4x32xf32>
    %53 = arith.mulf %52, %50 : vector<4x32xf32>
    %54 = arith.mulf %45, %19 : vector<4x32xf32>
    %55 = arith.addf %53, %54 : vector<4x32xf32>
    %c0_i32 = arith.constant 0 : i32
    %56 = vector.broadcast %c0_i32 : i32 to vector<2x1xi32>
    %c7_i32 = arith.constant 7 : i32
    %57 = vector.broadcast %c7_i32 : i32 to vector<2x1xi32>
    %58 = tpu.concatenate %56, %57 in 0 : vector<2x1xi32>, vector<2x1xi32> -> vector<4x1xi32>
    %59 = arith.cmpi sgt, %1, %58 : vector<4x1xi32>
    %60 = vector.shape_cast %59 : vector<4x1xi1> to vector<4x1xi1>
    %61 = vector.broadcast %60 : vector<4x1xi1> to vector<4x32xi1>
    %62 = arith.select %61, %55, %19 : vector<4x32xi1>, vector<4x32xf32>
    %cst_17 = arith.constant 0.000000e+00 : f32
    %63 = vector.shape_cast %59 : vector<4x1xi1> to vector<4x1xi1>
    %64 = vector.broadcast %63 : vector<4x1xi1> to vector<4x32xi1>
    %65 = vector.broadcast %cst_17 : f32 to vector<4x32xf32>
    %66 = arith.select %64, %62, %65 : vector<4x32xi1>, vector<4x32xf32>
    %67 = vector.extract_strided_slice %66 {offsets = [0, 0], sizes = [2, 32], strides = [1, 1]} : vector<4x32xf32> to vector<2x32xf32>
    %68 = vector.shape_cast %67 : vector<2x32xf32> to vector<2x1x32xf32>
    %c0_18 = arith.constant 0 : index
    %c0_19 = arith.constant 0 : index
    %c0_20 = arith.constant 0 : index
    %69 = vector.load %arg15[%c0_18, %c0_19, %c0_20] : memref<2x8x64xf32, #tpu.memory_space<vmem>>, vector<2x1x32xf32>
    tpu.vector_store %arg15[%c0_18, %c0_19, %c0_20], %68 {strides = array<i32>} : memref<2x8x64xf32, #tpu.memory_space<vmem>>, vector<2x1x32xf32>,
    %70 = vector.extract_strided_slice %66 {offsets = [2, 0], sizes = [2, 32], strides = [1, 1]} : vector<4x32xf32> to vector<2x32xf32>
    %71 = vector.shape_cast %70 : vector<2x32xf32> to vector<2x1x32xf32>
    %c0_21 = arith.constant 0 : index
    %c7 = arith.constant 7 : index
    %c32 = arith.constant 32 : index
    %72 = vector.load %arg15[%c0_21, %c7, %c32] : memref<2x8x64xf32, #tpu.memory_space<vmem>>, vector<2x1x32xf32>
    tpu.vector_store %arg15[%c0_21, %c7, %c32], %71 {strides = array<i32>} : memref<2x8x64xf32, #tpu.memory_space<vmem>>, vector<2x1x32xf32>,
    %73 = vector.extract_strided_slice %9 {offsets = [1, 0, 0], sizes = [1, 2, 96], strides = [1, 1, 1]} : vector<8x2x192xf32> to vector<1x2x96xf32>
    %74 = vector.shape_cast %73 : vector<1x2x96xf32> to vector<2x96xf32>
    %75 = vector.extract_strided_slice %9 {offsets = [6, 0, 96], sizes = [1, 2, 96], strides = [1, 1, 1]} : vector<8x2x192xf32> to vector<1x2x96xf32>
    %76 = vector.shape_cast %75 : vector<1x2x96xf32> to vector<2x96xf32>
    %77 = tpu.concatenate %74, %76 in 0 : vector<2x96xf32>, vector<2x96xf32> -> vector<4x96xf32>
    %cst_22 = arith.constant dense<0.000000e+00> : vector<4x192xf32>
    %78 = tpu.matmul %62, %10, %cst_22 {dimension_numbers = #tpu.dot_dimension_numbers<[1], [0], [0], [1], [0, 0, 1, 1], [], []>} : vector<4x32xf32>, vector<32x192xf32>, vector<4x192xf32> -> vector<4x192xf32>
    %79 = vector.extract_strided_slice %78 {offsets = [0, 0], sizes = [2, 96], strides = [1, 1]} : vector<4x192xf32> to vector<2x96xf32>
    %80 = vector.extract_strided_slice %78 {offsets = [2, 96], sizes = [2, 96], strides = [1, 1]} : vector<4x192xf32> to vector<2x96xf32>
    %81 = tpu.concatenate %79, %80 in 0 : vector<2x96xf32>, vector<2x96xf32> -> vector<4x96xf32>
    %82 = arith.addf %81, %18 : vector<4x96xf32>
    %83 = vector.extract_strided_slice %77 {offsets = [0, 0], sizes = [4, 32], strides = [1, 1]} : vector<4x96xf32> to vector<4x32xf32>
    %84 = vector.extract_strided_slice %82 {offsets = [0, 0], sizes = [4, 32], strides = [1, 1]} : vector<4x96xf32> to vector<4x32xf32>
    %85 = arith.addf %83, %84 : vector<4x32xf32>
    %86 = arith.negf %85 : vector<4x32xf32>
    %87 = math.exp %86 : vector<4x32xf32>
    %cst_23 = arith.constant 1.000000e+00 : f32
    %88 = vector.broadcast %cst_23 : f32 to vector<4x32xf32>
    %89 = arith.addf %88, %87 : vector<4x32xf32>
    %90 = arith.divf %88, %89 : vector<4x32xf32>
    %91 = vector.extract_strided_slice %77 {offsets = [0, 32], sizes = [4, 32], strides = [1, 1]} : vector<4x96xf32> to vector<4x32xf32>
    %92 = vector.extract_strided_slice %82 {offsets = [0, 32], sizes = [4, 32], strides = [1, 1]} : vector<4x96xf32> to vector<4x32xf32>
    %93 = arith.addf %91, %92 : vector<4x32xf32>
    %94 = arith.negf %93 : vector<4x32xf32>
    %95 = math.exp %94 : vector<4x32xf32>
    %cst_24 = arith.constant 1.000000e+00 : f32
    %96 = vector.broadcast %cst_24 : f32 to vector<4x32xf32>
    %97 = arith.addf %96, %95 : vector<4x32xf32>
    %98 = arith.divf %96, %97 : vector<4x32xf32>
    %99 = vector.extract_strided_slice %77 {offsets = [0, 64], sizes = [4, 32], strides = [1, 1]} : vector<4x96xf32> to vector<4x32xf32>
    %100 = vector.extract_strided_slice %82 {offsets = [0, 64], sizes = [4, 32], strides = [1, 1]} : vector<4x96xf32> to vector<4x32xf32>
    %101 = arith.mulf %90, %100 : vector<4x32xf32>
    %102 = arith.addf %99, %101 : vector<4x32xf32>
    %103 = math.tanh %102 : vector<4x32xf32>
    %cst_25 = arith.constant 1.000000e+00 : f32
    %104 = vector.broadcast %cst_25 : f32 to vector<4x32xf32>
    %105 = arith.subf %104, %98 : vector<4x32xf32>
    %106 = arith.mulf %105, %103 : vector<4x32xf32>
    %107 = arith.mulf %98, %62 : vector<4x32xf32>
    %108 = arith.addf %106, %107 : vector<4x32xf32>
    %c1_i32 = arith.constant 1 : i32
    %109 = vector.broadcast %c1_i32 : i32 to vector<2x1xi32>
    %c6_i32 = arith.constant 6 : i32
    %110 = vector.broadcast %c6_i32 : i32 to vector<2x1xi32>
    %111 = tpu.concatenate %109, %110 in 0 : vector<2x1xi32>, vector<2x1xi32> -> vector<4x1xi32>
    %112 = arith.cmpi sgt, %1, %111 : vector<4x1xi32>
    %113 = vector.shape_cast %112 : vector<4x1xi1> to vector<4x1xi1>
    %114 = vector.broadcast %113 : vector<4x1xi1> to vector<4x32xi1>
    %115 = arith.select %114, %108, %62 : vector<4x32xi1>, vector<4x32xf32>
    %cst_26 = arith.constant 0.000000e+00 : f32
    %116 = vector.shape_cast %112 : vector<4x1xi1> to vector<4x1xi1>
    %117 = vector.broadcast %116 : vector<4x1xi1> to vector<4x32xi1>
    %118 = vector.broadcast %cst_26 : f32 to vector<4x32xf32>
    %119 = arith.select %117, %115, %118 : vector<4x32xi1>, vector<4x32xf32>
    %120 = vector.extract_strided_slice %119 {offsets = [0, 0], sizes = [2, 32], strides = [1, 1]} : vector<4x32xf32> to vector<2x32xf32>
    %121 = vector.shape_cast %120 : vector<2x32xf32> to vector<2x1x32xf32>
    %c0_27 = arith.constant 0 : index
    %c1 = arith.constant 1 : index
    %c0_28 = arith.constant 0 : index
    %122 = vector.load %arg15[%c0_27, %c1, %c0_28] : memref<2x8x64xf32, #tpu.memory_space<vmem>>, vector<2x1x32xf32>
    tpu.vector_store %arg15[%c0_27, %c1, %c0_28], %121 {strides = array<i32>} : memref<2x8x64xf32, #tpu.memory_space<vmem>>, vector<2x1x32xf32>,
    %123 = vector.extract_strided_slice %119 {offsets = [2, 0], sizes = [2, 32], strides = [1, 1]} : vector<4x32xf32> to vector<2x32xf32>
    %124 = vector.shape_cast %123 : vector<2x32xf32> to vector<2x1x32xf32>
    %c0_29 = arith.constant 0 : index
    %c6 = arith.constant 6 : index
    %c32_30 = arith.constant 32 : index
    %125 = vector.load %arg15[%c0_29, %c6, %c32_30] : memref<2x8x64xf32, #tpu.memory_space<vmem>>, vector<2x1x32xf32>
    tpu.vector_store %arg15[%c0_29, %c6, %c32_30], %124 {strides = array<i32>} : memref<2x8x64xf32, #tpu.memory_space<vmem>>, vector<2x1x32xf32>,
    %126 = vector.extract_strided_slice %9 {offsets = [2, 0, 0], sizes = [1, 2, 96], strides = [1, 1, 1]} : vector<8x2x192xf32> to vector<1x2x96xf32>
    %127 = vector.shape_cast %126 : vector<1x2x96xf32> to vector<2x96xf32>
    %128 = vector.extract_strided_slice %9 {offsets = [5, 0, 96], sizes = [1, 2, 96], strides = [1, 1, 1]} : vector<8x2x192xf32> to vector<1x2x96xf32>
    %129 = vector.shape_cast %128 : vector<1x2x96xf32> to vector<2x96xf32>
    %130 = tpu.concatenate %127, %129 in 0 : vector<2x96xf32>, vector<2x96xf32> -> vector<4x96xf32>
    %cst_31 = arith.constant dense<0.000000e+00> : vector<4x192xf32>
    %131 = tpu.matmul %115, %10, %cst_31 {dimension_numbers = #tpu.dot_dimension_numbers<[1], [0], [0], [1], [0, 0, 1, 1], [], []>} : vector<4x32xf32>, vector<32x192xf32>, vector<4x192xf32> -> vector<4x192xf32>
    %132 = vector.extract_strided_slice %131 {offsets = [0, 0], sizes = [2, 96], strides = [1, 1]} : vector<4x192xf32> to vector<2x96xf32>
    %133 = vector.extract_strided_slice %131 {offsets = [2, 96], sizes = [2, 96], strides = [1, 1]} : vector<4x192xf32> to vector<2x96xf32>
    %134 = tpu.concatenate %132, %133 in 0 : vector<2x96xf32>, vector<2x96xf32> -> vector<4x96xf32>
    %135 = arith.addf %134, %18 : vector<4x96xf32>
    %136 = vector.extract_strided_slice %130 {offsets = [0, 0], sizes = [4, 32], strides = [1, 1]} : vector<4x96xf32> to vector<4x32xf32>
    %137 = vector.extract_strided_slice %135 {offsets = [0, 0], sizes = [4, 32], strides = [1, 1]} : vector<4x96xf32> to vector<4x32xf32>
    %138 = arith.addf %136, %137 : vector<4x32xf32>
    %139 = arith.negf %138 : vector<4x32xf32>
    %140 = math.exp %139 : vector<4x32xf32>
    %cst_32 = arith.constant 1.000000e+00 : f32
    %141 = vector.broadcast %cst_32 : f32 to vector<4x32xf32>
    %142 = arith.addf %141, %140 : vector<4x32xf32>
    %143 = arith.divf %141, %142 : vector<4x32xf32>
    %144 = vector.extract_strided_slice %130 {offsets = [0, 32], sizes = [4, 32], strides = [1, 1]} : vector<4x96xf32> to vector<4x32xf32>
    %145 = vector.extract_strided_slice %135 {offsets = [0, 32], sizes = [4, 32], strides = [1, 1]} : vector<4x96xf32> to vector<4x32xf32>
    %146 = arith.addf %144, %145 : vector<4x32xf32>
    %147 = arith.negf %146 : vector<4x32xf32>
    %148 = math.exp %147 : vector<4x32xf32>
    %cst_33 = arith.constant 1.000000e+00 : f32
    %149 = vector.broadcast %cst_33 : f32 to vector<4x32xf32>
    %150 = arith.addf %149, %148 : vector<4x32xf32>
    %151 = arith.divf %149, %150 : vector<4x32xf32>
    %152 = vector.extract_strided_slice %130 {offsets = [0, 64], sizes = [4, 32], strides = [1, 1]} : vector<4x96xf32> to vector<4x32xf32>
    %153 = vector.extract_strided_slice %135 {offsets = [0, 64], sizes = [4, 32], strides = [1, 1]} : vector<4x96xf32> to vector<4x32xf32>
    %154 = arith.mulf %143, %153 : vector<4x32xf32>
    %155 = arith.addf %152, %154 : vector<4x32xf32>
    %156 = math.tanh %155 : vector<4x32xf32>
    %cst_34 = arith.constant 1.000000e+00 : f32
    %157 = vector.broadcast %cst_34 : f32 to vector<4x32xf32>
    %158 = arith.subf %157, %151 : vector<4x32xf32>
    %159 = arith.mulf %158, %156 : vector<4x32xf32>
    %160 = arith.mulf %151, %115 : vector<4x32xf32>
    %161 = arith.addf %159, %160 : vector<4x32xf32>
    %c2_i32 = arith.constant 2 : i32
    %162 = vector.broadcast %c2_i32 : i32 to vector<2x1xi32>
    %c5_i32 = arith.constant 5 : i32
    %163 = vector.broadcast %c5_i32 : i32 to vector<2x1xi32>
    %164 = tpu.concatenate %162, %163 in 0 : vector<2x1xi32>, vector<2x1xi32> -> vector<4x1xi32>
    %165 = arith.cmpi sgt, %1, %164 : vector<4x1xi32>
    %166 = vector.shape_cast %165 : vector<4x1xi1> to vector<4x1xi1>
    %167 = vector.broadcast %166 : vector<4x1xi1> to vector<4x32xi1>
    %168 = arith.select %167, %161, %115 : vector<4x32xi1>, vector<4x32xf32>
    %cst_35 = arith.constant 0.000000e+00 : f32
    %169 = vector.shape_cast %165 : vector<4x1xi1> to vector<4x1xi1>
    %170 = vector.broadcast %169 : vector<4x1xi1> to vector<4x32xi1>
    %171 = vector.broadcast %cst_35 : f32 to vector<4x32xf32>
    %172 = arith.select %170, %168, %171 : vector<4x32xi1>, vector<4x32xf32>
    %173 = vector.extract_strided_slice %172 {offsets = [0, 0], sizes = [2, 32], strides = [1, 1]} : vector<4x32xf32> to vector<2x32xf32>
    %174 = vector.shape_cast %173 : vector<2x32xf32> to vector<2x1x32xf32>
    %c0_36 = arith.constant 0 : index
    %c2 = arith.constant 2 : index
    %c0_37 = arith.constant 0 : index
    %175 = vector.load %arg15[%c0_36, %c2, %c0_37] : memref<2x8x64xf32, #tpu.memory_space<vmem>>, vector<2x1x32xf32>
    tpu.vector_store %arg15[%c0_36, %c2, %c0_37], %174 {strides = array<i32>} : memref<2x8x64xf32, #tpu.memory_space<vmem>>, vector<2x1x32xf32>,
    %176 = vector.extract_strided_slice %172 {offsets = [2, 0], sizes = [2, 32], strides = [1, 1]} : vector<4x32xf32> to vector<2x32xf32>
    %177 = vector.shape_cast %176 : vector<2x32xf32> to vector<2x1x32xf32>
    %c0_38 = arith.constant 0 : index
    %c5 = arith.constant 5 : index
    %c32_39 = arith.constant 32 : index
    %178 = vector.load %arg15[%c0_38, %c5, %c32_39] : memref<2x8x64xf32, #tpu.memory_space<vmem>>, vector<2x1x32xf32>
    tpu.vector_store %arg15[%c0_38, %c5, %c32_39], %177 {strides = array<i32>} : memref<2x8x64xf32, #tpu.memory_space<vmem>>, vector<2x1x32xf32>,
    %179 = vector.extract_strided_slice %9 {offsets = [3, 0, 0], sizes = [1, 2, 96], strides = [1, 1, 1]} : vector<8x2x192xf32> to vector<1x2x96xf32>
    %180 = vector.shape_cast %179 : vector<1x2x96xf32> to vector<2x96xf32>
    %181 = vector.extract_strided_slice %9 {offsets = [4, 0, 96], sizes = [1, 2, 96], strides = [1, 1, 1]} : vector<8x2x192xf32> to vector<1x2x96xf32>
    %182 = vector.shape_cast %181 : vector<1x2x96xf32> to vector<2x96xf32>
    %183 = tpu.concatenate %180, %182 in 0 : vector<2x96xf32>, vector<2x96xf32> -> vector<4x96xf32>
    %cst_40 = arith.constant dense<0.000000e+00> : vector<4x192xf32>
    %184 = tpu.matmul %168, %10, %cst_40 {dimension_numbers = #tpu.dot_dimension_numbers<[1], [0], [0], [1], [0, 0, 1, 1], [], []>} : vector<4x32xf32>, vector<32x192xf32>, vector<4x192xf32> -> vector<4x192xf32>
    %185 = vector.extract_strided_slice %184 {offsets = [0, 0], sizes = [2, 96], strides = [1, 1]} : vector<4x192xf32> to vector<2x96xf32>
    %186 = vector.extract_strided_slice %184 {offsets = [2, 96], sizes = [2, 96], strides = [1, 1]} : vector<4x192xf32> to vector<2x96xf32>
    %187 = tpu.concatenate %185, %186 in 0 : vector<2x96xf32>, vector<2x96xf32> -> vector<4x96xf32>
    %188 = arith.addf %187, %18 : vector<4x96xf32>
    %189 = vector.extract_strided_slice %183 {offsets = [0, 0], sizes = [4, 32], strides = [1, 1]} : vector<4x96xf32> to vector<4x32xf32>
    %190 = vector.extract_strided_slice %188 {offsets = [0, 0], sizes = [4, 32], strides = [1, 1]} : vector<4x96xf32> to vector<4x32xf32>
    %191 = arith.addf %189, %190 : vector<4x32xf32>
    %192 = arith.negf %191 : vector<4x32xf32>
    %193 = math.exp %192 : vector<4x32xf32>
    %cst_41 = arith.constant 1.000000e+00 : f32
    %194 = vector.broadcast %cst_41 : f32 to vector<4x32xf32>
    %195 = arith.addf %194, %193 : vector<4x32xf32>
    %196 = arith.divf %194, %195 : vector<4x32xf32>
    %197 = vector.extract_strided_slice %183 {offsets = [0, 32], sizes = [4, 32], strides = [1, 1]} : vector<4x96xf32> to vector<4x32xf32>
    %198 = vector.extract_strided_slice %188 {offsets = [0, 32], sizes = [4, 32], strides = [1, 1]} : vector<4x96xf32> to vector<4x32xf32>
    %199 = arith.addf %197, %198 : vector<4x32xf32>
    %200 = arith.negf %199 : vector<4x32xf32>
    %201 = math.exp %200 : vector<4x32xf32>
    %cst_42 = arith.constant 1.000000e+00 : f32
    %202 = vector.broadcast %cst_42 : f32 to vector<4x32xf32>
    %203 = arith.addf %202, %201 : vector<4x32xf32>
    %204 = arith.divf %202, %203 : vector<4x32xf32>
    %205 = vector.extract_strided_slice %183 {offsets = [0, 64], sizes = [4, 32], strides = [1, 1]} : vector<4x96xf32> to vector<4x32xf32>
    %206 = vector.extract_strided_slice %188 {offsets = [0, 64], sizes = [4, 32], strides = [1, 1]} : vector<4x96xf32> to vector<4x32xf32>
    %207 = arith.mulf %196, %206 : vector<4x32xf32>
    %208 = arith.addf %205, %207 : vector<4x32xf32>
    %209 = math.tanh %208 : vector<4x32xf32>
    %cst_43 = arith.constant 1.000000e+00 : f32
    %210 = vector.broadcast %cst_43 : f32 to vector<4x32xf32>
    %211 = arith.subf %210, %204 : vector<4x32xf32>
    %212 = arith.mulf %211, %209 : vector<4x32xf32>
    %213 = arith.mulf %204, %168 : vector<4x32xf32>
    %214 = arith.addf %212, %213 : vector<4x32xf32>
    %c3_i32 = arith.constant 3 : i32
    %215 = vector.broadcast %c3_i32 : i32 to vector<2x1xi32>
    %c4_i32 = arith.constant 4 : i32
    %216 = vector.broadcast %c4_i32 : i32 to vector<2x1xi32>
    %217 = tpu.concatenate %215, %216 in 0 : vector<2x1xi32>, vector<2x1xi32> -> vector<4x1xi32>
    %218 = arith.cmpi sgt, %1, %217 : vector<4x1xi32>
    %219 = vector.shape_cast %218 : vector<4x1xi1> to vector<4x1xi1>
    %220 = vector.broadcast %219 : vector<4x1xi1> to vector<4x32xi1>
    %221 = arith.select %220, %214, %168 : vector<4x32xi1>, vector<4x32xf32>
    %cst_44 = arith.constant 0.000000e+00 : f32
    %222 = vector.shape_cast %218 : vector<4x1xi1> to vector<4x1xi1>
    %223 = vector.broadcast %222 : vector<4x1xi1> to vector<4x32xi1>
    %224 = vector.broadcast %cst_44 : f32 to vector<4x32xf32>
    %225 = arith.select %223, %221, %224 : vector<4x32xi1>, vector<4x32xf32>
    %226 = vector.extract_strided_slice %225 {offsets = [0, 0], sizes = [2, 32], strides = [1, 1]} : vector<4x32xf32> to vector<2x32xf32>
    %227 = vector.shape_cast %226 : vector<2x32xf32> to vector<2x1x32xf32>
    %c0_45 = arith.constant 0 : index
    %c3 = arith.constant 3 : index
    %c0_46 = arith.constant 0 : index
    %228 = vector.load %arg15[%c0_45, %c3, %c0_46] : memref<2x8x64xf32, #tpu.memory_space<vmem>>, vector<2x1x32xf32>
    tpu.vector_store %arg15[%c0_45, %c3, %c0_46], %227 {strides = array<i32>} : memref<2x8x64xf32, #tpu.memory_space<vmem>>, vector<2x1x32xf32>,
    %229 = vector.extract_strided_slice %225 {offsets = [2, 0], sizes = [2, 32], strides = [1, 1]} : vector<4x32xf32> to vector<2x32xf32>
    %230 = vector.shape_cast %229 : vector<2x32xf32> to vector<2x1x32xf32>
    %c0_47 = arith.constant 0 : index
    %c4 = arith.constant 4 : index
    %c32_48 = arith.constant 32 : index
    %231 = vector.load %arg15[%c0_47, %c4, %c32_48] : memref<2x8x64xf32, #tpu.memory_space<vmem>>, vector<2x1x32xf32>
    tpu.vector_store %arg15[%c0_47, %c4, %c32_48], %230 {strides = array<i32>} : memref<2x8x64xf32, #tpu.memory_space<vmem>>, vector<2x1x32xf32>,
    %232 = vector.extract_strided_slice %9 {offsets = [4, 0, 0], sizes = [1, 2, 96], strides = [1, 1, 1]} : vector<8x2x192xf32> to vector<1x2x96xf32>
    %233 = vector.shape_cast %232 : vector<1x2x96xf32> to vector<2x96xf32>
    %234 = vector.extract_strided_slice %9 {offsets = [3, 0, 96], sizes = [1, 2, 96], strides = [1, 1, 1]} : vector<8x2x192xf32> to vector<1x2x96xf32>
    %235 = vector.shape_cast %234 : vector<1x2x96xf32> to vector<2x96xf32>
    %236 = tpu.concatenate %233, %235 in 0 : vector<2x96xf32>, vector<2x96xf32> -> vector<4x96xf32>
    %cst_49 = arith.constant dense<0.000000e+00> : vector<4x192xf32>
    %237 = tpu.matmul %221, %10, %cst_49 {dimension_numbers = #tpu.dot_dimension_numbers<[1], [0], [0], [1], [0, 0, 1, 1], [], []>} : vector<4x32xf32>, vector<32x192xf32>, vector<4x192xf32> -> vector<4x192xf32>
    %238 = vector.extract_strided_slice %237 {offsets = [0, 0], sizes = [2, 96], strides = [1, 1]} : vector<4x192xf32> to vector<2x96xf32>
    %239 = vector.extract_strided_slice %237 {offsets = [2, 96], sizes = [2, 96], strides = [1, 1]} : vector<4x192xf32> to vector<2x96xf32>
    %240 = tpu.concatenate %238, %239 in 0 : vector<2x96xf32>, vector<2x96xf32> -> vector<4x96xf32>
    %241 = arith.addf %240, %18 : vector<4x96xf32>
    %242 = vector.extract_strided_slice %236 {offsets = [0, 0], sizes = [4, 32], strides = [1, 1]} : vector<4x96xf32> to vector<4x32xf32>
    %243 = vector.extract_strided_slice %241 {offsets = [0, 0], sizes = [4, 32], strides = [1, 1]} : vector<4x96xf32> to vector<4x32xf32>
    %244 = arith.addf %242, %243 : vector<4x32xf32>
    %245 = arith.negf %244 : vector<4x32xf32>
    %246 = math.exp %245 : vector<4x32xf32>
    %cst_50 = arith.constant 1.000000e+00 : f32
    %247 = vector.broadcast %cst_50 : f32 to vector<4x32xf32>
    %248 = arith.addf %247, %246 : vector<4x32xf32>
    %249 = arith.divf %247, %248 : vector<4x32xf32>
    %250 = vector.extract_strided_slice %236 {offsets = [0, 32], sizes = [4, 32], strides = [1, 1]} : vector<4x96xf32> to vector<4x32xf32>
    %251 = vector.extract_strided_slice %241 {offsets = [0, 32], sizes = [4, 32], strides = [1, 1]} : vector<4x96xf32> to vector<4x32xf32>
    %252 = arith.addf %250, %251 : vector<4x32xf32>
    %253 = arith.negf %252 : vector<4x32xf32>
    %254 = math.exp %253 : vector<4x32xf32>
    %cst_51 = arith.constant 1.000000e+00 : f32
    %255 = vector.broadcast %cst_51 : f32 to vector<4x32xf32>
    %256 = arith.addf %255, %254 : vector<4x32xf32>
    %257 = arith.divf %255, %256 : vector<4x32xf32>
    %258 = vector.extract_strided_slice %236 {offsets = [0, 64], sizes = [4, 32], strides = [1, 1]} : vector<4x96xf32> to vector<4x32xf32>
    %259 = vector.extract_strided_slice %241 {offsets = [0, 64], sizes = [4, 32], strides = [1, 1]} : vector<4x96xf32> to vector<4x32xf32>
    %260 = arith.mulf %249, %259 : vector<4x32xf32>
    %261 = arith.addf %258, %260 : vector<4x32xf32>
    %262 = math.tanh %261 : vector<4x32xf32>
    %cst_52 = arith.constant 1.000000e+00 : f32
    %263 = vector.broadcast %cst_52 : f32 to vector<4x32xf32>
    %264 = arith.subf %263, %257 : vector<4x32xf32>
    %265 = arith.mulf %264, %262 : vector<4x32xf32>
    %266 = arith.mulf %257, %221 : vector<4x32xf32>
    %267 = arith.addf %265, %266 : vector<4x32xf32>
    %c4_i32_53 = arith.constant 4 : i32
    %268 = vector.broadcast %c4_i32_53 : i32 to vector<2x1xi32>
    %c3_i32_54 = arith.constant 3 : i32
    %269 = vector.broadcast %c3_i32_54 : i32 to vector<2x1xi32>
    %270 = tpu.concatenate %268, %269 in 0 : vector<2x1xi32>, vector<2x1xi32> -> vector<4x1xi32>
    %271 = arith.cmpi sgt, %1, %270 : vector<4x1xi32>
    %272 = vector.shape_cast %271 : vector<4x1xi1> to vector<4x1xi1>
    %273 = vector.broadcast %272 : vector<4x1xi1> to vector<4x32xi1>
    %274 = arith.select %273, %267, %221 : vector<4x32xi1>, vector<4x32xf32>
    %cst_55 = arith.constant 0.000000e+00 : f32
    %275 = vector.shape_cast %271 : vector<4x1xi1> to vector<4x1xi1>
    %276 = vector.broadcast %275 : vector<4x1xi1> to vector<4x32xi1>
    %277 = vector.broadcast %cst_55 : f32 to vector<4x32xf32>
    %278 = arith.select %276, %274, %277 : vector<4x32xi1>, vector<4x32xf32>
    %279 = vector.extract_strided_slice %278 {offsets = [0, 0], sizes = [2, 32], strides = [1, 1]} : vector<4x32xf32> to vector<2x32xf32>
    %280 = vector.shape_cast %279 : vector<2x32xf32> to vector<2x1x32xf32>
    %c0_56 = arith.constant 0 : index
    %c4_57 = arith.constant 4 : index
    %c0_58 = arith.constant 0 : index
    %281 = vector.load %arg15[%c0_56, %c4_57, %c0_58] : memref<2x8x64xf32, #tpu.memory_space<vmem>>, vector<2x1x32xf32>
    tpu.vector_store %arg15[%c0_56, %c4_57, %c0_58], %280 {strides = array<i32>} : memref<2x8x64xf32, #tpu.memory_space<vmem>>, vector<2x1x32xf32>,
    %282 = vector.extract_strided_slice %278 {offsets = [2, 0], sizes = [2, 32], strides = [1, 1]} : vector<4x32xf32> to vector<2x32xf32>
    %283 = vector.shape_cast %282 : vector<2x32xf32> to vector<2x1x32xf32>
    %c0_59 = arith.constant 0 : index
    %c3_60 = arith.constant 3 : index
    %c32_61 = arith.constant 32 : index
    %284 = vector.load %arg15[%c0_59, %c3_60, %c32_61] : memref<2x8x64xf32, #tpu.memory_space<vmem>>, vector<2x1x32xf32>
    tpu.vector_store %arg15[%c0_59, %c3_60, %c32_61], %283 {strides = array<i32>} : memref<2x8x64xf32, #tpu.memory_space<vmem>>, vector<2x1x32xf32>,
    %285 = vector.extract_strided_slice %9 {offsets = [5, 0, 0], sizes = [1, 2, 96], strides = [1, 1, 1]} : vector<8x2x192xf32> to vector<1x2x96xf32>
    %286 = vector.shape_cast %285 : vector<1x2x96xf32> to vector<2x96xf32>
    %287 = vector.extract_strided_slice %9 {offsets = [2, 0, 96], sizes = [1, 2, 96], strides = [1, 1, 1]} : vector<8x2x192xf32> to vector<1x2x96xf32>
    %288 = vector.shape_cast %287 : vector<1x2x96xf32> to vector<2x96xf32>
    %289 = tpu.concatenate %286, %288 in 0 : vector<2x96xf32>, vector<2x96xf32> -> vector<4x96xf32>
    %cst_62 = arith.constant dense<0.000000e+00> : vector<4x192xf32>
    %290 = tpu.matmul %274, %10, %cst_62 {dimension_numbers = #tpu.dot_dimension_numbers<[1], [0], [0], [1], [0, 0, 1, 1], [], []>} : vector<4x32xf32>, vector<32x192xf32>, vector<4x192xf32> -> vector<4x192xf32>
    %291 = vector.extract_strided_slice %290 {offsets = [0, 0], sizes = [2, 96], strides = [1, 1]} : vector<4x192xf32> to vector<2x96xf32>
    %292 = vector.extract_strided_slice %290 {offsets = [2, 96], sizes = [2, 96], strides = [1, 1]} : vector<4x192xf32> to vector<2x96xf32>
    %293 = tpu.concatenate %291, %292 in 0 : vector<2x96xf32>, vector<2x96xf32> -> vector<4x96xf32>
    %294 = arith.addf %293, %18 : vector<4x96xf32>
    %295 = vector.extract_strided_slice %289 {offsets = [0, 0], sizes = [4, 32], strides = [1, 1]} : vector<4x96xf32> to vector<4x32xf32>
    %296 = vector.extract_strided_slice %294 {offsets = [0, 0], sizes = [4, 32], strides = [1, 1]} : vector<4x96xf32> to vector<4x32xf32>
    %297 = arith.addf %295, %296 : vector<4x32xf32>
    %298 = arith.negf %297 : vector<4x32xf32>
    %299 = math.exp %298 : vector<4x32xf32>
    %cst_63 = arith.constant 1.000000e+00 : f32
    %300 = vector.broadcast %cst_63 : f32 to vector<4x32xf32>
    %301 = arith.addf %300, %299 : vector<4x32xf32>
    %302 = arith.divf %300, %301 : vector<4x32xf32>
    %303 = vector.extract_strided_slice %289 {offsets = [0, 32], sizes = [4, 32], strides = [1, 1]} : vector<4x96xf32> to vector<4x32xf32>
    %304 = vector.extract_strided_slice %294 {offsets = [0, 32], sizes = [4, 32], strides = [1, 1]} : vector<4x96xf32> to vector<4x32xf32>
    %305 = arith.addf %303, %304 : vector<4x32xf32>
    %306 = arith.negf %305 : vector<4x32xf32>
    %307 = math.exp %306 : vector<4x32xf32>
    %cst_64 = arith.constant 1.000000e+00 : f32
    %308 = vector.broadcast %cst_64 : f32 to vector<4x32xf32>
    %309 = arith.addf %308, %307 : vector<4x32xf32>
    %310 = arith.divf %308, %309 : vector<4x32xf32>
    %311 = vector.extract_strided_slice %289 {offsets = [0, 64], sizes = [4, 32], strides = [1, 1]} : vector<4x96xf32> to vector<4x32xf32>
    %312 = vector.extract_strided_slice %294 {offsets = [0, 64], sizes = [4, 32], strides = [1, 1]} : vector<4x96xf32> to vector<4x32xf32>
    %313 = arith.mulf %302, %312 : vector<4x32xf32>
    %314 = arith.addf %311, %313 : vector<4x32xf32>
    %315 = math.tanh %314 : vector<4x32xf32>
    %cst_65 = arith.constant 1.000000e+00 : f32
    %316 = vector.broadcast %cst_65 : f32 to vector<4x32xf32>
    %317 = arith.subf %316, %310 : vector<4x32xf32>
    %318 = arith.mulf %317, %315 : vector<4x32xf32>
    %319 = arith.mulf %310, %274 : vector<4x32xf32>
    %320 = arith.addf %318, %319 : vector<4x32xf32>
    %c5_i32_66 = arith.constant 5 : i32
    %321 = vector.broadcast %c5_i32_66 : i32 to vector<2x1xi32>
    %c2_i32_67 = arith.constant 2 : i32
    %322 = vector.broadcast %c2_i32_67 : i32 to vector<2x1xi32>
    %323 = tpu.concatenate %321, %322 in 0 : vector<2x1xi32>, vector<2x1xi32> -> vector<4x1xi32>
    %324 = arith.cmpi sgt, %1, %323 : vector<4x1xi32>
    %325 = vector.shape_cast %324 : vector<4x1xi1> to vector<4x1xi1>
    %326 = vector.broadcast %325 : vector<4x1xi1> to vector<4x32xi1>
    %327 = arith.select %326, %320, %274 : vector<4x32xi1>, vector<4x32xf32>
    %cst_68 = arith.constant 0.000000e+00 : f32
    %328 = vector.shape_cast %324 : vector<4x1xi1> to vector<4x1xi1>
    %329 = vector.broadcast %328 : vector<4x1xi1> to vector<4x32xi1>
    %330 = vector.broadcast %cst_68 : f32 to vector<4x32xf32>
    %331 = arith.select %329, %327, %330 : vector<4x32xi1>, vector<4x32xf32>
    %332 = vector.extract_strided_slice %331 {offsets = [0, 0], sizes = [2, 32], strides = [1, 1]} : vector<4x32xf32> to vector<2x32xf32>
    %333 = vector.shape_cast %332 : vector<2x32xf32> to vector<2x1x32xf32>
    %c0_69 = arith.constant 0 : index
    %c5_70 = arith.constant 5 : index
    %c0_71 = arith.constant 0 : index
    %334 = vector.load %arg15[%c0_69, %c5_70, %c0_71] : memref<2x8x64xf32, #tpu.memory_space<vmem>>, vector<2x1x32xf32>
    tpu.vector_store %arg15[%c0_69, %c5_70, %c0_71], %333 {strides = array<i32>} : memref<2x8x64xf32, #tpu.memory_space<vmem>>, vector<2x1x32xf32>,
    %335 = vector.extract_strided_slice %331 {offsets = [2, 0], sizes = [2, 32], strides = [1, 1]} : vector<4x32xf32> to vector<2x32xf32>
    %336 = vector.shape_cast %335 : vector<2x32xf32> to vector<2x1x32xf32>
    %c0_72 = arith.constant 0 : index
    %c2_73 = arith.constant 2 : index
    %c32_74 = arith.constant 32 : index
    %337 = vector.load %arg15[%c0_72, %c2_73, %c32_74] : memref<2x8x64xf32, #tpu.memory_space<vmem>>, vector<2x1x32xf32>
    tpu.vector_store %arg15[%c0_72, %c2_73, %c32_74], %336 {strides = array<i32>} : memref<2x8x64xf32, #tpu.memory_space<vmem>>, vector<2x1x32xf32>,
    %338 = vector.extract_strided_slice %9 {offsets = [6, 0, 0], sizes = [1, 2, 96], strides = [1, 1, 1]} : vector<8x2x192xf32> to vector<1x2x96xf32>
    %339 = vector.shape_cast %338 : vector<1x2x96xf32> to vector<2x96xf32>
    %340 = vector.extract_strided_slice %9 {offsets = [1, 0, 96], sizes = [1, 2, 96], strides = [1, 1, 1]} : vector<8x2x192xf32> to vector<1x2x96xf32>
    %341 = vector.shape_cast %340 : vector<1x2x96xf32> to vector<2x96xf32>
    %342 = tpu.concatenate %339, %341 in 0 : vector<2x96xf32>, vector<2x96xf32> -> vector<4x96xf32>
    %cst_75 = arith.constant dense<0.000000e+00> : vector<4x192xf32>
    %343 = tpu.matmul %327, %10, %cst_75 {dimension_numbers = #tpu.dot_dimension_numbers<[1], [0], [0], [1], [0, 0, 1, 1], [], []>} : vector<4x32xf32>, vector<32x192xf32>, vector<4x192xf32> -> vector<4x192xf32>
    %344 = vector.extract_strided_slice %343 {offsets = [0, 0], sizes = [2, 96], strides = [1, 1]} : vector<4x192xf32> to vector<2x96xf32>
    %345 = vector.extract_strided_slice %343 {offsets = [2, 96], sizes = [2, 96], strides = [1, 1]} : vector<4x192xf32> to vector<2x96xf32>
    %346 = tpu.concatenate %344, %345 in 0 : vector<2x96xf32>, vector<2x96xf32> -> vector<4x96xf32>
    %347 = arith.addf %346, %18 : vector<4x96xf32>
    %348 = vector.extract_strided_slice %342 {offsets = [0, 0], sizes = [4, 32], strides = [1, 1]} : vector<4x96xf32> to vector<4x32xf32>
    %349 = vector.extract_strided_slice %347 {offsets = [0, 0], sizes = [4, 32], strides = [1, 1]} : vector<4x96xf32> to vector<4x32xf32>
    %350 = arith.addf %348, %349 : vector<4x32xf32>
    %351 = arith.negf %350 : vector<4x32xf32>
    %352 = math.exp %351 : vector<4x32xf32>
    %cst_76 = arith.constant 1.000000e+00 : f32
    %353 = vector.broadcast %cst_76 : f32 to vector<4x32xf32>
    %354 = arith.addf %353, %352 : vector<4x32xf32>
    %355 = arith.divf %353, %354 : vector<4x32xf32>
    %356 = vector.extract_strided_slice %342 {offsets = [0, 32], sizes = [4, 32], strides = [1, 1]} : vector<4x96xf32> to vector<4x32xf32>
    %357 = vector.extract_strided_slice %347 {offsets = [0, 32], sizes = [4, 32], strides = [1, 1]} : vector<4x96xf32> to vector<4x32xf32>
    %358 = arith.addf %356, %357 : vector<4x32xf32>
    %359 = arith.negf %358 : vector<4x32xf32>
    %360 = math.exp %359 : vector<4x32xf32>
    %cst_77 = arith.constant 1.000000e+00 : f32
    %361 = vector.broadcast %cst_77 : f32 to vector<4x32xf32>
    %362 = arith.addf %361, %360 : vector<4x32xf32>
    %363 = arith.divf %361, %362 : vector<4x32xf32>
    %364 = vector.extract_strided_slice %342 {offsets = [0, 64], sizes = [4, 32], strides = [1, 1]} : vector<4x96xf32> to vector<4x32xf32>
    %365 = vector.extract_strided_slice %347 {offsets = [0, 64], sizes = [4, 32], strides = [1, 1]} : vector<4x96xf32> to vector<4x32xf32>
    %366 = arith.mulf %355, %365 : vector<4x32xf32>
    %367 = arith.addf %364, %366 : vector<4x32xf32>
    %368 = math.tanh %367 : vector<4x32xf32>
    %cst_78 = arith.constant 1.000000e+00 : f32
    %369 = vector.broadcast %cst_78 : f32 to vector<4x32xf32>
    %370 = arith.subf %369, %363 : vector<4x32xf32>
    %371 = arith.mulf %370, %368 : vector<4x32xf32>
    %372 = arith.mulf %363, %327 : vector<4x32xf32>
    %373 = arith.addf %371, %372 : vector<4x32xf32>
    %c6_i32_79 = arith.constant 6 : i32
    %374 = vector.broadcast %c6_i32_79 : i32 to vector<2x1xi32>
    %c1_i32_80 = arith.constant 1 : i32
    %375 = vector.broadcast %c1_i32_80 : i32 to vector<2x1xi32>
    %376 = tpu.concatenate %374, %375 in 0 : vector<2x1xi32>, vector<2x1xi32> -> vector<4x1xi32>
    %377 = arith.cmpi sgt, %1, %376 : vector<4x1xi32>
    %378 = vector.shape_cast %377 : vector<4x1xi1> to vector<4x1xi1>
    %379 = vector.broadcast %378 : vector<4x1xi1> to vector<4x32xi1>
    %380 = arith.select %379, %373, %327 : vector<4x32xi1>, vector<4x32xf32>
    %cst_81 = arith.constant 0.000000e+00 : f32
    %381 = vector.shape_cast %377 : vector<4x1xi1> to vector<4x1xi1>
    %382 = vector.broadcast %381 : vector<4x1xi1> to vector<4x32xi1>
    %383 = vector.broadcast %cst_81 : f32 to vector<4x32xf32>
    %384 = arith.select %382, %380, %383 : vector<4x32xi1>, vector<4x32xf32>
    %385 = vector.extract_strided_slice %384 {offsets = [0, 0], sizes = [2, 32], strides = [1, 1]} : vector<4x32xf32> to vector<2x32xf32>
    %386 = vector.shape_cast %385 : vector<2x32xf32> to vector<2x1x32xf32>
    %c0_82 = arith.constant 0 : index
    %c6_83 = arith.constant 6 : index
    %c0_84 = arith.constant 0 : index
    %387 = vector.load %arg15[%c0_82, %c6_83, %c0_84] : memref<2x8x64xf32, #tpu.memory_space<vmem>>, vector<2x1x32xf32>
    tpu.vector_store %arg15[%c0_82, %c6_83, %c0_84], %386 {strides = array<i32>} : memref<2x8x64xf32, #tpu.memory_space<vmem>>, vector<2x1x32xf32>,
    %388 = vector.extract_strided_slice %384 {offsets = [2, 0], sizes = [2, 32], strides = [1, 1]} : vector<4x32xf32> to vector<2x32xf32>
    %389 = vector.shape_cast %388 : vector<2x32xf32> to vector<2x1x32xf32>
    %c0_85 = arith.constant 0 : index
    %c1_86 = arith.constant 1 : index
    %c32_87 = arith.constant 32 : index
    %390 = vector.load %arg15[%c0_85, %c1_86, %c32_87] : memref<2x8x64xf32, #tpu.memory_space<vmem>>, vector<2x1x32xf32>
    tpu.vector_store %arg15[%c0_85, %c1_86, %c32_87], %389 {strides = array<i32>} : memref<2x8x64xf32, #tpu.memory_space<vmem>>, vector<2x1x32xf32>,
    %391 = vector.extract_strided_slice %9 {offsets = [7, 0, 0], sizes = [1, 2, 96], strides = [1, 1, 1]} : vector<8x2x192xf32> to vector<1x2x96xf32>
    %392 = vector.shape_cast %391 : vector<1x2x96xf32> to vector<2x96xf32>
    %393 = vector.extract_strided_slice %9 {offsets = [0, 0, 96], sizes = [1, 2, 96], strides = [1, 1, 1]} : vector<8x2x192xf32> to vector<1x2x96xf32>
    %394 = vector.shape_cast %393 : vector<1x2x96xf32> to vector<2x96xf32>
    %395 = tpu.concatenate %392, %394 in 0 : vector<2x96xf32>, vector<2x96xf32> -> vector<4x96xf32>
    %cst_88 = arith.constant dense<0.000000e+00> : vector<4x192xf32>
    %396 = tpu.matmul %380, %10, %cst_88 {dimension_numbers = #tpu.dot_dimension_numbers<[1], [0], [0], [1], [0, 0, 1, 1], [], []>} : vector<4x32xf32>, vector<32x192xf32>, vector<4x192xf32> -> vector<4x192xf32>
    %397 = vector.extract_strided_slice %396 {offsets = [0, 0], sizes = [2, 96], strides = [1, 1]} : vector<4x192xf32> to vector<2x96xf32>
    %398 = vector.extract_strided_slice %396 {offsets = [2, 96], sizes = [2, 96], strides = [1, 1]} : vector<4x192xf32> to vector<2x96xf32>
    %399 = tpu.concatenate %397, %398 in 0 : vector<2x96xf32>, vector<2x96xf32> -> vector<4x96xf32>
    %400 = arith.addf %399, %18 : vector<4x96xf32>
    %401 = vector.extract_strided_slice %395 {offsets = [0, 0], sizes = [4, 32], strides = [1, 1]} : vector<4x96xf32> to vector<4x32xf32>
    %402 = vector.extract_strided_slice %400 {offsets = [0, 0], sizes = [4, 32], strides = [1, 1]} : vector<4x96xf32> to vector<4x32xf32>
    %403 = arith.addf %401, %402 : vector<4x32xf32>
    %404 = arith.negf %403 : vector<4x32xf32>
    %405 = math.exp %404 : vector<4x32xf32>
    %cst_89 = arith.constant 1.000000e+00 : f32
    %406 = vector.broadcast %cst_89 : f32 to vector<4x32xf32>
    %407 = arith.addf %406, %405 : vector<4x32xf32>
    %408 = arith.divf %406, %407 : vector<4x32xf32>
    %409 = vector.extract_strided_slice %395 {offsets = [0, 32], sizes = [4, 32], strides = [1, 1]} : vector<4x96xf32> to vector<4x32xf32>
    %410 = vector.extract_strided_slice %400 {offsets = [0, 32], sizes = [4, 32], strides = [1, 1]} : vector<4x96xf32> to vector<4x32xf32>
    %411 = arith.addf %409, %410 : vector<4x32xf32>
    %412 = arith.negf %411 : vector<4x32xf32>
    %413 = math.exp %412 : vector<4x32xf32>
    %cst_90 = arith.constant 1.000000e+00 : f32
    %414 = vector.broadcast %cst_90 : f32 to vector<4x32xf32>
    %415 = arith.addf %414, %413 : vector<4x32xf32>
    %416 = arith.divf %414, %415 : vector<4x32xf32>
    %417 = vector.extract_strided_slice %395 {offsets = [0, 64], sizes = [4, 32], strides = [1, 1]} : vector<4x96xf32> to vector<4x32xf32>
    %418 = vector.extract_strided_slice %400 {offsets = [0, 64], sizes = [4, 32], strides = [1, 1]} : vector<4x96xf32> to vector<4x32xf32>
    %419 = arith.mulf %408, %418 : vector<4x32xf32>
    %420 = arith.addf %417, %419 : vector<4x32xf32>
    %421 = math.tanh %420 : vector<4x32xf32>
    %cst_91 = arith.constant 1.000000e+00 : f32
    %422 = vector.broadcast %cst_91 : f32 to vector<4x32xf32>
    %423 = arith.subf %422, %416 : vector<4x32xf32>
    %424 = arith.mulf %423, %421 : vector<4x32xf32>
    %425 = arith.mulf %416, %380 : vector<4x32xf32>
    %426 = arith.addf %424, %425 : vector<4x32xf32>
    %c7_i32_92 = arith.constant 7 : i32
    %427 = vector.broadcast %c7_i32_92 : i32 to vector<2x1xi32>
    %c0_i32_93 = arith.constant 0 : i32
    %428 = vector.broadcast %c0_i32_93 : i32 to vector<2x1xi32>
    %429 = tpu.concatenate %427, %428 in 0 : vector<2x1xi32>, vector<2x1xi32> -> vector<4x1xi32>
    %430 = arith.cmpi sgt, %1, %429 : vector<4x1xi32>
    %431 = vector.shape_cast %430 : vector<4x1xi1> to vector<4x1xi1>
    %432 = vector.broadcast %431 : vector<4x1xi1> to vector<4x32xi1>
    %433 = arith.select %432, %426, %380 : vector<4x32xi1>, vector<4x32xf32>
    %cst_94 = arith.constant 0.000000e+00 : f32
    %434 = vector.shape_cast %430 : vector<4x1xi1> to vector<4x1xi1>
    %435 = vector.broadcast %434 : vector<4x1xi1> to vector<4x32xi1>
    %436 = vector.broadcast %cst_94 : f32 to vector<4x32xf32>
    %437 = arith.select %435, %433, %436 : vector<4x32xi1>, vector<4x32xf32>
    %438 = vector.extract_strided_slice %437 {offsets = [0, 0], sizes = [2, 32], strides = [1, 1]} : vector<4x32xf32> to vector<2x32xf32>
    %439 = vector.shape_cast %438 : vector<2x32xf32> to vector<2x1x32xf32>
    %c0_95 = arith.constant 0 : index
    %c7_96 = arith.constant 7 : index
    %c0_97 = arith.constant 0 : index
    %440 = vector.load %arg15[%c0_95, %c7_96, %c0_97] : memref<2x8x64xf32, #tpu.memory_space<vmem>>, vector<2x1x32xf32>
    tpu.vector_store %arg15[%c0_95, %c7_96, %c0_97], %439 {strides = array<i32>} : memref<2x8x64xf32, #tpu.memory_space<vmem>>, vector<2x1x32xf32>,
    %441 = vector.extract_strided_slice %437 {offsets = [2, 0], sizes = [2, 32], strides = [1, 1]} : vector<4x32xf32> to vector<2x32xf32>
    %442 = vector.shape_cast %441 : vector<2x32xf32> to vector<2x1x32xf32>
    %c0_98 = arith.constant 0 : index
    %c0_99 = arith.constant 0 : index
    %c32_100 = arith.constant 32 : index
    %443 = vector.load %arg15[%c0_98, %c0_99, %c32_100] : memref<2x8x64xf32, #tpu.memory_space<vmem>>, vector<2x1x32xf32>
    tpu.vector_store %arg15[%c0_98, %c0_99, %c32_100], %442 {strides = array<i32>} : memref<2x8x64xf32, #tpu.memory_space<vmem>>, vector<2x1x32xf32>,
    %c0_101 = arith.constant 0 : index
    %c0_102 = arith.constant 0 : index
    %c0_103 = arith.constant 0 : index
    %444 = vector.load %arg15[%c0_101, %c0_102, %c0_103] : memref<2x8x64xf32, #tpu.memory_space<vmem>>, vector<2x8x64xf32>
    %445 = vector.shape_cast %444 : vector<2x8x64xf32> to vector<16x64xf32>
    %c0_104 = arith.constant 0 : index
    %c0_105 = arith.constant 0 : index
    %446 = vector.load %arg6[%c0_104, %c0_105] : memref<64x192xf32, #tpu.memory_space<vmem>>, vector<64x192xf32>
    %cst_106 = arith.constant dense<0.000000e+00> : vector<16x192xf32>
    %447 = tpu.matmul %445, %446, %cst_106 {dimension_numbers = #tpu.dot_dimension_numbers<[1], [0], [0], [1], [0, 0, 1, 1], [], []>} : vector<16x64xf32>, vector<64x192xf32>, vector<16x192xf32> -> vector<16x192xf32>
    %c0_107 = arith.constant 0 : index
    %c0_108 = arith.constant 0 : index
    %448 = vector.load %arg7[%c0_107, %c0_108] : memref<1x192xf32, #tpu.memory_space<vmem>>, vector<1x192xf32>
    %449 = vector.broadcast %448 : vector<1x192xf32> to vector<16x192xf32>
    %450 = arith.addf %447, %449 : vector<16x192xf32>
    %451 = vector.extract_strided_slice %450 {offsets = [0, 0], sizes = [16, 16], strides = [1, 1]} : vector<16x192xf32> to vector<16x16xf32>
    %452 = vector.shape_cast %451 : vector<16x16xf32> to vector<2x8x16xf32>
    %453 = vector.extract_strided_slice %450 {offsets = [0, 64], sizes = [16, 16], strides = [1, 1]} : vector<16x192xf32> to vector<16x16xf32>
    %454 = vector.shape_cast %453 : vector<16x16xf32> to vector<2x8x16xf32>
    %455 = vector.extract_strided_slice %450 {offsets = [0, 128], sizes = [16, 16], strides = [1, 1]} : vector<16x192xf32> to vector<16x16xf32>
    %456 = vector.shape_cast %455 : vector<16x16xf32> to vector<2x8x16xf32>
    "tpu.trace_start"() <{level = 10 : i32, message = "btd,bsd->bts"}> : () -> ()
    %cst_109 = arith.constant dense<0.000000e+00> : vector<2x8x8xf32>
    %457 = tpu.matmul %452, %454, %cst_109 {dimension_numbers = #tpu.dot_dimension_numbers<[2], [2], [1], [1], [0, 0, 0, 1, 1, 1], [0], [0]>} : vector<2x8x16xf32>, vector<2x8x16xf32>, vector<2x8x8xf32> -> vector<2x8x8xf32>
    "tpu.trace_stop"() : () -> ()
    %cst_110 = arith.constant 2.500000e-01 : f32
    %458 = vector.broadcast %cst_110 : f32 to vector<2x8x8xf32>
    %459 = arith.mulf %457, %458 : vector<2x8x8xf32>
    %cst_111 = arith.constant dense<0xFF800000> : vector<2x8xf32>
    %460 = vector.multi_reduction <maximumf>, %459, %cst_111 [2] : vector<2x8x8xf32> to vector<2x8xf32>
    %461 = vector.shape_cast %460 : vector<2x8xf32> to vector<2x8x1xf32>
    %462 = vector.broadcast %461 : vector<2x8x1xf32> to vector<2x8x8xf32>
    %463 = arith.subf %459, %462 : vector<2x8x8xf32>
    %464 = math.exp %463 : vector<2x8x8xf32>
    %cst_112 = arith.constant dense<0.000000e+00> : vector<2x8xf32>
    %465 = vector.multi_reduction <add>, %464, %cst_112 [2] : vector<2x8x8xf32> to vector<2x8xf32>
    %466 = vector.shape_cast %465 : vector<2x8xf32> to vector<2x8x1xf32>
    %467 = tpu.reciprocal %466 {approx = true} : vector<2x8x1xf32> -> vector<2x8x1xf32>
    %468 = vector.broadcast %467 : vector<2x8x1xf32> to vector<2x8x8xf32>
    %469 = arith.mulf %464, %468 : vector<2x8x8xf32>
    "tpu.trace_start"() <{level = 10 : i32, message = "bts,bsd->btd"}> : () -> ()
    %cst_113 = arith.constant dense<0.000000e+00> : vector<2x8x16xf32>
    %470 = tpu.matmul %469, %456, %cst_113 {dimension_numbers = #tpu.dot_dimension_numbers<[2], [1], [1], [2], [0, 0, 0, 1, 1, 2], [0], [0]>} : vector<2x8x8xf32>, vector<2x8x16xf32>, vector<2x8x16xf32> -> vector<2x8x16xf32>
    "tpu.trace_stop"() : () -> ()
    %471 = vector.shape_cast %470 : vector<2x8x16xf32> to vector<16x16xf32>
    %472 = vector.extract_strided_slice %450 {offsets = [0, 16], sizes = [16, 16], strides = [1, 1]} : vector<16x192xf32> to vector<16x16xf32>
    %473 = vector.shape_cast %472 : vector<16x16xf32> to vector<2x8x16xf32>
    %474 = vector.extract_strided_slice %450 {offsets = [0, 80], sizes = [16, 16], strides = [1, 1]} : vector<16x192xf32> to vector<16x16xf32>
    %475 = vector.shape_cast %474 : vector<16x16xf32> to vector<2x8x16xf32>
    %476 = vector.extract_strided_slice %450 {offsets = [0, 144], sizes = [16, 16], strides = [1, 1]} : vector<16x192xf32> to vector<16x16xf32>
    %477 = vector.shape_cast %476 : vector<16x16xf32> to vector<2x8x16xf32>
    "tpu.trace_start"() <{level = 10 : i32, message = "btd,bsd->bts"}> : () -> ()
    %cst_114 = arith.constant dense<0.000000e+00> : vector<2x8x8xf32>
    %478 = tpu.matmul %473, %475, %cst_114 {dimension_numbers = #tpu.dot_dimension_numbers<[2], [2], [1], [1], [0, 0, 0, 1, 1, 1], [0], [0]>} : vector<2x8x16xf32>, vector<2x8x16xf32>, vector<2x8x8xf32> -> vector<2x8x8xf32>
    "tpu.trace_stop"() : () -> ()
    %cst_115 = arith.constant 2.500000e-01 : f32
    %479 = vector.broadcast %cst_115 : f32 to vector<2x8x8xf32>
    %480 = arith.mulf %478, %479 : vector<2x8x8xf32>
    %cst_116 = arith.constant dense<0xFF800000> : vector<2x8xf32>
    %481 = vector.multi_reduction <maximumf>, %480, %cst_116 [2] : vector<2x8x8xf32> to vector<2x8xf32>
    %482 = vector.shape_cast %481 : vector<2x8xf32> to vector<2x8x1xf32>
    %483 = vector.broadcast %482 : vector<2x8x1xf32> to vector<2x8x8xf32>
    %484 = arith.subf %480, %483 : vector<2x8x8xf32>
    %485 = math.exp %484 : vector<2x8x8xf32>
    %cst_117 = arith.constant dense<0.000000e+00> : vector<2x8xf32>
    %486 = vector.multi_reduction <add>, %485, %cst_117 [2] : vector<2x8x8xf32> to vector<2x8xf32>
    %487 = vector.shape_cast %486 : vector<2x8xf32> to vector<2x8x1xf32>
    %488 = tpu.reciprocal %487 {approx = true} : vector<2x8x1xf32> -> vector<2x8x1xf32>
    %489 = vector.broadcast %488 : vector<2x8x1xf32> to vector<2x8x8xf32>
    %490 = arith.mulf %485, %489 : vector<2x8x8xf32>
    "tpu.trace_start"() <{level = 10 : i32, message = "bts,bsd->btd"}> : () -> ()
    %cst_118 = arith.constant dense<0.000000e+00> : vector<2x8x16xf32>
    %491 = tpu.matmul %490, %477, %cst_118 {dimension_numbers = #tpu.dot_dimension_numbers<[2], [1], [1], [2], [0, 0, 0, 1, 1, 2], [0], [0]>} : vector<2x8x8xf32>, vector<2x8x16xf32>, vector<2x8x16xf32> -> vector<2x8x16xf32>
    "tpu.trace_stop"() : () -> ()
    %492 = vector.shape_cast %491 : vector<2x8x16xf32> to vector<16x16xf32>
    %493 = vector.extract_strided_slice %450 {offsets = [0, 32], sizes = [16, 16], strides = [1, 1]} : vector<16x192xf32> to vector<16x16xf32>
    %494 = vector.shape_cast %493 : vector<16x16xf32> to vector<2x8x16xf32>
    %495 = vector.extract_strided_slice %450 {offsets = [0, 96], sizes = [16, 16], strides = [1, 1]} : vector<16x192xf32> to vector<16x16xf32>
    %496 = vector.shape_cast %495 : vector<16x16xf32> to vector<2x8x16xf32>
    %497 = vector.extract_strided_slice %450 {offsets = [0, 160], sizes = [16, 16], strides = [1, 1]} : vector<16x192xf32> to vector<16x16xf32>
    %498 = vector.shape_cast %497 : vector<16x16xf32> to vector<2x8x16xf32>
    "tpu.trace_start"() <{level = 10 : i32, message = "btd,bsd->bts"}> : () -> ()
    %cst_119 = arith.constant dense<0.000000e+00> : vector<2x8x8xf32>
    %499 = tpu.matmul %494, %496, %cst_119 {dimension_numbers = #tpu.dot_dimension_numbers<[2], [2], [1], [1], [0, 0, 0, 1, 1, 1], [0], [0]>} : vector<2x8x16xf32>, vector<2x8x16xf32>, vector<2x8x8xf32> -> vector<2x8x8xf32>
    "tpu.trace_stop"() : () -> ()
    %cst_120 = arith.constant 2.500000e-01 : f32
    %500 = vector.broadcast %cst_120 : f32 to vector<2x8x8xf32>
    %501 = arith.mulf %499, %500 : vector<2x8x8xf32>
    %cst_121 = arith.constant dense<0xFF800000> : vector<2x8xf32>
    %502 = vector.multi_reduction <maximumf>, %501, %cst_121 [2] : vector<2x8x8xf32> to vector<2x8xf32>
    %503 = vector.shape_cast %502 : vector<2x8xf32> to vector<2x8x1xf32>
    %504 = vector.broadcast %503 : vector<2x8x1xf32> to vector<2x8x8xf32>
    %505 = arith.subf %501, %504 : vector<2x8x8xf32>
    %506 = math.exp %505 : vector<2x8x8xf32>
    %cst_122 = arith.constant dense<0.000000e+00> : vector<2x8xf32>
    %507 = vector.multi_reduction <add>, %506, %cst_122 [2] : vector<2x8x8xf32> to vector<2x8xf32>
    %508 = vector.shape_cast %507 : vector<2x8xf32> to vector<2x8x1xf32>
    %509 = tpu.reciprocal %508 {approx = true} : vector<2x8x1xf32> -> vector<2x8x1xf32>
    %510 = vector.broadcast %509 : vector<2x8x1xf32> to vector<2x8x8xf32>
    %511 = arith.mulf %506, %510 : vector<2x8x8xf32>
    "tpu.trace_start"() <{level = 10 : i32, message = "bts,bsd->btd"}> : () -> ()
    %cst_123 = arith.constant dense<0.000000e+00> : vector<2x8x16xf32>
    %512 = tpu.matmul %511, %498, %cst_123 {dimension_numbers = #tpu.dot_dimension_numbers<[2], [1], [1], [2], [0, 0, 0, 1, 1, 2], [0], [0]>} : vector<2x8x8xf32>, vector<2x8x16xf32>, vector<2x8x16xf32> -> vector<2x8x16xf32>
    "tpu.trace_stop"() : () -> ()
    %513 = vector.shape_cast %512 : vector<2x8x16xf32> to vector<16x16xf32>
    %514 = vector.extract_strided_slice %450 {offsets = [0, 48], sizes = [16, 16], strides = [1, 1]} : vector<16x192xf32> to vector<16x16xf32>
    %515 = vector.shape_cast %514 : vector<16x16xf32> to vector<2x8x16xf32>
    %516 = vector.extract_strided_slice %450 {offsets = [0, 112], sizes = [16, 16], strides = [1, 1]} : vector<16x192xf32> to vector<16x16xf32>
    %517 = vector.shape_cast %516 : vector<16x16xf32> to vector<2x8x16xf32>
    %518 = vector.extract_strided_slice %450 {offsets = [0, 176], sizes = [16, 16], strides = [1, 1]} : vector<16x192xf32> to vector<16x16xf32>
    %519 = vector.shape_cast %518 : vector<16x16xf32> to vector<2x8x16xf32>
    "tpu.trace_start"() <{level = 10 : i32, message = "btd,bsd->bts"}> : () -> ()
    %cst_124 = arith.constant dense<0.000000e+00> : vector<2x8x8xf32>
    %520 = tpu.matmul %515, %517, %cst_124 {dimension_numbers = #tpu.dot_dimension_numbers<[2], [2], [1], [1], [0, 0, 0, 1, 1, 1], [0], [0]>} : vector<2x8x16xf32>, vector<2x8x16xf32>, vector<2x8x8xf32> -> vector<2x8x8xf32>
    "tpu.trace_stop"() : () -> ()
    %cst_125 = arith.constant 2.500000e-01 : f32
    %521 = vector.broadcast %cst_125 : f32 to vector<2x8x8xf32>
    %522 = arith.mulf %520, %521 : vector<2x8x8xf32>
    %cst_126 = arith.constant dense<0xFF800000> : vector<2x8xf32>
    %523 = vector.multi_reduction <maximumf>, %522, %cst_126 [2] : vector<2x8x8xf32> to vector<2x8xf32>
    %524 = vector.shape_cast %523 : vector<2x8xf32> to vector<2x8x1xf32>
    %525 = vector.broadcast %524 : vector<2x8x1xf32> to vector<2x8x8xf32>
    %526 = arith.subf %522, %525 : vector<2x8x8xf32>
    %527 = math.exp %526 : vector<2x8x8xf32>
    %cst_127 = arith.constant dense<0.000000e+00> : vector<2x8xf32>
    %528 = vector.multi_reduction <add>, %527, %cst_127 [2] : vector<2x8x8xf32> to vector<2x8xf32>
    %529 = vector.shape_cast %528 : vector<2x8xf32> to vector<2x8x1xf32>
    %530 = tpu.reciprocal %529 {approx = true} : vector<2x8x1xf32> -> vector<2x8x1xf32>
    %531 = vector.broadcast %530 : vector<2x8x1xf32> to vector<2x8x8xf32>
    %532 = arith.mulf %527, %531 : vector<2x8x8xf32>
    "tpu.trace_start"() <{level = 10 : i32, message = "bts,bsd->btd"}> : () -> ()
    %cst_128 = arith.constant dense<0.000000e+00> : vector<2x8x16xf32>
    %533 = tpu.matmul %532, %519, %cst_128 {dimension_numbers = #tpu.dot_dimension_numbers<[2], [1], [1], [2], [0, 0, 0, 1, 1, 2], [0], [0]>} : vector<2x8x8xf32>, vector<2x8x16xf32>, vector<2x8x16xf32> -> vector<2x8x16xf32>
    "tpu.trace_stop"() : () -> ()
    %534 = vector.shape_cast %533 : vector<2x8x16xf32> to vector<16x16xf32>
    %535 = tpu.concatenate %471, %492, %513, %534 in 1 : vector<16x16xf32>, vector<16x16xf32>, vector<16x16xf32>, vector<16x16xf32> -> vector<16x64xf32>
    %c0_129 = arith.constant 0 : index
    %c0_130 = arith.constant 0 : index
    %536 = vector.load %arg8[%c0_129, %c0_130] : memref<64x64xf32, #tpu.memory_space<vmem>>, vector<64x64xf32>
    %cst_131 = arith.constant dense<0.000000e+00> : vector<16x64xf32>
    %537 = tpu.matmul %535, %536, %cst_131 {dimension_numbers = #tpu.dot_dimension_numbers<[1], [0], [0], [1], [0, 0, 1, 1], [], []>} : vector<16x64xf32>, vector<64x64xf32>, vector<16x64xf32> -> vector<16x64xf32>
    %c0_132 = arith.constant 0 : index
    %c0_133 = arith.constant 0 : index
    %538 = vector.load %arg9[%c0_132, %c0_133] : memref<1x64xf32, #tpu.memory_space<vmem>>, vector<1x64xf32>
    %539 = vector.broadcast %538 : vector<1x64xf32> to vector<16x64xf32>
    %540 = arith.addf %537, %539 : vector<16x64xf32>
    %541 = vector.shape_cast %540 : vector<16x64xf32> to vector<2x8x64xf32>
    %cst_134 = arith.constant dense<0.000000e+00> : vector<2x64xf32>
    %542 = vector.multi_reduction <add>, %541, %cst_134 [1] : vector<2x8x64xf32> to vector<2x64xf32>
    %cst_135 = arith.constant 8.000000e+00 : f32
    %543 = vector.broadcast %cst_135 : f32 to vector<2x64xf32>
    %544 = arith.divf %542, %543 : vector<2x64xf32>
    %cst_136 = arith.constant dense<0xFF800000> : vector<2x64xf32>
    %545 = vector.multi_reduction <maximumf>, %541, %cst_136 [1] : vector<2x8x64xf32> to vector<2x64xf32>
    %546 = tpu.concatenate %544, %545 in 1 : vector<2x64xf32>, vector<2x64xf32> -> vector<2x128xf32>
    %c0_137 = arith.constant 0 : index
    %c0_138 = arith.constant 0 : index
    %547 = vector.load %arg10[%c0_137, %c0_138] : memref<128x32xf32, #tpu.memory_space<vmem>>, vector<128x32xf32>
    %cst_139 = arith.constant dense<0.000000e+00> : vector<2x32xf32>
    %548 = tpu.matmul %546, %547, %cst_139 {dimension_numbers = #tpu.dot_dimension_numbers<[1], [0], [0], [1], [0, 0, 1, 1], [], []>} : vector<2x128xf32>, vector<128x32xf32>, vector<2x32xf32> -> vector<2x32xf32>
    %c0_140 = arith.constant 0 : index
    %c0_141 = arith.constant 0 : index
    %549 = vector.load %arg11[%c0_140, %c0_141] : memref<1x32xf32, #tpu.memory_space<vmem>>, vector<1x32xf32>
    %550 = vector.broadcast %549 : vector<1x32xf32> to vector<2x32xf32>
    %551 = arith.addf %548, %550 : vector<2x32xf32>
    %cst_142 = arith.constant 0.000000e+00 : f32
    %552 = vector.broadcast %cst_142 : f32 to vector<2x32xf32>
    %553 = arith.maximumf %551, %552 : vector<2x32xf32>
    %c0_143 = arith.constant 0 : index
    %c0_144 = arith.constant 0 : index
    %554 = vector.load %arg12[%c0_143, %c0_144] : memref<32x6xf32, #tpu.memory_space<vmem>>, vector<32x6xf32>
    %cst_145 = arith.constant dense<0.000000e+00> : vector<2x6xf32>
    %555 = tpu.matmul %553, %554, %cst_145 {dimension_numbers = #tpu.dot_dimension_numbers<[1], [0], [0], [1], [0, 0, 1, 1], [], []>} : vector<2x32xf32>, vector<32x6xf32>, vector<2x6xf32> -> vector<2x6xf32>
    %c0_146 = arith.constant 0 : index
    %c0_147 = arith.constant 0 : index
    %556 = vector.load %arg13[%c0_146, %c0_147] : memref<1x6xf32, #tpu.memory_space<vmem>>, vector<1x6xf32>
    %557 = vector.broadcast %556 : vector<1x6xf32> to vector<2x6xf32>
    %558 = arith.addf %555, %557 : vector<2x6xf32>
    %c0_148 = arith.constant 0 : index
    %c0_149 = arith.constant 0 : index
    %559 = vector.load %arg14[%c0_148, %c0_149] : memref<2x6xf32, #tpu.memory_space<vmem>>, vector<2x6xf32>
    tpu.vector_store %arg14[%c0_148, %c0_149], %558 {strides = array<i32>} : memref<2x6xf32, #tpu.memory_space<vmem>>, vector<2x6xf32>,
    return
  }
}

</mosaic_0001>

<llo_original>
// kernel: forward.1
$region0: #{forward.1}
  #allocation0 [shape = 'u32[]', space=smem, size = 0x4, offset = 0x4, fixed_abs, tag = 'smem constant byte address 0x4 - core index']
  #allocation1 [shape = 'u32[144,128]{1,0:T(1,128)}', space=vmem, size = 0x12000, scoped, tag = 'internal scratch']
  #allocation2 [shape = 'f32[2,8,64]{2,1,0:T(8,128)}', space=vmem, size = 0x2000, scoped, tag = 'scratch operand']
  %s0 = inlined_call_operand.vmem [shape: s32[2,1], index: 0, kind: input, shape index: {}]
  %s1 = inlined_call_operand.vmem [shape: f32[8,2,32], index: 1, kind: input, shape index: {}]
  %s2 = inlined_call_operand.vmem [shape: f32[32,192], index: 2, kind: input, shape index: {}]
  %s3 = inlined_call_operand.vmem [shape: f32[1,192], index: 3, kind: input, shape index: {}]
  %s4 = inlined_call_operand.vmem [shape: f32[32,192], index: 4, kind: input, shape index: {}]
  %s5 = inlined_call_operand.vmem [shape: f32[2,96], index: 5, kind: input, shape index: {}]
  %s6 = inlined_call_operand.vmem [shape: f32[64,192], index: 6, kind: input, shape index: {}]
  %s7 = inlined_call_operand.vmem [shape: f32[1,192], index: 7, kind: input, shape index: {}]
  %s8 = inlined_call_operand.vmem [shape: f32[64,64], index: 8, kind: input, shape index: {}]
  %s9 = inlined_call_operand.vmem [shape: f32[1,64], index: 9, kind: input, shape index: {}]
  %s10 = inlined_call_operand.vmem [shape: f32[128,32], index: 10, kind: input, shape index: {}]
  %s11 = inlined_call_operand.vmem [shape: f32[1,32], index: 11, kind: input, shape index: {}]
  %s12 = inlined_call_operand.vmem [shape: f32[32,6], index: 12, kind: input, shape index: {}]
  %s13 = inlined_call_operand.vmem [shape: f32[1,6], index: 13, kind: input, shape index: {}]
  %s14 = inlined_call_operand.hbm [shape: f32[2,6], index: 14, kind: output, shape index: {}]
  %s15 = sld [smem:[#allocation0]]
  $region66: #{forward.1} parent=0
    _
  %s17 = ssub.s32 1, %s15
  %s18 = scalar_select 0, %s17, %s15
  $region1: #{forward.1} parent=0
    #allocation3 [shape = 'u8[1024]{0}', space=vmem, size = 0x400, scoped, tag = 'output window, operand 0, single buffered']
    #allocation4 [shape = 's32[1]{0}', space=sflag, size = 0x4, scoped, tag = 'scoped memory for forward.1']
    %19 = vsyncpa [#allocation4], 0
    // Predicated region
    $region2: #{forward.1} parent=1 // pred_check
      _
    $region3: #{forward.1} parent=1 // pred_check_branch
      %21 = sbr.rel (0) target = $region5
    $region4: #{forward.1} parent=1 // pred_region
      _
    $region5: #{forward.1} parent=1 // pred_fallthru
      _
    // Predicated region
    $region6: #{forward.1} parent=1 // pred_check
      _
    $region7: #{forward.1} parent=1 // pred_check_branch
      %23 = sbr.rel (0) target = $region9
    $region8: #{forward.1} parent=1 // pred_region
      _
    $region9: #{forward.1} parent=1 // pred_fallthru
      _
    // Predicated region
    $region10: #{forward.1} parent=1 // pred_check
      _
    $region11: #{forward.1} parent=1 // pred_check_branch
      %25 = sbr.rel (0) target = $region13
    $region12: #{forward.1} parent=1 // pred_region
      _
    $region13: #{forward.1} parent=1 // pred_fallthru
      _
    // Predicated region
    $region14: #{forward.1} parent=1 // pred_check
      _
    $region15: #{forward.1} parent=1 // pred_check_branch
      %27 = sbr.rel (0) target = $region17
    $region16: #{forward.1} parent=1 // pred_region
      _
    $region17: #{forward.1} parent=1 // pred_fallthru
      _
    // Predicated region
    $region18: #{forward.1} parent=1 // pred_check
      _
    $region19: #{forward.1} parent=1 // pred_check_branch
      %29 = sbr.rel (0) target = $region21
    $region20: #{forward.1} parent=1 // pred_region
      _
    $region21: #{forward.1} parent=1 // pred_fallthru
      _
    // Predicated region
    $region22: #{forward.1} parent=1 // pred_check
      _
    $region23: #{forward.1} parent=1 // pred_check_branch
      %31 = sbr.rel (0) target = $region25
    $region24: #{forward.1} parent=1 // pred_region
      _
    $region25: #{forward.1} parent=1 // pred_fallthru
      _
    // Predicated region
    $region26: #{forward.1} parent=1 // pred_check
      _
    $region27: #{forward.1} parent=1 // pred_check_branch
      %33 = sbr.rel (0) target = $region29
    $region28: #{forward.1} parent=1 // pred_region
      _
    $region29: #{forward.1} parent=1 // pred_fallthru
      _
    // Predicated region
    $region30: #{forward.1} parent=1 // pred_check
      _
    $region31: #{forward.1} parent=1 // pred_check_branch
      %35 = sbr.rel (0) target = $region33
    $region32: #{forward.1} parent=1 // pred_region
      _
    $region33: #{forward.1} parent=1 // pred_fallthru
      _
    // Predicated region
    $region34: #{forward.1} parent=1 // pred_check
      _
    $region35: #{forward.1} parent=1 // pred_check_branch
      %37 = sbr.rel (0) target = $region37
    $region36: #{forward.1} parent=1 // pred_region
      _
    $region37: #{forward.1} parent=1 // pred_fallthru
      _
    // Predicated region
    $region38: #{forward.1} parent=1 // pred_check
      _
    $region39: #{forward.1} parent=1 // pred_check_branch
      %39 = sbr.rel (0) target = $region41
    $region40: #{forward.1} parent=1 // pred_region
      _
    $region41: #{forward.1} parent=1 // pred_fallthru
      _
    // Predicated region
    $region42: #{forward.1} parent=1 // pred_check
      _
    $region43: #{forward.1} parent=1 // pred_check_branch
      %41 = sbr.rel (0) target = $region45
    $region44: #{forward.1} parent=1 // pred_region
      _
    $region45: #{forward.1} parent=1 // pred_fallthru
      _
    // Predicated region
    $region46: #{forward.1} parent=1 // pred_check
      _
    $region47: #{forward.1} parent=1 // pred_check_branch
      %43 = sbr.rel (0) target = $region49
    $region48: #{forward.1} parent=1 // pred_region
      _
    $region49: #{forward.1} parent=1 // pred_fallthru
      _
    // Predicated region
    $region50: #{forward.1} parent=1 // pred_check
      _
    $region51: #{forward.1} parent=1 // pred_check_branch
      %45 = sbr.rel (0) target = $region53
    $region52: #{forward.1} parent=1 // pred_region
      _
    $region53: #{forward.1} parent=1 // pred_fallthru
      _
    // Predicated region
    $region54: #{forward.1} parent=1 // pred_check
      _
    $region55: #{forward.1} parent=1 // pred_check_branch
      %47 = sbr.rel (0) target = $region57
    $region56: #{forward.1} parent=1 // pred_region
      _
    $region57: #{forward.1} parent=1 // pred_fallthru
      _
    %v48 = vld [vmem:[%s0] sm:$0x3]
    %v49 = vrot.slane %v48, 6
    %vm50 = vcmask 1041408
    %v51 = vsel %vm50, %v48, %v49
    %v52 = vld [vmem:[%s1] sm:$0x3]
    %v53 = vld [vmem:[%s1 + $0x2] sm:$0x3]
    %v54 = vld [vmem:[%s1 + $0x4] sm:$0x3]
    %v55 = vld [vmem:[%s1 + $0x6] sm:$0x3]
    %v56 = vld [vmem:[%s1 + $0x8] sm:$0x3]
    %v57 = vld [vmem:[%s1 + $0xa] sm:$0x3]
    %v58 = vld [vmem:[%s1 + $0xc] sm:$0x3]
    %v59 = vld [vmem:[%s1 + $0xe] sm:$0x3]
    %v60 = vld [vmem:[%s2] sm:$0xff]
    %v61 = vld [vmem:[%s2 + $0x8] sm:$0xff]
    %v62 = vld [vmem:[%s2 + $0x10] sm:$0xff]
    %v63 = vld [vmem:[%s2 + $0x18] sm:$0xff]
    %v64 = vld [vmem:[%s2 + $0x20] sm:$0xff]
    %v65 = vld [vmem:[%s2 + $0x28] sm:$0xff]
    %v66 = vld [vmem:[%s2 + $0x30] sm:$0xff]
    %v67 = vld [vmem:[%s2 + $0x38] sm:$0xff]
    %v68 = vld [vmem:[%s3] sm:$0x3]
    %v70 = vlaneseq
    %v71 = vshrl.u32 %v70, 7
    %v72 = vsub.s32 0, %v71
    %v73 = vrot.slane %v68, %v72
    %v74 = vlaneseq
    %v75 = vshrl.u32 %v74, 7
    %v76 = vsub.s32 1, %v75
    %v77 = vrot.slane %v68, %v76
    %v88 = vcombine.low %v52, %v53
    %v89 = vcombine.low %v54, %v55
    %v91 = vunpack.c.l.s4 1983009808
    %v92 = vunpack.c.0.s8 %v91
    %v93 = vlaneseq
    %v94 = vshrl.u32 %v93, 7
    %v95 = vsub.s32 %v92, %v94
    %v96 = vrot.slane %v88, %v95
    %v98 = vunpack.c.l.s4 1983009808
    %v99 = vunpack.c.0.s8 %v98
    %v100 = vlaneseq
    %v101 = vshrl.u32 %v100, 7
    %v102 = vsub.s32 %v99, %v101
    %v103 = vrot.slane %v89, %v102
    %v104 = vcombine.low %v96, %v103
    %v105 = vcombine.low %v56, %v57
    %v106 = vcombine.low %v58, %v59
    %v108 = vunpack.c.l.s4 1983009808
    %v109 = vunpack.c.0.s8 %v108
    %v110 = vlaneseq
    %v111 = vshrl.u32 %v110, 7
    %v112 = vsub.s32 %v109, %v111
    %v113 = vrot.slane %v105, %v112
    %v115 = vunpack.c.l.s4 1983009808
    %v116 = vunpack.c.0.s8 %v115
    %v117 = vlaneseq
    %v118 = vshrl.u32 %v117, 7
    %v119 = vsub.s32 %v116, %v118
    %v120 = vrot.slane %v106, %v119
    %v121 = vcombine.low %v113, %v120
    %vm122 = vcmask 261120
    %v123 = vsel %vm122, %v104, 0
    %v125 = vsel %vm122, %v121, 0
    %127 = vmatprep.subr.mxu0 %v61
    %128 = vmatpush1.msra.mxu0 %v60
    %129 = vmatprep.subr.mxu0 %v63
    %130 = vmatpush1.msra.mxu0 %v62
    %131 = vmatprep.subr.mxu0 %v65
    %132 = vmatpush1.msra.mxu0 %v64
    %133 = vmatprep.subr.mxu0 %v67
    %134 = vmatpush1.msra.mxu0 %v66
    %135 = vmatprep.subr.mxu0 0.0
    %136 = vmatpush1.msra.mxu0 0.0
    %137 = vmatprep.subr.mxu0 0.0
    %138 = vmatpush1.msra.mxu0 0.0
    %139 = vmatprep.subr.mxu0 0.0
    %140 = vmatpush1.msra.mxu0 0.0
    %141 = vmatprep.subr.mxu0 0.0
    %142 = vmatpush1.msra.mxu0 0.0
    %143 = vmatprep.subr.mxu0 0.0
    %144 = vmatpush1.msra.mxu0 0.0
    %145 = vmatprep.subr.mxu0 0.0
    %146 = vmatpush1.msra.mxu0 0.0
    %147 = vmatprep.subr.mxu0 0.0
    %148 = vmatpush1.msra.mxu0 0.0
    %149 = vmatprep.subr.mxu0 0.0
    %150 = vmatpush1.msra.mxu0 0.0
    %151 = vmatprep.subr.mxu0 0.0
    %152 = vmatpush1.msra.mxu0 0.0
    %153 = vmatprep.subr.mxu0 0.0
    %154 = vmatpush1.msra.mxu0 0.0
    %155 = vmatprep.subr.mxu0 0.0
    %156 = vmatpush1.msra.mxu0 0.0
    %157 = vmatprep.subr.mxu0 0.0
    %158 = vmatpush1.msra.mxu0 0.0
    %159 = vmatprep.subr.mxu0 0.0
    %160 = vmatpush1.msra.mxu0 0.0
    %161 = vmatprep.subr.mxu0 0.0
    %162 = vmatpush1.msra.mxu0 0.0
    %163 = vmatprep.subr.mxu0 0.0
    %164 = vmatpush1.msra.mxu0 0.0
    %165 = vmatprep.subr.mxu0 0.0
    %166 = vmatpush1.msra.mxu0 0.0
    %167 = vmatprep.subr.mxu0 0.0
    %168 = vmatpush1.msra.mxu0 0.0
    %169 = vmatprep.subr.mxu0 0.0
    %170 = vmatpush1.msra.mxu0 0.0
    %171 = vmatprep.subr.mxu0 0.0
    %172 = vmatpush1.msra.mxu0 0.0
    %173 = vmatprep.subr.mxu0 0.0
    %174 = vmatpush1.msra.mxu0 0.0
    %175 = vmatprep.subr.mxu0 0.0
    %176 = vmatpush1.msra.mxu0 0.0
    %177 = vmatprep.subr.mxu0 0.0
    %178 = vmatpush1.msra.mxu0 0.0
    %179 = vmatprep.subr.mxu0 0.0
    %180 = vmatpush1.msra.mxu0 0.0
    %181 = vmatprep.subr.mxu0 0.0
    %182 = vmatpush1.msra.mxu0 0.0
    %183 = vmatprep.subr.mxu0 0.0
    %184 = vmatpush1.msra.mxu0 0.0
    %185 = vmatprep.subr.mxu0 0.0
    %186 = vmatpush1.msra.mxu0 0.0
    %187 = vmatprep.subr.mxu0 0.0
    %188 = vmatpush1.msra.mxu0 0.0
    %189 = vmatprep.subr.mxu0 0.0
    %190 = vmatpush1.msra.mxu0 0.0
    %191 = vmatprep.mubr.f32.mxu0 0.0
    %192 = vmatmul.mubr.f32.gmra.mrb[0].mxu0 %v123
    %v193 = vpop.f32.mrb[0].mxu0
    %v194 = vadd.f32 %v73, %v193
    %v195 = vpop.f32.mrb[0].mxu0
    %v196 = vadd.f32 %v77, %v195
    %197 = vmatprep.mubr.f32.mxu0 0.0
    %198 = vmatmul.mubr.f32.gmra.mrb[0].mxu0 %v125
    %v199 = vpop.f32.mrb[0].mxu0
    %v200 = vadd.f32 %v73, %v199
    %v201 = vpop.f32.mrb[0].mxu0
    %v202 = vadd.f32 %v77, %v201
    %203 = vdwg.mxu0
    %v208 = vcombine.low %v194, %v196
    %v209 = vcombine.high %v194, %v196
    %v211 = vunpack.c.l.s4 1983009808
    %v212 = vunpack.c.0.s8 %v211
    %v213 = vlaneseq
    %v214 = vshrl.u32 %v213, 7
    %v215 = vsub.s32 %v212, %v214
    %v216 = vrot.slane %v208, %v215
    %v218 = vunpack.c.l.s4 1983009808
    %v219 = vunpack.c.0.s8 %v218
    %v220 = vlaneseq
    %v221 = vshrl.u32 %v220, 7
    %v222 = vsub.s32 %v219, %v221
    %v223 = vrot.slane %v209, %v222
    %v224 = vcombine.high %v216, %v216
    %v225 = vcombine.high %v223, %v223
    %v226 = vcombine.low %v200, %v202
    %v227 = vcombine.high %v200, %v202
    %v229 = vunpack.c.l.s4 1983009808
    %v230 = vunpack.c.0.s8 %v229
    %v231 = vlaneseq
    %v232 = vshrl.u32 %v231, 7
    %v233 = vsub.s32 %v230, %v232
    %v234 = vrot.slane %v226, %v233
    %v236 = vunpack.c.l.s4 1983009808
    %v237 = vunpack.c.0.s8 %v236
    %v238 = vlaneseq
    %v239 = vshrl.u32 %v238, 7
    %v240 = vsub.s32 %v237, %v239
    %v241 = vrot.slane %v227, %v240
    %v242 = vcombine.high %v234, %v234
    %v243 = vcombine.high %v241, %v241
    %v252 = vld [vmem:[%s4] sm:$0xff]
    %v253 = vld [vmem:[%s4 + $0x8] sm:$0xff]
    %v254 = vld [vmem:[%s4 + $0x10] sm:$0xff]
    %v255 = vld [vmem:[%s4 + $0x18] sm:$0xff]
    %v256 = vld [vmem:[%s4 + $0x20] sm:$0xff]
    %v257 = vld [vmem:[%s4 + $0x28] sm:$0xff]
    %v258 = vld [vmem:[%s4 + $0x30] sm:$0xff]
    %v259 = vld [vmem:[%s4 + $0x38] sm:$0xff]
    %v260 = vld [vmem:[%s5] sm:$0x3]
    %v261 = vlaneseq
    %v262 = vshrl.u32 %v261, 7
    %v263 = vsub.s32 0, %v262
    %v264 = vrot.slane %v260, %v263
    %v265 = vlaneseq
    %v266 = vshrl.u32 %v265, 7
    %v267 = vsub.s32 1, %v266
    %v268 = vrot.slane %v260, %v267
    %v269 = vsel %vm50, %v264, %v268
    %v270 = vcombine.low %v243, %v243
    %v272 = vunpack.c.l.s4 1983009808
    %v273 = vunpack.c.0.s8 %v272
    %v274 = vlaneseq
    %v275 = vshrl.u32 %v274, 7
    %v276 = vsub.s32 %v273, %v275
    %v277 = vrot.slane %v270, %v276
    %v278 = vcombine.high %v277, %v277
    %279 = vrot.lane.b32.xlu0 %v277, 32
    %v280 = vpop.permute.xlu0 %279
    %281 = vrot.lane.b32.xlu0 %v278, 32
    %v282 = vpop.permute.xlu0 %281
    %v283 = vsel %vm122, %v280, %v282
    %v285 = vsel %vm50, %v216, %v283
    %v287 = vsel %vm122, 0.0, 0
    %289 = vmatprep.subr.mxu0 %v253
    %290 = vmatpush1.msra.mxu0 %v252
    %291 = vmatprep.subr.mxu0 %v255
    %292 = vmatpush1.msra.mxu0 %v254
    %293 = vmatprep.subr.mxu0 %v257
    %294 = vmatpush1.msra.mxu0 %v256
    %295 = vmatprep.subr.mxu0 %v259
    %296 = vmatpush1.msra.mxu0 %v258
    %297 = vmatprep.subr.mxu0 0.0
    %298 = vmatpush1.msra.mxu0 0.0
    %299 = vmatprep.subr.mxu0 0.0
    %300 = vmatpush1.msra.mxu0 0.0
    %301 = vmatprep.subr.mxu0 0.0
    %302 = vmatpush1.msra.mxu0 0.0
    %303 = vmatprep.subr.mxu0 0.0
    %304 = vmatpush1.msra.mxu0 0.0
    %305 = vmatprep.subr.mxu0 0.0
    %306 = vmatpush1.msra.mxu0 0.0
    %307 = vmatprep.subr.mxu0 0.0
    %308 = vmatpush1.msra.mxu0 0.0
    %309 = vmatprep.subr.mxu0 0.0
    %310 = vmatpush1.msra.mxu0 0.0
    %311 = vmatprep.subr.mxu0 0.0
    %312 = vmatpush1.msra.mxu0 0.0
    %313 = vmatprep.subr.mxu0 0.0
    %314 = vmatpush1.msra.mxu0 0.0
    %315 = vmatprep.subr.mxu0 0.0
    %316 = vmatpush1.msra.mxu0 0.0
    %317 = vmatprep.subr.mxu0 0.0
    %318 = vmatpush1.msra.mxu0 0.0
    %319 = vmatprep.subr.mxu0 0.0
    %320 = vmatpush1.msra.mxu0 0.0
    %321 = vmatprep.subr.mxu0 0.0
    %322 = vmatpush1.msra.mxu0 0.0
    %323 = vmatprep.subr.mxu0 0.0
    %324 = vmatpush1.msra.mxu0 0.0
    %325 = vmatprep.subr.mxu0 0.0
    %326 = vmatpush1.msra.mxu0 0.0
    %327 = vmatprep.subr.mxu0 0.0
    %328 = vmatpush1.msra.mxu0 0.0
    %329 = vmatprep.subr.mxu0 0.0
    %330 = vmatpush1.msra.mxu0 0.0
    %331 = vmatprep.subr.mxu0 0.0
    %332 = vmatpush1.msra.mxu0 0.0
    %333 = vmatprep.subr.mxu0 0.0
    %334 = vmatpush1.msra.mxu0 0.0
    %335 = vmatprep.subr.mxu0 0.0
    %336 = vmatpush1.msra.mxu0 0.0
    %337 = vmatprep.subr.mxu0 0.0
    %338 = vmatpush1.msra.mxu0 0.0
    %339 = vmatprep.subr.mxu0 0.0
    %340 = vmatpush1.msra.mxu0 0.0
    %341 = vmatprep.subr.mxu0 0.0
    %342 = vmatpush1.msra.mxu0 0.0
    %343 = vmatprep.subr.mxu0 0.0
    %344 = vmatpush1.msra.mxu0 0.0
    %345 = vmatprep.subr.mxu0 0.0
    %346 = vmatpush1.msra.mxu0 0.0
    %347 = vmatprep.subr.mxu0 0.0
    %348 = vmatpush1.msra.mxu0 0.0
    %349 = vmatprep.subr.mxu0 0.0
    %350 = vmatpush1.msra.mxu0 0.0
    %351 = vmatprep.subr.mxu0 0.0
    %352 = vmatpush1.msra.mxu0 0.0
    %353 = vmatprep.mubr.f32.mxu0 0.0
    %354 = vmatmul.mubr.f32.gmra.mrb[0].mxu0 %v287
    %v355 = vpop.f32.mrb[0].mxu0
    %v356 = vadd.f32 0.0, %v355
    %v357 = vpop.f32.mrb[0].mxu0
    %v358 = vadd.f32 0.0, %v357
    %359 = vdwg.mxu0
    %362 = vrot.lane.b32.xlu0 %v356, 32
    %v363 = vpop.permute.xlu0 %362
    %364 = vrot.lane.b32.xlu0 %v358, 32
    %v365 = vpop.permute.xlu0 %364
    %v366 = vsel %vm122, %v363, %v365
    %v368 = vsel %vm50, %v356, %v366
    %v369 = vadd.f32 %v368, %v269
    %v370 = vadd.f32 %v285, %v369
    %v371 = vxor.u32 %v370, 2147483648
    %v372 = vmul.f32 %v371, 1.442695
    %v373 = vpow.pop %v372
    %v374 = vadd.f32 %v373, 1.0
    %v375 = vrcp.pop %v374
    %v376 = vmul.f32 1.0, %v375
    %378 = vrot.lane.b32.xlu0 %v369, 64
    %v379 = vpop.permute.xlu0 %378
    %v381 = vmul.f32 %v376, %v379
    %383 = vrot.lane.b32.xlu0 %v381, 64
    %v384 = vpop.permute.xlu0 %383
    %v386 = vadd.f32 %v285, %v384
    %v387 = vtanh.pop %v386
    %v388 = vsub.f32 1.0, %v376
    %390 = vrot.lane.b32.xlu0 %v387, 96
    %v391 = vpop.permute.xlu0 %390
    %v393 = vmul.f32 %v388, %v391
    %v394 = vmul.f32 %v376, 0.0
    %v395 = vadd.f32 %v393, %v394
    %v396 = vsel %vm50, 0, 7
    %vm397 = vcmp.gt.s32.totalorder %v51, %v396
    %v398 = vsel %vm397, 1, 0
    %399 = vset.pattern.permute.xlu0 0
    %400 = vperm.xlu0 %399, %v398
    %v401 = vpop.permute.xlu0 %400
    %vm402 = vcmp.eq.s32.totalorder %v401, 1
    %v403 = vsel %vm402, %v395, 0.0
    %v406 = vunpack.c.l.s4 1966171168
    %v407 = vunpack.c.0.s8 %v406
    %v408 = vlaneseq
    %v409 = vshrl.u32 %v408, 7
    %v410 = vsub.s32 %v407, %v409
    %v411 = vrot.slane %v403, %v410
    %v412 = vcombine.high %v411, %v411
    %v414 = vunpack.c.l.s4 1966171168
    %v415 = vunpack.c.0.s8 %v414
    %v416 = vlaneseq
    %v417 = vshrl.u32 %v416, 7
    %v418 = vsub.s32 %v415, %v417
    %v419 = vrot.slane %v411, %v418
    %v421 = vunpack.c.l.s4 1966171168
    %v422 = vunpack.c.0.s8 %v421
    %v423 = vlaneseq
    %v424 = vshrl.u32 %v423, 7
    %v425 = vsub.s32 %v422, %v424
    %v426 = vrot.slane %v412, %v425
    %v427 = vlaneseq
    %v428 = vshrl.u32 %v427, 7
    %v429 = vsub.s32 0, %v428
    %v430 = vrot.slane %v419, %v429
    %v431 = vlaneseq
    %v432 = vshrl.u32 %v431, 7
    %v433 = vsub.s32 0, %v432
    %v434 = vrot.slane %v426, %v433
    %435 = vrot.lane.b32.xlu0 %v430, 96
    %v436 = vpop.permute.xlu0 %435
    %437 = vrot.lane.b32.xlu0 %v434, 96
    %v438 = vpop.permute.xlu0 %437
    %vm441 = vcmask 253952
    %442 = vst.msk [vmem:[#allocation2] sm:$0x1] %vm441, %v436
    %443 = vst.msk [vmem:[#allocation2 + $0x8] sm:$0x1] %vm441, %v438
    %v444 = vcombine.high %v419, %v419
    %v445 = vcombine.high %v426, %v426
    %vm448 = vcmask 516352
    %449 = vst.msk [vmem:[#allocation2 + $0x7] sm:$0x1] %vm448, %v444
    %450 = vst.msk [vmem:[#allocation2 + $0xf] sm:$0x1] %vm448, %v445
    %v451 = vcombine.low %v241, %v241
    %v453 = vunpack.c.l.s4 1983009808
    %v454 = vunpack.c.0.s8 %v453
    %v455 = vlaneseq
    %v456 = vshrl.u32 %v455, 7
    %v457 = vsub.s32 %v454, %v456
    %v458 = vrot.slane %v451, %v457
    %v459 = vcombine.high %v458, %v458
    %460 = vrot.lane.b32.xlu0 %v458, 32
    %v461 = vpop.permute.xlu0 %460
    %462 = vrot.lane.b32.xlu0 %v459, 32
    %v463 = vpop.permute.xlu0 %462
    %v464 = vsel %vm122, %v461, %v463
    %v466 = vsel %vm50, %v224, %v464
    %467 = vrot.lane.b32.xlu0 %v403, 96
    %v468 = vpop.permute.xlu0 %467
    %v469 = vsel %vm122, %v468, 0
    %471 = vmatprep.subr.mxu0 %v253
    %472 = vmatpush1.msra.mxu0 %v252
    %473 = vmatprep.subr.mxu0 %v255
    %474 = vmatpush1.msra.mxu0 %v254
    %475 = vmatprep.subr.mxu0 %v257
    %476 = vmatpush1.msra.mxu0 %v256
    %477 = vmatprep.subr.mxu0 %v259
    %478 = vmatpush1.msra.mxu0 %v258
    %479 = vmatprep.subr.mxu0 0.0
    %480 = vmatpush1.msra.mxu0 0.0
    %481 = vmatprep.subr.mxu0 0.0
    %482 = vmatpush1.msra.mxu0 0.0
    %483 = vmatprep.subr.mxu0 0.0
    %484 = vmatpush1.msra.mxu0 0.0
    %485 = vmatprep.subr.mxu0 0.0
    %486 = vmatpush1.msra.mxu0 0.0
    %487 = vmatprep.subr.mxu0 0.0
    %488 = vmatpush1.msra.mxu0 0.0
    %489 = vmatprep.subr.mxu0 0.0
    %490 = vmatpush1.msra.mxu0 0.0
    %491 = vmatprep.subr.mxu0 0.0
    %492 = vmatpush1.msra.mxu0 0.0
    %493 = vmatprep.subr.mxu0 0.0
    %494 = vmatpush1.msra.mxu0 0.0
    %495 = vmatprep.subr.mxu0 0.0
    %496 = vmatpush1.msra.mxu0 0.0
    %497 = vmatprep.subr.mxu0 0.0
    %498 = vmatpush1.msra.mxu0 0.0
    %499 = vmatprep.subr.mxu0 0.0
    %500 = vmatpush1.msra.mxu0 0.0
    %501 = vmatprep.subr.mxu0 0.0
    %502 = vmatpush1.msra.mxu0 0.0
    %503 = vmatprep.subr.mxu0 0.0
    %504 = vmatpush1.msra.mxu0 0.0
    %505 = vmatprep.subr.mxu0 0.0
    %506 = vmatpush1.msra.mxu0 0.0
    %507 = vmatprep.subr.mxu0 0.0
    %508 = vmatpush1.msra.mxu0 0.0
    %509 = vmatprep.subr.mxu0 0.0
    %510 = vmatpush1.msra.mxu0 0.0
    %511 = vmatprep.subr.mxu0 0.0
    %512 = vmatpush1.msra.mxu0 0.0
    %513 = vmatprep.subr.mxu0 0.0
    %514 = vmatpush1.msra.mxu0 0.0
    %515 = vmatprep.subr.mxu0 0.0
    %516 = vmatpush1.msra.mxu0 0.0
    %517 = vmatprep.subr.mxu0 0.0
    %518 = vmatpush1.msra.mxu0 0.0
    %519 = vmatprep.subr.mxu0 0.0
    %520 = vmatpush1.msra.mxu0 0.0
    %521 = vmatprep.subr.mxu0 0.0
    %522 = vmatpush1.msra.mxu0 0.0
    %523 = vmatprep.subr.mxu0 0.0
    %524 = vmatpush1.msra.mxu0 0.0
    %525 = vmatprep.subr.mxu0 0.0
    %526 = vmatpush1.msra.mxu0 0.0
    %527 = vmatprep.subr.mxu0 0.0
    %528 = vmatpush1.msra.mxu0 0.0
    %529 = vmatprep.subr.mxu0 0.0
    %530 = vmatpush1.msra.mxu0 0.0
    %531 = vmatprep.subr.mxu0 0.0
    %532 = vmatpush1.msra.mxu0 0.0
    %533 = vmatprep.subr.mxu0 0.0
    %534 = vmatpush1.msra.mxu0 0.0
    %535 = vmatprep.mubr.f32.mxu0 0.0
    %536 = vmatmul.mubr.f32.gmra.mrb[0].mxu0 %v469
    %v537 = vpop.f32.mrb[0].mxu0
    %v538 = vadd.f32 0.0, %v537
    %v539 = vpop.f32.mrb[0].mxu0
    %v540 = vadd.f32 0.0, %v539
    %541 = vdwg.mxu0
    %544 = vrot.lane.b32.xlu0 %v538, 32
    %v545 = vpop.permute.xlu0 %544
    %546 = vrot.lane.b32.xlu0 %v540, 32
    %v547 = vpop.permute.xlu0 %546
    %v548 = vsel %vm122, %v545, %v547
    %v550 = vsel %vm50, %v538, %v548
    %v551 = vadd.f32 %v550, %v269
    %v552 = vadd.f32 %v466, %v551
    %v553 = vxor.u32 %v552, 2147483648
    %v554 = vmul.f32 %v553, 1.442695
    %v555 = vpow.pop %v554
    %v556 = vadd.f32 %v555, 1.0
    %v557 = vrcp.pop %v556
    %v558 = vmul.f32 1.0, %v557
    %560 = vrot.lane.b32.xlu0 %v551, 64
    %v561 = vpop.permute.xlu0 %560
    %v563 = vmul.f32 %v558, %v561
    %565 = vrot.lane.b32.xlu0 %v563, 64
    %v566 = vpop.permute.xlu0 %565
    %v568 = vadd.f32 %v466, %v566
    %v569 = vtanh.pop %v568
    %v570 = vsub.f32 1.0, %v558
    %572 = vrot.lane.b32.xlu0 %v569, 96
    %v573 = vpop.permute.xlu0 %572
    %v575 = vmul.f32 %v570, %v573
    %v576 = vmul.f32 %v558, %v403
    %v577 = vadd.f32 %v575, %v576
    %v578 = vsel %vm50, 1, 6
    %vm579 = vcmp.gt.s32.totalorder %v51, %v578
    %v580 = vsel %vm579, 1, 0
    %581 = vset.pattern.permute.xlu0 0
    %582 = vperm.xlu0 %581, %v580
    %v583 = vpop.permute.xlu0 %582
    %vm584 = vcmp.eq.s32.totalorder %v583, 1
    %v585 = vsel %vm584, %v577, %v403
    %v586 = vsel %vm584, %v577, 0.0
    %v589 = vunpack.c.l.s4 1966171168
    %v590 = vunpack.c.0.s8 %v589
    %v591 = vlaneseq
    %v592 = vshrl.u32 %v591, 7
    %v593 = vsub.s32 %v590, %v592
    %v594 = vrot.slane %v586, %v593
    %v595 = vcombine.high %v594, %v594
    %v597 = vunpack.c.l.s4 1966171168
    %v598 = vunpack.c.0.s8 %v597
    %v599 = vlaneseq
    %v600 = vshrl.u32 %v599, 7
    %v601 = vsub.s32 %v598, %v600
    %v602 = vrot.slane %v594, %v601
    %v604 = vunpack.c.l.s4 1966171168
    %v605 = vunpack.c.0.s8 %v604
    %v606 = vlaneseq
    %v607 = vshrl.u32 %v606, 7
    %v608 = vsub.s32 %v605, %v607
    %v609 = vrot.slane %v595, %v608
    %v610 = vlaneseq
    %v611 = vshrl.u32 %v610, 7
    %v612 = vsub.s32 0, %v611
    %v613 = vrot.slane %v602, %v612
    %v614 = vlaneseq
    %v615 = vshrl.u32 %v614, 7
    %v616 = vsub.s32 0, %v615
    %v617 = vrot.slane %v609, %v616
    %618 = vrot.lane.b32.xlu0 %v613, 96
    %v619 = vpop.permute.xlu0 %618
    %620 = vrot.lane.b32.xlu0 %v617, 96
    %v621 = vpop.permute.xlu0 %620
    %624 = vst.msk [vmem:[#allocation2 + $0x1] sm:$0x1] %vm441, %v619
    %625 = vst.msk [vmem:[#allocation2 + $0x9] sm:$0x1] %vm441, %v621
    %v626 = vcombine.high %v602, %v602
    %v627 = vcombine.high %v609, %v609
    %630 = vst.msk [vmem:[#allocation2 + $0x6] sm:$0x1] %vm448, %v626
    %631 = vst.msk [vmem:[#allocation2 + $0xe] sm:$0x1] %vm448, %v627
    %v632 = vcombine.low %v242, %v242
    %v634 = vunpack.c.l.s4 1983009808
    %v635 = vunpack.c.0.s8 %v634
    %v636 = vlaneseq
    %v637 = vshrl.u32 %v636, 7
    %v638 = vsub.s32 %v635, %v637
    %v639 = vrot.slane %v632, %v638
    %v640 = vcombine.high %v639, %v639
    %641 = vrot.lane.b32.xlu0 %v639, 32
    %v642 = vpop.permute.xlu0 %641
    %643 = vrot.lane.b32.xlu0 %v640, 32
    %v644 = vpop.permute.xlu0 %643
    %v645 = vsel %vm122, %v642, %v644
    %v647 = vsel %vm50, %v223, %v645
    %649 = vrot.lane.b32.xlu0 %v585, 96
    %v650 = vpop.permute.xlu0 %649
    %v651 = vsel %vm122, %v650, 0
    %653 = vmatprep.subr.mxu0 %v253
    %654 = vmatpush1.msra.mxu0 %v252
    %655 = vmatprep.subr.mxu0 %v255
    %656 = vmatpush1.msra.mxu0 %v254
    %657 = vmatprep.subr.mxu0 %v257
    %658 = vmatpush1.msra.mxu0 %v256
    %659 = vmatprep.subr.mxu0 %v259
    %660 = vmatpush1.msra.mxu0 %v258
    %661 = vmatprep.subr.mxu0 0.0
    %662 = vmatpush1.msra.mxu0 0.0
    %663 = vmatprep.subr.mxu0 0.0
    %664 = vmatpush1.msra.mxu0 0.0
    %665 = vmatprep.subr.mxu0 0.0
    %666 = vmatpush1.msra.mxu0 0.0
    %667 = vmatprep.subr.mxu0 0.0
    %668 = vmatpush1.msra.mxu0 0.0
    %669 = vmatprep.subr.mxu0 0.0
    %670 = vmatpush1.msra.mxu0 0.0
    %671 = vmatprep.subr.mxu0 0.0
    %672 = vmatpush1.msra.mxu0 0.0
    %673 = vmatprep.subr.mxu0 0.0
    %674 = vmatpush1.msra.mxu0 0.0
    %675 = vmatprep.subr.mxu0 0.0
    %676 = vmatpush1.msra.mxu0 0.0
    %677 = vmatprep.subr.mxu0 0.0
    %678 = vmatpush1.msra.mxu0 0.0
    %679 = vmatprep.subr.mxu0 0.0
    %680 = vmatpush1.msra.mxu0 0.0
    %681 = vmatprep.subr.mxu0 0.0
    %682 = vmatpush1.msra.mxu0 0.0
    %683 = vmatprep.subr.mxu0 0.0
    %684 = vmatpush1.msra.mxu0 0.0
    %685 = vmatprep.subr.mxu0 0.0
    %686 = vmatpush1.msra.mxu0 0.0
    %687 = vmatprep.subr.mxu0 0.0
    %688 = vmatpush1.msra.mxu0 0.0
    %689 = vmatprep.subr.mxu0 0.0
    %690 = vmatpush1.msra.mxu0 0.0
    %691 = vmatprep.subr.mxu0 0.0
    %692 = vmatpush1.msra.mxu0 0.0
    %693 = vmatprep.subr.mxu0 0.0
    %694 = vmatpush1.msra.mxu0 0.0
    %695 = vmatprep.subr.mxu0 0.0
    %696 = vmatpush1.msra.mxu0 0.0
    %697 = vmatprep.subr.mxu0 0.0
    %698 = vmatpush1.msra.mxu0 0.0
    %699 = vmatprep.subr.mxu0 0.0
    %700 = vmatpush1.msra.mxu0 0.0
    %701 = vmatprep.subr.mxu0 0.0
    %702 = vmatpush1.msra.mxu0 0.0
    %703 = vmatprep.subr.mxu0 0.0
    %704 = vmatpush1.msra.mxu0 0.0
    %705 = vmatprep.subr.mxu0 0.0
    %706 = vmatpush1.msra.mxu0 0.0
    %707 = vmatprep.subr.mxu0 0.0
    %708 = vmatpush1.msra.mxu0 0.0
    %709 = vmatprep.subr.mxu0 0.0
    %710 = vmatpush1.msra.mxu0 0.0
    %711 = vmatprep.subr.mxu0 0.0
    %712 = vmatpush1.msra.mxu0 0.0
    %713 = vmatprep.subr.mxu0 0.0
    %714 = vmatpush1.msra.mxu0 0.0
    %715 = vmatprep.subr.mxu0 0.0
    %716 = vmatpush1.msra.mxu0 0.0
    %717 = vmatprep.mubr.f32.mxu0 0.0
    %718 = vmatmul.mubr.f32.gmra.mrb[0].mxu0 %v651
    %v719 = vpop.f32.mrb[0].mxu0
    %v720 = vadd.f32 0.0, %v719
    %v721 = vpop.f32.mrb[0].mxu0
    %v722 = vadd.f32 0.0, %v721
    %723 = vdwg.mxu0
    %726 = vrot.lane.b32.xlu0 %v720, 32
    %v727 = vpop.permute.xlu0 %726
    %728 = vrot.lane.b32.xlu0 %v722, 32
    %v729 = vpop.permute.xlu0 %728
    %v730 = vsel %vm122, %v727, %v729
    %v732 = vsel %vm50, %v720, %v730
    %v733 = vadd.f32 %v732, %v269
    %v734 = vadd.f32 %v647, %v733
    %v735 = vxor.u32 %v734, 2147483648
    %v736 = vmul.f32 %v735, 1.442695
    %v737 = vpow.pop %v736
    %v738 = vadd.f32 %v737, 1.0
    %v739 = vrcp.pop %v738
    %v740 = vmul.f32 1.0, %v739
    %742 = vrot.lane.b32.xlu0 %v733, 64
    %v743 = vpop.permute.xlu0 %742
    %v745 = vmul.f32 %v740, %v743
    %747 = vrot.lane.b32.xlu0 %v745, 64
    %v748 = vpop.permute.xlu0 %747
    %v750 = vadd.f32 %v647, %v748
    %v751 = vtanh.pop %v750
    %v752 = vsub.f32 1.0, %v740
    %754 = vrot.lane.b32.xlu0 %v751, 96
    %v755 = vpop.permute.xlu0 %754
    %v757 = vmul.f32 %v752, %v755
    %v758 = vmul.f32 %v740, %v585
    %v759 = vadd.f32 %v757, %v758
    %v760 = vsel %vm50, 2, 5
    %vm761 = vcmp.gt.s32.totalorder %v51, %v760
    %v762 = vsel %vm761, 1, 0
    %763 = vset.pattern.permute.xlu0 0
    %764 = vperm.xlu0 %763, %v762
    %v765 = vpop.permute.xlu0 %764
    %vm766 = vcmp.eq.s32.totalorder %v765, 1
    %v767 = vsel %vm766, %v759, %v585
    %v768 = vsel %vm766, %v759, 0.0
    %v771 = vunpack.c.l.s4 1966171168
    %v772 = vunpack.c.0.s8 %v771
    %v773 = vlaneseq
    %v774 = vshrl.u32 %v773, 7
    %v775 = vsub.s32 %v772, %v774
    %v776 = vrot.slane %v768, %v775
    %v777 = vcombine.high %v776, %v776
    %v779 = vunpack.c.l.s4 1966171168
    %v780 = vunpack.c.0.s8 %v779
    %v781 = vlaneseq
    %v782 = vshrl.u32 %v781, 7
    %v783 = vsub.s32 %v780, %v782
    %v784 = vrot.slane %v776, %v783
    %v786 = vunpack.c.l.s4 1966171168
    %v787 = vunpack.c.0.s8 %v786
    %v788 = vlaneseq
    %v789 = vshrl.u32 %v788, 7
    %v790 = vsub.s32 %v787, %v789
    %v791 = vrot.slane %v777, %v790
    %v792 = vlaneseq
    %v793 = vshrl.u32 %v792, 7
    %v794 = vsub.s32 0, %v793
    %v795 = vrot.slane %v784, %v794
    %v796 = vlaneseq
    %v797 = vshrl.u32 %v796, 7
    %v798 = vsub.s32 0, %v797
    %v799 = vrot.slane %v791, %v798
    %800 = vrot.lane.b32.xlu0 %v795, 96
    %v801 = vpop.permute.xlu0 %800
    %802 = vrot.lane.b32.xlu0 %v799, 96
    %v803 = vpop.permute.xlu0 %802
    %806 = vst.msk [vmem:[#allocation2 + $0x2] sm:$0x1] %vm441, %v801
    %807 = vst.msk [vmem:[#allocation2 + $0xa] sm:$0x1] %vm441, %v803
    %v808 = vcombine.high %v784, %v784
    %v809 = vcombine.high %v791, %v791
    %812 = vst.msk [vmem:[#allocation2 + $0x5] sm:$0x1] %vm448, %v808
    %813 = vst.msk [vmem:[#allocation2 + $0xd] sm:$0x1] %vm448, %v809
    %v814 = vcombine.low %v234, %v234
    %v816 = vunpack.c.l.s4 1983009808
    %v817 = vunpack.c.0.s8 %v816
    %v818 = vlaneseq
    %v819 = vshrl.u32 %v818, 7
    %v820 = vsub.s32 %v817, %v819
    %v821 = vrot.slane %v814, %v820
    %v822 = vcombine.high %v821, %v821
    %823 = vrot.lane.b32.xlu0 %v821, 32
    %v824 = vpop.permute.xlu0 %823
    %825 = vrot.lane.b32.xlu0 %v822, 32
    %v826 = vpop.permute.xlu0 %825
    %v827 = vsel %vm122, %v824, %v826
    %v829 = vsel %vm50, %v225, %v827
    %831 = vrot.lane.b32.xlu0 %v767, 96
    %v832 = vpop.permute.xlu0 %831
    %v833 = vsel %vm122, %v832, 0
    %835 = vmatprep.subr.mxu0 %v253
    %836 = vmatpush1.msra.mxu0 %v252
    %837 = vmatprep.subr.mxu0 %v255
    %838 = vmatpush1.msra.mxu0 %v254
    %839 = vmatprep.subr.mxu0 %v257
    %840 = vmatpush1.msra.mxu0 %v256
    %841 = vmatprep.subr.mxu0 %v259
    %842 = vmatpush1.msra.mxu0 %v258
    %843 = vmatprep.subr.mxu0 0.0
    %844 = vmatpush1.msra.mxu0 0.0
    %845 = vmatprep.subr.mxu0 0.0
    %846 = vmatpush1.msra.mxu0 0.0
    %847 = vmatprep.subr.mxu0 0.0
    %848 = vmatpush1.msra.mxu0 0.0
    %849 = vmatprep.subr.mxu0 0.0
    %850 = vmatpush1.msra.mxu0 0.0
    %851 = vmatprep.subr.mxu0 0.0
    %852 = vmatpush1.msra.mxu0 0.0
    %853 = vmatprep.subr.mxu0 0.0
    %854 = vmatpush1.msra.mxu0 0.0
    %855 = vmatprep.subr.mxu0 0.0
    %856 = vmatpush1.msra.mxu0 0.0
    %857 = vmatprep.subr.mxu0 0.0
    %858 = vmatpush1.msra.mxu0 0.0
    %859 = vmatprep.subr.mxu0 0.0
    %860 = vmatpush1.msra.mxu0 0.0
    %861 = vmatprep.subr.mxu0 0.0
    %862 = vmatpush1.msra.mxu0 0.0
    %863 = vmatprep.subr.mxu0 0.0
    %864 = vmatpush1.msra.mxu0 0.0
    %865 = vmatprep.subr.mxu0 0.0
    %866 = vmatpush1.msra.mxu0 0.0
    %867 = vmatprep.subr.mxu0 0.0
    %868 = vmatpush1.msra.mxu0 0.0
    %869 = vmatprep.subr.mxu0 0.0
    %870 = vmatpush1.msra.mxu0 0.0
    %871 = vmatprep.subr.mxu0 0.0
    %872 = vmatpush1.msra.mxu0 0.0
    %873 = vmatprep.subr.mxu0 0.0
    %874 = vmatpush1.msra.mxu0 0.0
    %875 = vmatprep.subr.mxu0 0.0
    %876 = vmatpush1.msra.mxu0 0.0
    %877 = vmatprep.subr.mxu0 0.0
    %878 = vmatpush1.msra.mxu0 0.0
    %879 = vmatprep.subr.mxu0 0.0
    %880 = vmatpush1.msra.mxu0 0.0
    %881 = vmatprep.subr.mxu0 0.0
    %882 = vmatpush1.msra.mxu0 0.0
    %883 = vmatprep.subr.mxu0 0.0
    %884 = vmatpush1.msra.mxu0 0.0
    %885 = vmatprep.subr.mxu0 0.0
    %886 = vmatpush1.msra.mxu0 0.0
    %887 = vmatprep.subr.mxu0 0.0
    %888 = vmatpush1.msra.mxu0 0.0
    %889 = vmatprep.subr.mxu0 0.0
    %890 = vmatpush1.msra.mxu0 0.0
    %891 = vmatprep.subr.mxu0 0.0
    %892 = vmatpush1.msra.mxu0 0.0
    %893 = vmatprep.subr.mxu0 0.0
    %894 = vmatpush1.msra.mxu0 0.0
    %895 = vmatprep.subr.mxu0 0.0
    %896 = vmatpush1.msra.mxu0 0.0
    %897 = vmatprep.subr.mxu0 0.0
    %898 = vmatpush1.msra.mxu0 0.0
    %899 = vmatprep.mubr.f32.mxu0 0.0
    %900 = vmatmul.mubr.f32.gmra.mrb[0].mxu0 %v833
    %v901 = vpop.f32.mrb[0].mxu0
    %v902 = vadd.f32 0.0, %v901
    %v903 = vpop.f32.mrb[0].mxu0
    %v904 = vadd.f32 0.0, %v903
    %905 = vdwg.mxu0
    %908 = vrot.lane.b32.xlu0 %v902, 32
    %v909 = vpop.permute.xlu0 %908
    %910 = vrot.lane.b32.xlu0 %v904, 32
    %v911 = vpop.permute.xlu0 %910
    %v912 = vsel %vm122, %v909, %v911
    %v914 = vsel %vm50, %v902, %v912
    %v915 = vadd.f32 %v914, %v269
    %v916 = vadd.f32 %v829, %v915
    %v917 = vxor.u32 %v916, 2147483648
    %v918 = vmul.f32 %v917, 1.442695
    %v919 = vpow.pop %v918
    %v920 = vadd.f32 %v919, 1.0
    %v921 = vrcp.pop %v920
    %v922 = vmul.f32 1.0, %v921
    %924 = vrot.lane.b32.xlu0 %v915, 64
    %v925 = vpop.permute.xlu0 %924
    %v927 = vmul.f32 %v922, %v925
    %929 = vrot.lane.b32.xlu0 %v927, 64
    %v930 = vpop.permute.xlu0 %929
    %v932 = vadd.f32 %v829, %v930
    %v933 = vtanh.pop %v932
    %v934 = vsub.f32 1.0, %v922
    %936 = vrot.lane.b32.xlu0 %v933, 96
    %v937 = vpop.permute.xlu0 %936
    %v939 = vmul.f32 %v934, %v937
    %v940 = vmul.f32 %v922, %v767
    %v941 = vadd.f32 %v939, %v940
    %v942 = vsel %vm50, 3, 4
    %vm943 = vcmp.gt.s32.totalorder %v51, %v942
    %v944 = vsel %vm943, 1, 0
    %945 = vset.pattern.permute.xlu0 0
    %946 = vperm.xlu0 %945, %v944
    %v947 = vpop.permute.xlu0 %946
    %vm948 = vcmp.eq.s32.totalorder %v947, 1
    %v949 = vsel %vm948, %v941, %v767
    %v950 = vsel %vm948, %v941, 0.0
    %v953 = vunpack.c.l.s4 1966171168
    %v954 = vunpack.c.0.s8 %v953
    %v955 = vlaneseq
    %v956 = vshrl.u32 %v955, 7
    %v957 = vsub.s32 %v954, %v956
    %v958 = vrot.slane %v950, %v957
    %v959 = vcombine.high %v958, %v958
    %v961 = vunpack.c.l.s4 1966171168
    %v962 = vunpack.c.0.s8 %v961
    %v963 = vlaneseq
    %v964 = vshrl.u32 %v963, 7
    %v965 = vsub.s32 %v962, %v964
    %v966 = vrot.slane %v958, %v965
    %v968 = vunpack.c.l.s4 1966171168
    %v969 = vunpack.c.0.s8 %v968
    %v970 = vlaneseq
    %v971 = vshrl.u32 %v970, 7
    %v972 = vsub.s32 %v969, %v971
    %v973 = vrot.slane %v959, %v972
    %v974 = vlaneseq
    %v975 = vshrl.u32 %v974, 7
    %v976 = vsub.s32 0, %v975
    %v977 = vrot.slane %v966, %v976
    %v978 = vlaneseq
    %v979 = vshrl.u32 %v978, 7
    %v980 = vsub.s32 0, %v979
    %v981 = vrot.slane %v973, %v980
    %982 = vrot.lane.b32.xlu0 %v977, 96
    %v983 = vpop.permute.xlu0 %982
    %984 = vrot.lane.b32.xlu0 %v981, 96
    %v985 = vpop.permute.xlu0 %984
    %988 = vst.msk [vmem:[#allocation2 + $0x3] sm:$0x1] %vm441, %v983
    %989 = vst.msk [vmem:[#allocation2 + $0xb] sm:$0x1] %vm441, %v985
    %v990 = vcombine.high %v966, %v966
    %v991 = vcombine.high %v973, %v973
    %994 = vst.msk [vmem:[#allocation2 + $0x4] sm:$0x1] %vm448, %v990
    %995 = vst.msk [vmem:[#allocation2 + $0xc] sm:$0x1] %vm448, %v991
    %v996 = vcombine.low %v225, %v225
    %v998 = vunpack.c.l.s4 1983009808
    %v999 = vunpack.c.0.s8 %v998
    %v1000 = vlaneseq
    %v1001 = vshrl.u32 %v1000, 7
    %v1002 = vsub.s32 %v999, %v1001
    %v1003 = vrot.slane %v996, %v1002
    %v1004 = vcombine.high %v1003, %v1003
    %1005 = vrot.lane.b32.xlu0 %v1003, 32
    %v1006 = vpop.permute.xlu0 %1005
    %1007 = vrot.lane.b32.xlu0 %v1004, 32
    %v1008 = vpop.permute.xlu0 %1007
    %v1009 = vsel %vm122, %v1006, %v1008
    %v1011 = vsel %vm50, %v234, %v1009
    %1013 = vrot.lane.b32.xlu0 %v949, 96
    %v1014 = vpop.permute.xlu0 %1013
    %v1015 = vsel %vm122, %v1014, 0
    %1017 = vmatprep.subr.mxu0 %v253
    %1018 = vmatpush1.msra.mxu0 %v252
    %1019 = vmatprep.subr.mxu0 %v255
    %1020 = vmatpush1.msra.mxu0 %v254
    %1021 = vmatprep.subr.mxu0 %v257
    %1022 = vmatpush1.msra.mxu0 %v256
    %1023 = vmatprep.subr.mxu0 %v259
    %1024 = vmatpush1.msra.mxu0 %v258
    %1025 = vmatprep.subr.mxu0 0.0
    %1026 = vmatpush1.msra.mxu0 0.0
    %1027 = vmatprep.subr.mxu0 0.0
    %1028 = vmatpush1.msra.mxu0 0.0
    %1029 = vmatprep.subr.mxu0 0.0
    %1030 = vmatpush1.msra.mxu0 0.0
    %1031 = vmatprep.subr.mxu0 0.0
    %1032 = vmatpush1.msra.mxu0 0.0
    %1033 = vmatprep.subr.mxu0 0.0
    %1034 = vmatpush1.msra.mxu0 0.0
    %1035 = vmatprep.subr.mxu0 0.0
    %1036 = vmatpush1.msra.mxu0 0.0
    %1037 = vmatprep.subr.mxu0 0.0
    %1038 = vmatpush1.msra.mxu0 0.0
    %1039 = vmatprep.subr.mxu0 0.0
    %1040 = vmatpush1.msra.mxu0 0.0
    %1041 = vmatprep.subr.mxu0 0.0
    %1042 = vmatpush1.msra.mxu0 0.0
    %1043 = vmatprep.subr.mxu0 0.0
    %1044 = vmatpush1.msra.mxu0 0.0
    %1045 = vmatprep.subr.mxu0 0.0
    %1046 = vmatpush1.msra.mxu0 0.0
    %1047 = vmatprep.subr.mxu0 0.0
    %1048 = vmatpush1.msra.mxu0 0.0
    %1049 = vmatprep.subr.mxu0 0.0
    %1050 = vmatpush1.msra.mxu0 0.0
    %1051 = vmatprep.subr.mxu0 0.0
    %1052 = vmatpush1.msra.mxu0 0.0
    %1053 = vmatprep.subr.mxu0 0.0
    %1054 = vmatpush1.msra.mxu0 0.0
    %1055 = vmatprep.subr.mxu0 0.0
    %1056 = vmatpush1.msra.mxu0 0.0
    %1057 = vmatprep.subr.mxu0 0.0
    %1058 = vmatpush1.msra.mxu0 0.0
    %1059 = vmatprep.subr.mxu0 0.0
    %1060 = vmatpush1.msra.mxu0 0.0
    %1061 = vmatprep.subr.mxu0 0.0
    %1062 = vmatpush1.msra.mxu0 0.0
    %1063 = vmatprep.subr.mxu0 0.0
    %1064 = vmatpush1.msra.mxu0 0.0
    %1065 = vmatprep.subr.mxu0 0.0
    %1066 = vmatpush1.msra.mxu0 0.0
    %1067 = vmatprep.subr.mxu0 0.0
    %1068 = vmatpush1.msra.mxu0 0.0
    %1069 = vmatprep.subr.mxu0 0.0
    %1070 = vmatpush1.msra.mxu0 0.0
    %1071 = vmatprep.subr.mxu0 0.0
    %1072 = vmatpush1.msra.mxu0 0.0
    %1073 = vmatprep.subr.mxu0 0.0
    %1074 = vmatpush1.msra.mxu0 0.0
    %1075 = vmatprep.subr.mxu0 0.0
    %1076 = vmatpush1.msra.mxu0 0.0
    %1077 = vmatprep.subr.mxu0 0.0
    %1078 = vmatpush1.msra.mxu0 0.0
    %1079 = vmatprep.subr.mxu0 0.0
    %1080 = vmatpush1.msra.mxu0 0.0
    %1081 = vmatprep.mubr.f32.mxu0 0.0
    %1082 = vmatmul.mubr.f32.gmra.mrb[0].mxu0 %v1015
    %v1083 = vpop.f32.mrb[0].mxu0
    %v1084 = vadd.f32 0.0, %v1083
    %v1085 = vpop.f32.mrb[0].mxu0
    %v1086 = vadd.f32 0.0, %v1085
    %1087 = vdwg.mxu0
    %1090 = vrot.lane.b32.xlu0 %v1084, 32
    %v1091 = vpop.permute.xlu0 %1090
    %1092 = vrot.lane.b32.xlu0 %v1086, 32
    %v1093 = vpop.permute.xlu0 %1092
    %v1094 = vsel %vm122, %v1091, %v1093
    %v1096 = vsel %vm50, %v1084, %v1094
    %v1097 = vadd.f32 %v1096, %v269
    %v1098 = vadd.f32 %v1011, %v1097
    %v1099 = vxor.u32 %v1098, 2147483648
    %v1100 = vmul.f32 %v1099, 1.442695
    %v1101 = vpow.pop %v1100
    %v1102 = vadd.f32 %v1101, 1.0
    %v1103 = vrcp.pop %v1102
    %v1104 = vmul.f32 1.0, %v1103
    %1106 = vrot.lane.b32.xlu0 %v1097, 64
    %v1107 = vpop.permute.xlu0 %1106
    %v1109 = vmul.f32 %v1104, %v1107
    %1111 = vrot.lane.b32.xlu0 %v1109, 64
    %v1112 = vpop.permute.xlu0 %1111
    %v1114 = vadd.f32 %v1011, %v1112
    %v1115 = vtanh.pop %v1114
    %v1116 = vsub.f32 1.0, %v1104
    %1118 = vrot.lane.b32.xlu0 %v1115, 96
    %v1119 = vpop.permute.xlu0 %1118
    %v1121 = vmul.f32 %v1116, %v1119
    %v1122 = vmul.f32 %v1104, %v949
    %v1123 = vadd.f32 %v1121, %v1122
    %v1124 = vsel %vm50, 4, 3
    %vm1125 = vcmp.gt.s32.totalorder %v51, %v1124
    %v1126 = vsel %vm1125, 1, 0
    %1127 = vset.pattern.permute.xlu0 0
    %1128 = vperm.xlu0 %1127, %v1126
    %v1129 = vpop.permute.xlu0 %1128
    %vm1130 = vcmp.eq.s32.totalorder %v1129, 1
    %v1131 = vsel %vm1130, %v1123, %v949
    %v1132 = vsel %vm1130, %v1123, 0.0
    %v1135 = vunpack.c.l.s4 1966171168
    %v1136 = vunpack.c.0.s8 %v1135
    %v1137 = vlaneseq
    %v1138 = vshrl.u32 %v1137, 7
    %v1139 = vsub.s32 %v1136, %v1138
    %v1140 = vrot.slane %v1132, %v1139
    %v1141 = vcombine.high %v1140, %v1140
    %v1143 = vunpack.c.l.s4 1966171168
    %v1144 = vunpack.c.0.s8 %v1143
    %v1145 = vlaneseq
    %v1146 = vshrl.u32 %v1145, 7
    %v1147 = vsub.s32 %v1144, %v1146
    %v1148 = vrot.slane %v1140, %v1147
    %v1150 = vunpack.c.l.s4 1966171168
    %v1151 = vunpack.c.0.s8 %v1150
    %v1152 = vlaneseq
    %v1153 = vshrl.u32 %v1152, 7
    %v1154 = vsub.s32 %v1151, %v1153
    %v1155 = vrot.slane %v1141, %v1154
    %v1156 = vlaneseq
    %v1157 = vshrl.u32 %v1156, 7
    %v1158 = vsub.s32 0, %v1157
    %v1159 = vrot.slane %v1148, %v1158
    %v1160 = vlaneseq
    %v1161 = vshrl.u32 %v1160, 7
    %v1162 = vsub.s32 0, %v1161
    %v1163 = vrot.slane %v1155, %v1162
    %1164 = vrot.lane.b32.xlu0 %v1159, 96
    %v1165 = vpop.permute.xlu0 %1164
    %1166 = vrot.lane.b32.xlu0 %v1163, 96
    %v1167 = vpop.permute.xlu0 %1166
    %1170 = vst.msk [vmem:[#allocation2 + $0x4] sm:$0x1] %vm441, %v1165
    %1171 = vst.msk [vmem:[#allocation2 + $0xc] sm:$0x1] %vm441, %v1167
    %v1172 = vcombine.high %v1148, %v1148
    %v1173 = vcombine.high %v1155, %v1155
    %1176 = vst.msk [vmem:[#allocation2 + $0x3] sm:$0x1] %vm448, %v1172
    %1177 = vst.msk [vmem:[#allocation2 + $0xb] sm:$0x1] %vm448, %v1173
    %v1178 = vcombine.low %v223, %v223
    %v1180 = vunpack.c.l.s4 1983009808
    %v1181 = vunpack.c.0.s8 %v1180
    %v1182 = vlaneseq
    %v1183 = vshrl.u32 %v1182, 7
    %v1184 = vsub.s32 %v1181, %v1183
    %v1185 = vrot.slane %v1178, %v1184
    %v1186 = vcombine.high %v1185, %v1185
    %1187 = vrot.lane.b32.xlu0 %v1185, 32
    %v1188 = vpop.permute.xlu0 %1187
    %1189 = vrot.lane.b32.xlu0 %v1186, 32
    %v1190 = vpop.permute.xlu0 %1189
    %v1191 = vsel %vm122, %v1188, %v1190
    %v1193 = vsel %vm50, %v242, %v1191
    %1195 = vrot.lane.b32.xlu0 %v1131, 96
    %v1196 = vpop.permute.xlu0 %1195
    %v1197 = vsel %vm122, %v1196, 0
    %1199 = vmatprep.subr.mxu0 %v253
    %1200 = vmatpush1.msra.mxu0 %v252
    %1201 = vmatprep.subr.mxu0 %v255
    %1202 = vmatpush1.msra.mxu0 %v254
    %1203 = vmatprep.subr.mxu0 %v257
    %1204 = vmatpush1.msra.mxu0 %v256
    %1205 = vmatprep.subr.mxu0 %v259
    %1206 = vmatpush1.msra.mxu0 %v258
    %1207 = vmatprep.subr.mxu0 0.0
    %1208 = vmatpush1.msra.mxu0 0.0
    %1209 = vmatprep.subr.mxu0 0.0
    %1210 = vmatpush1.msra.mxu0 0.0
    %1211 = vmatprep.subr.mxu0 0.0
    %1212 = vmatpush1.msra.mxu0 0.0
    %1213 = vmatprep.subr.mxu0 0.0
    %1214 = vmatpush1.msra.mxu0 0.0
    %1215 = vmatprep.subr.mxu0 0.0
    %1216 = vmatpush1.msra.mxu0 0.0
    %1217 = vmatprep.subr.mxu0 0.0
    %1218 = vmatpush1.msra.mxu0 0.0
    %1219 = vmatprep.subr.mxu0 0.0
    %1220 = vmatpush1.msra.mxu0 0.0
    %1221 = vmatprep.subr.mxu0 0.0
    %1222 = vmatpush1.msra.mxu0 0.0
    %1223 = vmatprep.subr.mxu0 0.0
    %1224 = vmatpush1.msra.mxu0 0.0
    %1225 = vmatprep.subr.mxu0 0.0
    %1226 = vmatpush1.msra.mxu0 0.0
    %1227 = vmatprep.subr.mxu0 0.0
    %1228 = vmatpush1.msra.mxu0 0.0
    %1229 = vmatprep.subr.mxu0 0.0
    %1230 = vmatpush1.msra.mxu0 0.0
    %1231 = vmatprep.subr.mxu0 0.0
    %1232 = vmatpush1.msra.mxu0 0.0
    %1233 = vmatprep.subr.mxu0 0.0
    %1234 = vmatpush1.msra.mxu0 0.0
    %1235 = vmatprep.subr.mxu0 0.0
    %1236 = vmatpush1.msra.mxu0 0.0
    %1237 = vmatprep.subr.mxu0 0.0
    %1238 = vmatpush1.msra.mxu0 0.0
    %1239 = vmatprep.subr.mxu0 0.0
    %1240 = vmatpush1.msra.mxu0 0.0
    %1241 = vmatprep.subr.mxu0 0.0
    %1242 = vmatpush1.msra.mxu0 0.0
    %1243 = vmatprep.subr.mxu0 0.0
    %1244 = vmatpush1.msra.mxu0 0.0
    %1245 = vmatprep.subr.mxu0 0.0
    %1246 = vmatpush1.msra.mxu0 0.0
    %1247 = vmatprep.subr.mxu0 0.0
    %1248 = vmatpush1.msra.mxu0 0.0
    %1249 = vmatprep.subr.mxu0 0.0
    %1250 = vmatpush1.msra.mxu0 0.0
    %1251 = vmatprep.subr.mxu0 0.0
    %1252 = vmatpush1.msra.mxu0 0.0
    %1253 = vmatprep.subr.mxu0 0.0
    %1254 = vmatpush1.msra.mxu0 0.0
    %1255 = vmatprep.subr.mxu0 0.0
    %1256 = vmatpush1.msra.mxu0 0.0
    %1257 = vmatprep.subr.mxu0 0.0
    %1258 = vmatpush1.msra.mxu0 0.0
    %1259 = vmatprep.subr.mxu0 0.0
    %1260 = vmatpush1.msra.mxu0 0.0
    %1261 = vmatprep.subr.mxu0 0.0
    %1262 = vmatpush1.msra.mxu0 0.0
    %1263 = vmatprep.mubr.f32.mxu0 0.0
    %1264 = vmatmul.mubr.f32.gmra.mrb[0].mxu0 %v1197
    %v1265 = vpop.f32.mrb[0].mxu0
    %v1266 = vadd.f32 0.0, %v1265
    %v1267 = vpop.f32.mrb[0].mxu0
    %v1268 = vadd.f32 0.0, %v1267
    %1269 = vdwg.mxu0
    %1272 = vrot.lane.b32.xlu0 %v1266, 32
    %v1273 = vpop.permute.xlu0 %1272
    %1274 = vrot.lane.b32.xlu0 %v1268, 32
    %v1275 = vpop.permute.xlu0 %1274
    %v1276 = vsel %vm122, %v1273, %v1275
    %v1278 = vsel %vm50, %v1266, %v1276
    %v1279 = vadd.f32 %v1278, %v269
    %v1280 = vadd.f32 %v1193, %v1279
    %v1281 = vxor.u32 %v1280, 2147483648
    %v1282 = vmul.f32 %v1281, 1.442695
    %v1283 = vpow.pop %v1282
    %v1284 = vadd.f32 %v1283, 1.0
    %v1285 = vrcp.pop %v1284
    %v1286 = vmul.f32 1.0, %v1285
    %1288 = vrot.lane.b32.xlu0 %v1279, 64
    %v1289 = vpop.permute.xlu0 %1288
    %v1291 = vmul.f32 %v1286, %v1289
    %1293 = vrot.lane.b32.xlu0 %v1291, 64
    %v1294 = vpop.permute.xlu0 %1293
    %v1296 = vadd.f32 %v1193, %v1294
    %v1297 = vtanh.pop %v1296
    %v1298 = vsub.f32 1.0, %v1286
    %1300 = vrot.lane.b32.xlu0 %v1297, 96
    %v1301 = vpop.permute.xlu0 %1300
    %v1303 = vmul.f32 %v1298, %v1301
    %v1304 = vmul.f32 %v1286, %v1131
    %v1305 = vadd.f32 %v1303, %v1304
    %v1306 = vsel %vm50, 5, 2
    %vm1307 = vcmp.gt.s32.totalorder %v51, %v1306
    %v1308 = vsel %vm1307, 1, 0
    %1309 = vset.pattern.permute.xlu0 0
    %1310 = vperm.xlu0 %1309, %v1308
    %v1311 = vpop.permute.xlu0 %1310
    %vm1312 = vcmp.eq.s32.totalorder %v1311, 1
    %v1313 = vsel %vm1312, %v1305, %v1131
    %v1314 = vsel %vm1312, %v1305, 0.0
    %v1317 = vunpack.c.l.s4 1966171168
    %v1318 = vunpack.c.0.s8 %v1317
    %v1319 = vlaneseq
    %v1320 = vshrl.u32 %v1319, 7
    %v1321 = vsub.s32 %v1318, %v1320
    %v1322 = vrot.slane %v1314, %v1321
    %v1323 = vcombine.high %v1322, %v1322
    %v1325 = vunpack.c.l.s4 1966171168
    %v1326 = vunpack.c.0.s8 %v1325
    %v1327 = vlaneseq
    %v1328 = vshrl.u32 %v1327, 7
    %v1329 = vsub.s32 %v1326, %v1328
    %v1330 = vrot.slane %v1322, %v1329
    %v1332 = vunpack.c.l.s4 1966171168
    %v1333 = vunpack.c.0.s8 %v1332
    %v1334 = vlaneseq
    %v1335 = vshrl.u32 %v1334, 7
    %v1336 = vsub.s32 %v1333, %v1335
    %v1337 = vrot.slane %v1323, %v1336
    %v1338 = vlaneseq
    %v1339 = vshrl.u32 %v1338, 7
    %v1340 = vsub.s32 0, %v1339
    %v1341 = vrot.slane %v1330, %v1340
    %v1342 = vlaneseq
    %v1343 = vshrl.u32 %v1342, 7
    %v1344 = vsub.s32 0, %v1343
    %v1345 = vrot.slane %v1337, %v1344
    %1346 = vrot.lane.b32.xlu0 %v1341, 96
    %v1347 = vpop.permute.xlu0 %1346
    %1348 = vrot.lane.b32.xlu0 %v1345, 96
    %v1349 = vpop.permute.xlu0 %1348
    %1352 = vst.msk [vmem:[#allocation2 + $0x5] sm:$0x1] %vm441, %v1347
    %1353 = vst.msk [vmem:[#allocation2 + $0xd] sm:$0x1] %vm441, %v1349
    %v1354 = vcombine.high %v1330, %v1330
    %v1355 = vcombine.high %v1337, %v1337
    %1358 = vst.msk [vmem:[#allocation2 + $0x2] sm:$0x1] %vm448, %v1354
    %1359 = vst.msk [vmem:[#allocation2 + $0xa] sm:$0x1] %vm448, %v1355
    %v1360 = vcombine.low %v224, %v224
    %v1362 = vunpack.c.l.s4 1983009808
    %v1363 = vunpack.c.0.s8 %v1362
    %v1364 = vlaneseq
    %v1365 = vshrl.u32 %v1364, 7
    %v1366 = vsub.s32 %v1363, %v1365
    %v1367 = vrot.slane %v1360, %v1366
    %v1368 = vcombine.high %v1367, %v1367
    %1369 = vrot.lane.b32.xlu0 %v1367, 32
    %v1370 = vpop.permute.xlu0 %1369
    %1371 = vrot.lane.b32.xlu0 %v1368, 32
    %v1372 = vpop.permute.xlu0 %1371
    %v1373 = vsel %vm122, %v1370, %v1372
    %v1375 = vsel %vm50, %v241, %v1373
    %1377 = vrot.lane.b32.xlu0 %v1313, 96
    %v1378 = vpop.permute.xlu0 %1377
    %v1379 = vsel %vm122, %v1378, 0
    %1381 = vmatprep.subr.mxu0 %v253
    %1382 = vmatpush1.msra.mxu0 %v252
    %1383 = vmatprep.subr.mxu0 %v255
    %1384 = vmatpush1.msra.mxu0 %v254
    %1385 = vmatprep.subr.mxu0 %v257
    %1386 = vmatpush1.msra.mxu0 %v256
    %1387 = vmatprep.subr.mxu0 %v259
    %1388 = vmatpush1.msra.mxu0 %v258
    %1389 = vmatprep.subr.mxu0 0.0
    %1390 = vmatpush1.msra.mxu0 0.0
    %1391 = vmatprep.subr.mxu0 0.0
    %1392 = vmatpush1.msra.mxu0 0.0
    %1393 = vmatprep.subr.mxu0 0.0
    %1394 = vmatpush1.msra.mxu0 0.0
    %1395 = vmatprep.subr.mxu0 0.0
    %1396 = vmatpush1.msra.mxu0 0.0
    %1397 = vmatprep.subr.mxu0 0.0
    %1398 = vmatpush1.msra.mxu0 0.0
    %1399 = vmatprep.subr.mxu0 0.0
    %1400 = vmatpush1.msra.mxu0 0.0
    %1401 = vmatprep.subr.mxu0 0.0
    %1402 = vmatpush1.msra.mxu0 0.0
    %1403 = vmatprep.subr.mxu0 0.0
    %1404 = vmatpush1.msra.mxu0 0.0
    %1405 = vmatprep.subr.mxu0 0.0
    %1406 = vmatpush1.msra.mxu0 0.0
    %1407 = vmatprep.subr.mxu0 0.0
    %1408 = vmatpush1.msra.mxu0 0.0
    %1409 = vmatprep.subr.mxu0 0.0
    %1410 = vmatpush1.msra.mxu0 0.0
    %1411 = vmatprep.subr.mxu0 0.0
    %1412 = vmatpush1.msra.mxu0 0.0
    %1413 = vmatprep.subr.mxu0 0.0
    %1414 = vmatpush1.msra.mxu0 0.0
    %1415 = vmatprep.subr.mxu0 0.0
    %1416 = vmatpush1.msra.mxu0 0.0
    %1417 = vmatprep.subr.mxu0 0.0
    %1418 = vmatpush1.msra.mxu0 0.0
    %1419 = vmatprep.subr.mxu0 0.0
    %1420 = vmatpush1.msra.mxu0 0.0
    %1421 = vmatprep.subr.mxu0 0.0
    %1422 = vmatpush1.msra.mxu0 0.0
    %1423 = vmatprep.subr.mxu0 0.0
    %1424 = vmatpush1.msra.mxu0 0.0
    %1425 = vmatprep.subr.mxu0 0.0
    %1426 = vmatpush1.msra.mxu0 0.0
    %1427 = vmatprep.subr.mxu0 0.0
    %1428 = vmatpush1.msra.mxu0 0.0
    %1429 = vmatprep.subr.mxu0 0.0
    %1430 = vmatpush1.msra.mxu0 0.0
    %1431 = vmatprep.subr.mxu0 0.0
    %1432 = vmatpush1.msra.mxu0 0.0
    %1433 = vmatprep.subr.mxu0 0.0
    %1434 = vmatpush1.msra.mxu0 0.0
    %1435 = vmatprep.subr.mxu0 0.0
    %1436 = vmatpush1.msra.mxu0 0.0
    %1437 = vmatprep.subr.mxu0 0.0
    %1438 = vmatpush1.msra.mxu0 0.0
    %1439 = vmatprep.subr.mxu0 0.0
    %1440 = vmatpush1.msra.mxu0 0.0
    %1441 = vmatprep.subr.mxu0 0.0
    %1442 = vmatpush1.msra.mxu0 0.0
    %1443 = vmatprep.subr.mxu0 0.0
    %1444 = vmatpush1.msra.mxu0 0.0
    %1445 = vmatprep.mubr.f32.mxu0 0.0
    %1446 = vmatmul.mubr.f32.gmra.mrb[0].mxu0 %v1379
    %v1447 = vpop.f32.mrb[0].mxu0
    %v1448 = vadd.f32 0.0, %v1447
    %v1449 = vpop.f32.mrb[0].mxu0
    %v1450 = vadd.f32 0.0, %v1449
    %1451 = vdwg.mxu0
    %1454 = vrot.lane.b32.xlu0 %v1448, 32
    %v1455 = vpop.permute.xlu0 %1454
    %1456 = vrot.lane.b32.xlu0 %v1450, 32
    %v1457 = vpop.permute.xlu0 %1456
    %v1458 = vsel %vm122, %v1455, %v1457
    %v1460 = vsel %vm50, %v1448, %v1458
    %v1461 = vadd.f32 %v1460, %v269
    %v1462 = vadd.f32 %v1375, %v1461
    %v1463 = vxor.u32 %v1462, 2147483648
    %v1464 = vmul.f32 %v1463, 1.442695
    %v1465 = vpow.pop %v1464
    %v1466 = vadd.f32 %v1465, 1.0
    %v1467 = vrcp.pop %v1466
    %v1468 = vmul.f32 1.0, %v1467
    %1470 = vrot.lane.b32.xlu0 %v1461, 64
    %v1471 = vpop.permute.xlu0 %1470
    %v1473 = vmul.f32 %v1468, %v1471
    %1475 = vrot.lane.b32.xlu0 %v1473, 64
    %v1476 = vpop.permute.xlu0 %1475
    %v1478 = vadd.f32 %v1375, %v1476
    %v1479 = vtanh.pop %v1478
    %v1480 = vsub.f32 1.0, %v1468
    %1482 = vrot.lane.b32.xlu0 %v1479, 96
    %v1483 = vpop.permute.xlu0 %1482
    %v1485 = vmul.f32 %v1480, %v1483
    %v1486 = vmul.f32 %v1468, %v1313
    %v1487 = vadd.f32 %v1485, %v1486
    %v1488 = vsel %vm50, 6, 1
    %vm1489 = vcmp.gt.s32.totalorder %v51, %v1488
    %v1490 = vsel %vm1489, 1, 0
    %1491 = vset.pattern.permute.xlu0 0
    %1492 = vperm.xlu0 %1491, %v1490
    %v1493 = vpop.permute.xlu0 %1492
    %vm1494 = vcmp.eq.s32.totalorder %v1493, 1
    %v1495 = vsel %vm1494, %v1487, %v1313
    %v1496 = vsel %vm1494, %v1487, 0.0
    %v1499 = vunpack.c.l.s4 1966171168
    %v1500 = vunpack.c.0.s8 %v1499
    %v1501 = vlaneseq
    %v1502 = vshrl.u32 %v1501, 7
    %v1503 = vsub.s32 %v1500, %v1502
    %v1504 = vrot.slane %v1496, %v1503
    %v1505 = vcombine.high %v1504, %v1504
    %v1507 = vunpack.c.l.s4 1966171168
    %v1508 = vunpack.c.0.s8 %v1507
    %v1509 = vlaneseq
    %v1510 = vshrl.u32 %v1509, 7
    %v1511 = vsub.s32 %v1508, %v1510
    %v1512 = vrot.slane %v1504, %v1511
    %v1514 = vunpack.c.l.s4 1966171168
    %v1515 = vunpack.c.0.s8 %v1514
    %v1516 = vlaneseq
    %v1517 = vshrl.u32 %v1516, 7
    %v1518 = vsub.s32 %v1515, %v1517
    %v1519 = vrot.slane %v1505, %v1518
    %v1520 = vlaneseq
    %v1521 = vshrl.u32 %v1520, 7
    %v1522 = vsub.s32 0, %v1521
    %v1523 = vrot.slane %v1512, %v1522
    %v1524 = vlaneseq
    %v1525 = vshrl.u32 %v1524, 7
    %v1526 = vsub.s32 0, %v1525
    %v1527 = vrot.slane %v1519, %v1526
    %1528 = vrot.lane.b32.xlu0 %v1523, 96
    %v1529 = vpop.permute.xlu0 %1528
    %1530 = vrot.lane.b32.xlu0 %v1527, 96
    %v1531 = vpop.permute.xlu0 %1530
    %1534 = vst.msk [vmem:[#allocation2 + $0x6] sm:$0x1] %vm441, %v1529
    %1535 = vst.msk [vmem:[#allocation2 + $0xe] sm:$0x1] %vm441, %v1531
    %v1536 = vcombine.high %v1512, %v1512
    %v1537 = vcombine.high %v1519, %v1519
    %1540 = vst.msk [vmem:[#allocation2 + $0x1] sm:$0x1] %vm448, %v1536
    %1541 = vst.msk [vmem:[#allocation2 + $0x9] sm:$0x1] %vm448, %v1537
    %v1542 = vcombine.low %v216, %v216
    %v1544 = vunpack.c.l.s4 1983009808
    %v1545 = vunpack.c.0.s8 %v1544
    %v1546 = vlaneseq
    %v1547 = vshrl.u32 %v1546, 7
    %v1548 = vsub.s32 %v1545, %v1547
    %v1549 = vrot.slane %v1542, %v1548
    %v1550 = vcombine.high %v1549, %v1549
    %1551 = vrot.lane.b32.xlu0 %v1549, 32
    %v1552 = vpop.permute.xlu0 %1551
    %1553 = vrot.lane.b32.xlu0 %v1550, 32
    %v1554 = vpop.permute.xlu0 %1553
    %v1555 = vsel %vm122, %v1552, %v1554
    %v1557 = vsel %vm50, %v243, %v1555
    %1559 = vrot.lane.b32.xlu0 %v1495, 96
    %v1560 = vpop.permute.xlu0 %1559
    %v1561 = vsel %vm122, %v1560, 0
    %1563 = vmatprep.subr.mxu0 %v253
    %1564 = vmatpush1.msra.mxu0 %v252
    %1565 = vmatprep.subr.mxu0 %v255
    %1566 = vmatpush1.msra.mxu0 %v254
    %1567 = vmatprep.subr.mxu0 %v257
    %1568 = vmatpush1.msra.mxu0 %v256
    %1569 = vmatprep.subr.mxu0 %v259
    %1570 = vmatpush1.msra.mxu0 %v258
    %1571 = vmatprep.subr.mxu0 0.0
    %1572 = vmatpush1.msra.mxu0 0.0
    %1573 = vmatprep.subr.mxu0 0.0
    %1574 = vmatpush1.msra.mxu0 0.0
    %1575 = vmatprep.subr.mxu0 0.0
    %1576 = vmatpush1.msra.mxu0 0.0
    %1577 = vmatprep.subr.mxu0 0.0
    %1578 = vmatpush1.msra.mxu0 0.0
    %1579 = vmatprep.subr.mxu0 0.0
    %1580 = vmatpush1.msra.mxu0 0.0
    %1581 = vmatprep.subr.mxu0 0.0
    %1582 = vmatpush1.msra.mxu0 0.0
    %1583 = vmatprep.subr.mxu0 0.0
    %1584 = vmatpush1.msra.mxu0 0.0
    %1585 = vmatprep.subr.mxu0 0.0
    %1586 = vmatpush1.msra.mxu0 0.0
    %1587 = vmatprep.subr.mxu0 0.0
    %1588 = vmatpush1.msra.mxu0 0.0
    %1589 = vmatprep.subr.mxu0 0.0
    %1590 = vmatpush1.msra.mxu0 0.0
    %1591 = vmatprep.subr.mxu0 0.0
    %1592 = vmatpush1.msra.mxu0 0.0
    %1593 = vmatprep.subr.mxu0 0.0
    %1594 = vmatpush1.msra.mxu0 0.0
    %1595 = vmatprep.subr.mxu0 0.0
    %1596 = vmatpush1.msra.mxu0 0.0
    %1597 = vmatprep.subr.mxu0 0.0
    %1598 = vmatpush1.msra.mxu0 0.0
    %1599 = vmatprep.subr.mxu0 0.0
    %1600 = vmatpush1.msra.mxu0 0.0
    %1601 = vmatprep.subr.mxu0 0.0
    %1602 = vmatpush1.msra.mxu0 0.0
    %1603 = vmatprep.subr.mxu0 0.0
    %1604 = vmatpush1.msra.mxu0 0.0
    %1605 = vmatprep.subr.mxu0 0.0
    %1606 = vmatpush1.msra.mxu0 0.0
    %1607 = vmatprep.subr.mxu0 0.0
    %1608 = vmatpush1.msra.mxu0 0.0
    %1609 = vmatprep.subr.mxu0 0.0
    %1610 = vmatpush1.msra.mxu0 0.0
    %1611 = vmatprep.subr.mxu0 0.0
    %1612 = vmatpush1.msra.mxu0 0.0
    %1613 = vmatprep.subr.mxu0 0.0
    %1614 = vmatpush1.msra.mxu0 0.0
    %1615 = vmatprep.subr.mxu0 0.0
    %1616 = vmatpush1.msra.mxu0 0.0
    %1617 = vmatprep.subr.mxu0 0.0
    %1618 = vmatpush1.msra.mxu0 0.0
    %1619 = vmatprep.subr.mxu0 0.0
    %1620 = vmatpush1.msra.mxu0 0.0
    %1621 = vmatprep.subr.mxu0 0.0
    %1622 = vmatpush1.msra.mxu0 0.0
    %1623 = vmatprep.subr.mxu0 0.0
    %1624 = vmatpush1.msra.mxu0 0.0
    %1625 = vmatprep.subr.mxu0 0.0
    %1626 = vmatpush1.msra.mxu0 0.0
    %1627 = vmatprep.mubr.f32.mxu0 0.0
    %1628 = vmatmul.mubr.f32.gmra.mrb[0].mxu0 %v1561
    %v1629 = vpop.f32.mrb[0].mxu0
    %v1630 = vadd.f32 0.0, %v1629
    %v1631 = vpop.f32.mrb[0].mxu0
    %v1632 = vadd.f32 0.0, %v1631
    %1633 = vdwg.mxu0
    %1636 = vrot.lane.b32.xlu0 %v1630, 32
    %v1637 = vpop.permute.xlu0 %1636
    %1638 = vrot.lane.b32.xlu0 %v1632, 32
    %v1639 = vpop.permute.xlu0 %1638
    %v1640 = vsel %vm122, %v1637, %v1639
    %v1642 = vsel %vm50, %v1630, %v1640
    %v1643 = vadd.f32 %v1642, %v269
    %v1644 = vadd.f32 %v1557, %v1643
    %v1645 = vxor.u32 %v1644, 2147483648
    %v1646 = vmul.f32 %v1645, 1.442695
    %v1647 = vpow.pop %v1646
    %v1648 = vadd.f32 %v1647, 1.0
    %v1649 = vrcp.pop %v1648
    %v1650 = vmul.f32 1.0, %v1649
    %1652 = vrot.lane.b32.xlu0 %v1643, 64
    %v1653 = vpop.permute.xlu0 %1652
    %v1655 = vmul.f32 %v1650, %v1653
    %1657 = vrot.lane.b32.xlu0 %v1655, 64
    %v1658 = vpop.permute.xlu0 %1657
    %v1660 = vadd.f32 %v1557, %v1658
    %v1661 = vtanh.pop %v1660
    %v1662 = vsub.f32 1.0, %v1650
    %1664 = vrot.lane.b32.xlu0 %v1661, 96
    %v1665 = vpop.permute.xlu0 %1664
    %v1667 = vmul.f32 %v1662, %v1665
    %v1668 = vmul.f32 %v1650, %v1495
    %v1669 = vadd.f32 %v1667, %v1668
    %v1670 = vsel %vm50, 7, 0
    %vm1671 = vcmp.gt.s32.totalorder %v51, %v1670
    %v1672 = vsel %vm1671, 1, 0
    %1673 = vset.pattern.permute.xlu0 0
    %1674 = vperm.xlu0 %1673, %v1672
    %v1675 = vpop.permute.xlu0 %1674
    %vm1676 = vcmp.eq.s32.totalorder %v1675, 1
    %v1677 = vsel %vm1676, %v1669, 0.0
    %v1680 = vunpack.c.l.s4 1966171168
    %v1681 = vunpack.c.0.s8 %v1680
    %v1682 = vlaneseq
    %v1683 = vshrl.u32 %v1682, 7
    %v1684 = vsub.s32 %v1681, %v1683
    %v1685 = vrot.slane %v1677, %v1684
    %v1686 = vcombine.high %v1685, %v1685
    %v1688 = vunpack.c.l.s4 1966171168
    %v1689 = vunpack.c.0.s8 %v1688
    %v1690 = vlaneseq
    %v1691 = vshrl.u32 %v1690, 7
    %v1692 = vsub.s32 %v1689, %v1691
    %v1693 = vrot.slane %v1685, %v1692
    %v1695 = vunpack.c.l.s4 1966171168
    %v1696 = vunpack.c.0.s8 %v1695
    %v1697 = vlaneseq
    %v1698 = vshrl.u32 %v1697, 7
    %v1699 = vsub.s32 %v1696, %v1698
    %v1700 = vrot.slane %v1686, %v1699
    %v1701 = vlaneseq
    %v1702 = vshrl.u32 %v1701, 7
    %v1703 = vsub.s32 0, %v1702
    %v1704 = vrot.slane %v1693, %v1703
    %v1705 = vlaneseq
    %v1706 = vshrl.u32 %v1705, 7
    %v1707 = vsub.s32 0, %v1706
    %v1708 = vrot.slane %v1700, %v1707
    %1709 = vrot.lane.b32.xlu0 %v1704, 96
    %v1710 = vpop.permute.xlu0 %1709
    %1711 = vrot.lane.b32.xlu0 %v1708, 96
    %v1712 = vpop.permute.xlu0 %1711
    %1715 = vst.msk [vmem:[#allocation2 + $0x7] sm:$0x1] %vm441, %v1710
    %1716 = vst.msk [vmem:[#allocation2 + $0xf] sm:$0x1] %vm441, %v1712
    %v1717 = vcombine.high %v1693, %v1693
    %v1718 = vcombine.high %v1700, %v1700
    %1721 = vst.msk [vmem:[#allocation2] sm:$0x1] %vm448, %v1717
    %1722 = vst.msk [vmem:[#allocation2 + $0x8] sm:$0x1] %vm448, %v1718
    %v1723 = vld [vmem:[#allocation2] sm:$0xff]
    %v1724 = vld [vmem:[#allocation2 + $0x8] sm:$0xff]
    %v1725 = vld [vmem:[%s6] sm:$0xff]
    %v1726 = vld [vmem:[%s6 + $0x8] sm:$0xff]
    %v1727 = vld [vmem:[%s6 + $0x10] sm:$0xff]
    %v1728 = vld [vmem:[%s6 + $0x18] sm:$0xff]
    %v1729 = vld [vmem:[%s6 + $0x20] sm:$0xff]
    %v1730 = vld [vmem:[%s6 + $0x28] sm:$0xff]
    %v1731 = vld [vmem:[%s6 + $0x30] sm:$0xff]
    %v1732 = vld [vmem:[%s6 + $0x38] sm:$0xff]
    %v1733 = vld [vmem:[%s6 + $0x40] sm:$0xff]
    %v1734 = vld [vmem:[%s6 + $0x48] sm:$0xff]
    %v1735 = vld [vmem:[%s6 + $0x50] sm:$0xff]
    %v1736 = vld [vmem:[%s6 + $0x58] sm:$0xff]
    %v1737 = vld [vmem:[%s6 + $0x60] sm:$0xff]
    %v1738 = vld [vmem:[%s6 + $0x68] sm:$0xff]
    %v1739 = vld [vmem:[%s6 + $0x70] sm:$0xff]
    %v1740 = vld [vmem:[%s6 + $0x78] sm:$0xff]
    %v1741 = vld [vmem:[%s7] sm:$0x3]
    %v1743 = vlaneseq
    %v1744 = vshrl.u32 %v1743, 7
    %v1745 = vsub.s32 0, %v1744
    %v1746 = vrot.slane %v1741, %v1745
    %v1747 = vlaneseq
    %v1748 = vshrl.u32 %v1747, 7
    %v1749 = vsub.s32 1, %v1748
    %v1750 = vrot.slane %v1741, %v1749
    %vm1753 = vcmask 523264
    %v1755 = vsel %vm1753, %v1723, 0
    %v1758 = vsel %vm1753, %v1724, 0
    %1760 = vmatprep.subr.mxu0 %v1726
    %1761 = vmatpush1.msra.mxu0 %v1725
    %1762 = vmatprep.subr.mxu0 %v1728
    %1763 = vmatpush1.msra.mxu0 %v1727
    %1764 = vmatprep.subr.mxu0 %v1730
    %1765 = vmatpush1.msra.mxu0 %v1729
    %1766 = vmatprep.subr.mxu0 %v1732
    %1767 = vmatpush1.msra.mxu0 %v1731
    %1768 = vmatprep.subr.mxu0 %v1734
    %1769 = vmatpush1.msra.mxu0 %v1733
    %1770 = vmatprep.subr.mxu0 %v1736
    %1771 = vmatpush1.msra.mxu0 %v1735
    %1772 = vmatprep.subr.mxu0 %v1738
    %1773 = vmatpush1.msra.mxu0 %v1737
    %1774 = vmatprep.subr.mxu0 %v1740
    %1775 = vmatpush1.msra.mxu0 %v1739
    %1776 = vmatprep.subr.mxu0 0.0
    %1777 = vmatpush1.msra.mxu0 0.0
    %1778 = vmatprep.subr.mxu0 0.0
    %1779 = vmatpush1.msra.mxu0 0.0
    %1780 = vmatprep.subr.mxu0 0.0
    %1781 = vmatpush1.msra.mxu0 0.0
    %1782 = vmatprep.subr.mxu0 0.0
    %1783 = vmatpush1.msra.mxu0 0.0
    %1784 = vmatprep.subr.mxu0 0.0
    %1785 = vmatpush1.msra.mxu0 0.0
    %1786 = vmatprep.subr.mxu0 0.0
    %1787 = vmatpush1.msra.mxu0 0.0
    %1788 = vmatprep.subr.mxu0 0.0
    %1789 = vmatpush1.msra.mxu0 0.0
    %1790 = vmatprep.subr.mxu0 0.0
    %1791 = vmatpush1.msra.mxu0 0.0
    %1792 = vmatprep.subr.mxu0 0.0
    %1793 = vmatpush1.msra.mxu0 0.0
    %1794 = vmatprep.subr.mxu0 0.0
    %1795 = vmatpush1.msra.mxu0 0.0
    %1796 = vmatprep.subr.mxu0 0.0
    %1797 = vmatpush1.msra.mxu0 0.0
    %1798 = vmatprep.subr.mxu0 0.0
    %1799 = vmatpush1.msra.mxu0 0.0
    %1800 = vmatprep.subr.mxu0 0.0
    %1801 = vmatpush1.msra.mxu0 0.0
    %1802 = vmatprep.subr.mxu0 0.0
    %1803 = vmatpush1.msra.mxu0 0.0
    %1804 = vmatprep.subr.mxu0 0.0
    %1805 = vmatpush1.msra.mxu0 0.0
    %1806 = vmatprep.subr.mxu0 0.0
    %1807 = vmatpush1.msra.mxu0 0.0
    %1808 = vmatprep.subr.mxu0 0.0
    %1809 = vmatpush1.msra.mxu0 0.0
    %1810 = vmatprep.subr.mxu0 0.0
    %1811 = vmatpush1.msra.mxu0 0.0
    %1812 = vmatprep.subr.mxu0 0.0
    %1813 = vmatpush1.msra.mxu0 0.0
    %1814 = vmatprep.subr.mxu0 0.0
    %1815 = vmatpush1.msra.mxu0 0.0
    %1816 = vmatprep.subr.mxu0 0.0
    %1817 = vmatpush1.msra.mxu0 0.0
    %1818 = vmatprep.subr.mxu0 0.0
    %1819 = vmatpush1.msra.mxu0 0.0
    %1820 = vmatprep.subr.mxu0 0.0
    %1821 = vmatpush1.msra.mxu0 0.0
    %1822 = vmatprep.subr.mxu0 0.0
    %1823 = vmatpush1.msra.mxu0 0.0
    %1824 = vmatprep.mubr.f32.mxu0 0.0
    %1825 = vmatmul.mubr.f32.gmra.mrb[0].mxu0 %v1755
    %v1826 = vpop.f32.mrb[0].mxu0
    %v1827 = vadd.f32 %v1746, %v1826
    %v1828 = vpop.f32.mrb[0].mxu0
    %v1829 = vadd.f32 %v1750, %v1828
    %1830 = vmatprep.mubr.f32.mxu0 0.0
    %1831 = vmatmul.mubr.f32.gmra.mrb[0].mxu0 %v1758
    %v1832 = vpop.f32.mrb[0].mxu0
    %v1833 = vadd.f32 %v1746, %v1832
    %v1834 = vpop.f32.mrb[0].mxu0
    %v1835 = vadd.f32 %v1750, %v1834
    %1836 = vdwg.mxu0
    %1838 = vrot.lane.b32.xlu0 %v1827, 64
    %v1839 = vpop.permute.xlu0 %1838
    %vm1840 = vcmask 130048
    %v1841 = vsel %vm1840, %v1827, 0
    %v1843 = vsel %vm1840, %v1839, 0
    %1845 = vmatprep.subr.mxu0 0.0
    %1846 = vmatpush1.xpose.msra.mxu0 %v1843
    %1847 = vmatprep.subr.mxu0 0.0
    %1848 = vmatpush1.xpose.msra.mxu0 0.0
    %1849 = vmatprep.subr.mxu0 0.0
    %1850 = vmatpush1.xpose.msra.mxu0 0.0
    %1851 = vmatprep.subr.mxu0 0.0
    %1852 = vmatpush1.xpose.msra.mxu0 0.0
    %1853 = vmatprep.subr.mxu0 0.0
    %1854 = vmatpush1.xpose.msra.mxu0 0.0
    %1855 = vmatprep.subr.mxu0 0.0
    %1856 = vmatpush1.xpose.msra.mxu0 0.0
    %1857 = vmatprep.subr.mxu0 0.0
    %1858 = vmatpush1.xpose.msra.mxu0 0.0
    %1859 = vmatprep.subr.mxu0 0.0
    %1860 = vmatpush1.xpose.msra.mxu0 0.0
    %1861 = vmatprep.subr.mxu0 0.0
    %1862 = vmatpush1.xpose.msra.mxu0 0.0
    %1863 = vmatprep.subr.mxu0 0.0
    %1864 = vmatpush1.xpose.msra.mxu0 0.0
    %1865 = vmatprep.subr.mxu0 0.0
    %1866 = vmatpush1.xpose.msra.mxu0 0.0
    %1867 = vmatprep.subr.mxu0 0.0
    %1868 = vmatpush1.xpose.msra.mxu0 0.0
    %1869 = vmatprep.subr.mxu0 0.0
    %1870 = vmatpush1.xpose.msra.mxu0 0.0
    %1871 = vmatprep.subr.mxu0 0.0
    %1872 = vmatpush1.xpose.msra.mxu0 0.0
    %1873 = vmatprep.subr.mxu0 0.0
    %1874 = vmatpush1.xpose.msra.mxu0 0.0
    %1875 = vmatprep.subr.mxu0 0.0
    %1876 = vmatpush1.xpose.msra.mxu0 0.0
    %1877 = vmatprep.subr.mxu0 0.0
    %1878 = vmatpush1.xpose.msra.mxu0 0.0
    %1879 = vmatprep.subr.mxu0 0.0
    %1880 = vmatpush1.xpose.msra.mxu0 0.0
    %1881 = vmatprep.subr.mxu0 0.0
    %1882 = vmatpush1.xpose.msra.mxu0 0.0
    %1883 = vmatprep.subr.mxu0 0.0
    %1884 = vmatpush1.xpose.msra.mxu0 0.0
    %1885 = vmatprep.subr.mxu0 0.0
    %1886 = vmatpush1.xpose.msra.mxu0 0.0
    %1887 = vmatprep.subr.mxu0 0.0
    %1888 = vmatpush1.xpose.msra.mxu0 0.0
    %1889 = vmatprep.subr.mxu0 0.0
    %1890 = vmatpush1.xpose.msra.mxu0 0.0
    %1891 = vmatprep.subr.mxu0 0.0
    %1892 = vmatpush1.xpose.msra.mxu0 0.0
    %1893 = vmatprep.subr.mxu0 0.0
    %1894 = vmatpush1.xpose.msra.mxu0 0.0
    %1895 = vmatprep.subr.mxu0 0.0
    %1896 = vmatpush1.xpose.msra.mxu0 0.0
    %1897 = vmatprep.subr.mxu0 0.0
    %1898 = vmatpush1.xpose.msra.mxu0 0.0
    %1899 = vmatprep.subr.mxu0 0.0
    %1900 = vmatpush1.xpose.msra.mxu0 0.0
    %1901 = vmatprep.subr.mxu0 0.0
    %1902 = vmatpush1.xpose.msra.mxu0 0.0
    %1903 = vmatprep.subr.mxu0 0.0
    %1904 = vmatpush1.xpose.msra.mxu0 0.0
    %1905 = vmatprep.subr.mxu0 0.0
    %1906 = vmatpush1.xpose.msra.mxu0 0.0
    %1907 = vmatprep.subr.mxu0 0.0
    %1908 = vmatpush1.xpose.msra.mxu0 0.0
    %1909 = vmatprep.mubr.f32.mxu0 0.0
    %1910 = vmatmul.mubr.f32.gmra.mrb[0].mxu0 %v1841
    %v1911 = vpop.f32.mrb[0].mxu0
    %v1912 = vadd.f32 0.0, %v1911
    %v1913 = vpop.f32.mrb[0].mxu0
    %1914 = vdwg.mxu0
    %1916 = vrot.lane.b32.xlu0 %v1833, 64
    %v1917 = vpop.permute.xlu0 %1916
    %v1918 = vsel %vm1840, %v1833, 0
    %v1920 = vsel %vm1840, %v1917, 0
    %1922 = vmatprep.subr.mxu0 0.0
    %1923 = vmatpush1.xpose.msra.mxu0 %v1920
    %1924 = vmatprep.subr.mxu0 0.0
    %1925 = vmatpush1.xpose.msra.mxu0 0.0
    %1926 = vmatprep.subr.mxu0 0.0
    %1927 = vmatpush1.xpose.msra.mxu0 0.0
    %1928 = vmatprep.subr.mxu0 0.0
    %1929 = vmatpush1.xpose.msra.mxu0 0.0
    %1930 = vmatprep.subr.mxu0 0.0
    %1931 = vmatpush1.xpose.msra.mxu0 0.0
    %1932 = vmatprep.subr.mxu0 0.0
    %1933 = vmatpush1.xpose.msra.mxu0 0.0
    %1934 = vmatprep.subr.mxu0 0.0
    %1935 = vmatpush1.xpose.msra.mxu0 0.0
    %1936 = vmatprep.subr.mxu0 0.0
    %1937 = vmatpush1.xpose.msra.mxu0 0.0
    %1938 = vmatprep.subr.mxu0 0.0
    %1939 = vmatpush1.xpose.msra.mxu0 0.0
    %1940 = vmatprep.subr.mxu0 0.0
    %1941 = vmatpush1.xpose.msra.mxu0 0.0
    %1942 = vmatprep.subr.mxu0 0.0
    %1943 = vmatpush1.xpose.msra.mxu0 0.0
    %1944 = vmatprep.subr.mxu0 0.0
    %1945 = vmatpush1.xpose.msra.mxu0 0.0
    %1946 = vmatprep.subr.mxu0 0.0
    %1947 = vmatpush1.xpose.msra.mxu0 0.0
    %1948 = vmatprep.subr.mxu0 0.0
    %1949 = vmatpush1.xpose.msra.mxu0 0.0
    %1950 = vmatprep.subr.mxu0 0.0
    %1951 = vmatpush1.xpose.msra.mxu0 0.0
    %1952 = vmatprep.subr.mxu0 0.0
    %1953 = vmatpush1.xpose.msra.mxu0 0.0
    %1954 = vmatprep.subr.mxu0 0.0
    %1955 = vmatpush1.xpose.msra.mxu0 0.0
    %1956 = vmatprep.subr.mxu0 0.0
    %1957 = vmatpush1.xpose.msra.mxu0 0.0
    %1958 = vmatprep.subr.mxu0 0.0
    %1959 = vmatpush1.xpose.msra.mxu0 0.0
    %1960 = vmatprep.subr.mxu0 0.0
    %1961 = vmatpush1.xpose.msra.mxu0 0.0
    %1962 = vmatprep.subr.mxu0 0.0
    %1963 = vmatpush1.xpose.msra.mxu0 0.0
    %1964 = vmatprep.subr.mxu0 0.0
    %1965 = vmatpush1.xpose.msra.mxu0 0.0
    %1966 = vmatprep.subr.mxu0 0.0
    %1967 = vmatpush1.xpose.msra.mxu0 0.0
    %1968 = vmatprep.subr.mxu0 0.0
    %1969 = vmatpush1.xpose.msra.mxu0 0.0
    %1970 = vmatprep.subr.mxu0 0.0
    %1971 = vmatpush1.xpose.msra.mxu0 0.0
    %1972 = vmatprep.subr.mxu0 0.0
    %1973 = vmatpush1.xpose.msra.mxu0 0.0
    %1974 = vmatprep.subr.mxu0 0.0
    %1975 = vmatpush1.xpose.msra.mxu0 0.0
    %1976 = vmatprep.subr.mxu0 0.0
    %1977 = vmatpush1.xpose.msra.mxu0 0.0
    %1978 = vmatprep.subr.mxu0 0.0
    %1979 = vmatpush1.xpose.msra.mxu0 0.0
    %1980 = vmatprep.subr.mxu0 0.0
    %1981 = vmatpush1.xpose.msra.mxu0 0.0
    %1982 = vmatprep.subr.mxu0 0.0
    %1983 = vmatpush1.xpose.msra.mxu0 0.0
    %1984 = vmatprep.subr.mxu0 0.0
    %1985 = vmatpush1.xpose.msra.mxu0 0.0
    %1986 = vmatprep.mubr.f32.mxu0 0.0
    %1987 = vmatmul.mubr.f32.gmra.mrb[0].mxu0 %v1918
    %v1988 = vpop.f32.mrb[0].mxu0
    %v1989 = vadd.f32 0.0, %v1988
    %v1990 = vpop.f32.mrb[0].mxu0
    %1991 = vdwg.mxu0
    %v1992 = vmul.f32 %v1912, 0.25
    %v1993 = vmul.f32 %v1989, 0.25
    %vm1994 = vcmask 64512
    %v1995 = vsel %vm1994, %v1992, -inf
    %1996 = vmax.xlane.f32.xlu0 %v1995
    %v1997 = vpop.xlane.xlu0 %1996
    %v1998 = vsel %vm1994, %v1993, -inf
    %1999 = vmax.xlane.f32.xlu0 %v1998
    %v2000 = vpop.xlane.xlu0 %1999
    %v2001 = vsub.f32 %v1992, %v1997
    %v2002 = vsub.f32 %v1993, %v2000
    %v2003 = vmul.f32 %v2001, 1.442695
    %v2004 = vpow.pop %v2003
    %v2005 = vmul.f32 %v2002, 1.442695
    %v2006 = vpow.pop %v2005
    %v2007 = vsel %vm1994, %v2004, 0.0
    %2008 = vadd.xlane.f32.xlu0 %v2007
    %v2009 = vpop.xlane.xlu0 %2008
    %v2010 = vsel %vm1994, %v2006, 0.0
    %2011 = vadd.xlane.f32.xlu0 %v2010
    %v2012 = vpop.xlane.xlu0 %2011
    %v2013 = vrcp.pop %v2009
    %v2014 = vrcp.pop %v2012
    %v2015 = vmul.f32 %v2004, %v2013
    %v2016 = vmul.f32 %v2006, %v2014
    %v2018 = vsel %vm1994, %v2015, 0
    %2020 = vmatprep.subr.mxu0 0.0
    %2021 = vmatpush1.msra.mxu0 %v1829
    %2022 = vmatprep.subr.mxu0 0.0
    %2023 = vmatpush1.msra.mxu0 0.0
    %2024 = vmatprep.subr.mxu0 0.0
    %2025 = vmatpush1.msra.mxu0 0.0
    %2026 = vmatprep.subr.mxu0 0.0
    %2027 = vmatpush1.msra.mxu0 0.0
    %2028 = vmatprep.subr.mxu0 0.0
    %2029 = vmatpush1.msra.mxu0 0.0
    %2030 = vmatprep.subr.mxu0 0.0
    %2031 = vmatpush1.msra.mxu0 0.0
    %2032 = vmatprep.subr.mxu0 0.0
    %2033 = vmatpush1.msra.mxu0 0.0
    %2034 = vmatprep.subr.mxu0 0.0
    %2035 = vmatpush1.msra.mxu0 0.0
    %2036 = vmatprep.subr.mxu0 0.0
    %2037 = vmatpush1.msra.mxu0 0.0
    %2038 = vmatprep.subr.mxu0 0.0
    %2039 = vmatpush1.msra.mxu0 0.0
    %2040 = vmatprep.subr.mxu0 0.0
    %2041 = vmatpush1.msra.mxu0 0.0
    %2042 = vmatprep.subr.mxu0 0.0
    %2043 = vmatpush1.msra.mxu0 0.0
    %2044 = vmatprep.subr.mxu0 0.0
    %2045 = vmatpush1.msra.mxu0 0.0
    %2046 = vmatprep.subr.mxu0 0.0
    %2047 = vmatpush1.msra.mxu0 0.0
    %2048 = vmatprep.subr.mxu0 0.0
    %2049 = vmatpush1.msra.mxu0 0.0
    %2050 = vmatprep.subr.mxu0 0.0
    %2051 = vmatpush1.msra.mxu0 0.0
    %2052 = vmatprep.subr.mxu0 0.0
    %2053 = vmatpush1.msra.mxu0 0.0
    %2054 = vmatprep.subr.mxu0 0.0
    %2055 = vmatpush1.msra.mxu0 0.0
    %2056 = vmatprep.subr.mxu0 0.0
    %2057 = vmatpush1.msra.mxu0 0.0
    %2058 = vmatprep.subr.mxu0 0.0
    %2059 = vmatpush1.msra.mxu0 0.0
    %2060 = vmatprep.subr.mxu0 0.0
    %2061 = vmatpush1.msra.mxu0 0.0
    %2062 = vmatprep.subr.mxu0 0.0
    %2063 = vmatpush1.msra.mxu0 0.0
    %2064 = vmatprep.subr.mxu0 0.0
    %2065 = vmatpush1.msra.mxu0 0.0
    %2066 = vmatprep.subr.mxu0 0.0
    %2067 = vmatpush1.msra.mxu0 0.0
    %2068 = vmatprep.subr.mxu0 0.0
    %2069 = vmatpush1.msra.mxu0 0.0
    %2070 = vmatprep.subr.mxu0 0.0
    %2071 = vmatpush1.msra.mxu0 0.0
    %2072 = vmatprep.subr.mxu0 0.0
    %2073 = vmatpush1.msra.mxu0 0.0
    %2074 = vmatprep.subr.mxu0 0.0
    %2075 = vmatpush1.msra.mxu0 0.0
    %2076 = vmatprep.subr.mxu0 0.0
    %2077 = vmatpush1.msra.mxu0 0.0
    %2078 = vmatprep.subr.mxu0 0.0
    %2079 = vmatpush1.msra.mxu0 0.0
    %2080 = vmatprep.subr.mxu0 0.0
    %2081 = vmatpush1.msra.mxu0 0.0
    %2082 = vmatprep.subr.mxu0 0.0
    %2083 = vmatpush1.msra.mxu0 0.0
    %2084 = vmatprep.mubr.f32.mxu0 0.0
    %2085 = vmatmul.mubr.f32.gmra.mrb[0].mxu0 %v2018
    %v2086 = vpop.f32.mrb[0].mxu0
    %v2087 = vadd.f32 0.0, %v2086
    %v2088 = vpop.f32.mrb[0].mxu0
    %2089 = vdwg.mxu0
    %v2091 = vsel %vm1994, %v2016, 0
    %2093 = vmatprep.subr.mxu0 0.0
    %2094 = vmatpush1.msra.mxu0 %v1835
    %2095 = vmatprep.subr.mxu0 0.0
    %2096 = vmatpush1.msra.mxu0 0.0
    %2097 = vmatprep.subr.mxu0 0.0
    %2098 = vmatpush1.msra.mxu0 0.0
    %2099 = vmatprep.subr.mxu0 0.0
    %2100 = vmatpush1.msra.mxu0 0.0
    %2101 = vmatprep.subr.mxu0 0.0
    %2102 = vmatpush1.msra.mxu0 0.0
    %2103 = vmatprep.subr.mxu0 0.0
    %2104 = vmatpush1.msra.mxu0 0.0
    %2105 = vmatprep.subr.mxu0 0.0
    %2106 = vmatpush1.msra.mxu0 0.0
    %2107 = vmatprep.subr.mxu0 0.0
    %2108 = vmatpush1.msra.mxu0 0.0
    %2109 = vmatprep.subr.mxu0 0.0
    %2110 = vmatpush1.msra.mxu0 0.0
    %2111 = vmatprep.subr.mxu0 0.0
    %2112 = vmatpush1.msra.mxu0 0.0
    %2113 = vmatprep.subr.mxu0 0.0
    %2114 = vmatpush1.msra.mxu0 0.0
    %2115 = vmatprep.subr.mxu0 0.0
    %2116 = vmatpush1.msra.mxu0 0.0
    %2117 = vmatprep.subr.mxu0 0.0
    %2118 = vmatpush1.msra.mxu0 0.0
    %2119 = vmatprep.subr.mxu0 0.0
    %2120 = vmatpush1.msra.mxu0 0.0
    %2121 = vmatprep.subr.mxu0 0.0
    %2122 = vmatpush1.msra.mxu0 0.0
    %2123 = vmatprep.subr.mxu0 0.0
    %2124 = vmatpush1.msra.mxu0 0.0
    %2125 = vmatprep.subr.mxu0 0.0
    %2126 = vmatpush1.msra.mxu0 0.0
    %2127 = vmatprep.subr.mxu0 0.0
    %2128 = vmatpush1.msra.mxu0 0.0
    %2129 = vmatprep.subr.mxu0 0.0
    %2130 = vmatpush1.msra.mxu0 0.0
    %2131 = vmatprep.subr.mxu0 0.0
    %2132 = vmatpush1.msra.mxu0 0.0
    %2133 = vmatprep.subr.mxu0 0.0
    %2134 = vmatpush1.msra.mxu0 0.0
    %2135 = vmatprep.subr.mxu0 0.0
    %2136 = vmatpush1.msra.mxu0 0.0
    %2137 = vmatprep.subr.mxu0 0.0
    %2138 = vmatpush1.msra.mxu0 0.0
    %2139 = vmatprep.subr.mxu0 0.0
    %2140 = vmatpush1.msra.mxu0 0.0
    %2141 = vmatprep.subr.mxu0 0.0
    %2142 = vmatpush1.msra.mxu0 0.0
    %2143 = vmatprep.subr.mxu0 0.0
    %2144 = vmatpush1.msra.mxu0 0.0
    %2145 = vmatprep.subr.mxu0 0.0
    %2146 = vmatpush1.msra.mxu0 0.0
    %2147 = vmatprep.subr.mxu0 0.0
    %2148 = vmatpush1.msra.mxu0 0.0
    %2149 = vmatprep.subr.mxu0 0.0
    %2150 = vmatpush1.msra.mxu0 0.0
    %2151 = vmatprep.subr.mxu0 0.0
    %2152 = vmatpush1.msra.mxu0 0.0
    %2153 = vmatprep.subr.mxu0 0.0
    %2154 = vmatpush1.msra.mxu0 0.0
    %2155 = vmatprep.subr.mxu0 0.0
    %2156 = vmatpush1.msra.mxu0 0.0
    %2157 = vmatprep.mubr.f32.mxu0 0.0
    %2158 = vmatmul.mubr.f32.gmra.mrb[0].mxu0 %v2091
    %v2159 = vpop.f32.mrb[0].mxu0
    %v2160 = vadd.f32 0.0, %v2159
    %v2161 = vpop.f32.mrb[0].mxu0
    %2162 = vdwg.mxu0
    %2163 = vrot.lane.b32.xlu0 %v1827, 112
    %v2164 = vpop.permute.xlu0 %2163
    %2165 = vrot.lane.b32.xlu0 %v1827, 48
    %v2166 = vpop.permute.xlu0 %2165
    %v2167 = vsel %vm1840, %v2164, 0
    %v2169 = vsel %vm1840, %v2166, 0
    %2171 = vmatprep.subr.mxu0 0.0
    %2172 = vmatpush1.xpose.msra.mxu0 %v2169
    %2173 = vmatprep.subr.mxu0 0.0
    %2174 = vmatpush1.xpose.msra.mxu0 0.0
    %2175 = vmatprep.subr.mxu0 0.0
    %2176 = vmatpush1.xpose.msra.mxu0 0.0
    %2177 = vmatprep.subr.mxu0 0.0
    %2178 = vmatpush1.xpose.msra.mxu0 0.0
    %2179 = vmatprep.subr.mxu0 0.0
    %2180 = vmatpush1.xpose.msra.mxu0 0.0
    %2181 = vmatprep.subr.mxu0 0.0
    %2182 = vmatpush1.xpose.msra.mxu0 0.0
    %2183 = vmatprep.subr.mxu0 0.0
    %2184 = vmatpush1.xpose.msra.mxu0 0.0
    %2185 = vmatprep.subr.mxu0 0.0
    %2186 = vmatpush1.xpose.msra.mxu0 0.0
    %2187 = vmatprep.subr.mxu0 0.0
    %2188 = vmatpush1.xpose.msra.mxu0 0.0
    %2189 = vmatprep.subr.mxu0 0.0
    %2190 = vmatpush1.xpose.msra.mxu0 0.0
    %2191 = vmatprep.subr.mxu0 0.0
    %2192 = vmatpush1.xpose.msra.mxu0 0.0
    %2193 = vmatprep.subr.mxu0 0.0
    %2194 = vmatpush1.xpose.msra.mxu0 0.0
    %2195 = vmatprep.subr.mxu0 0.0
    %2196 = vmatpush1.xpose.msra.mxu0 0.0
    %2197 = vmatprep.subr.mxu0 0.0
    %2198 = vmatpush1.xpose.msra.mxu0 0.0
    %2199 = vmatprep.subr.mxu0 0.0
    %2200 = vmatpush1.xpose.msra.mxu0 0.0
    %2201 = vmatprep.subr.mxu0 0.0
    %2202 = vmatpush1.xpose.msra.mxu0 0.0
    %2203 = vmatprep.subr.mxu0 0.0
    %2204 = vmatpush1.xpose.msra.mxu0 0.0
    %2205 = vmatprep.subr.mxu0 0.0
    %2206 = vmatpush1.xpose.msra.mxu0 0.0
    %2207 = vmatprep.subr.mxu0 0.0
    %2208 = vmatpush1.xpose.msra.mxu0 0.0
    %2209 = vmatprep.subr.mxu0 0.0
    %2210 = vmatpush1.xpose.msra.mxu0 0.0
    %2211 = vmatprep.subr.mxu0 0.0
    %2212 = vmatpush1.xpose.msra.mxu0 0.0
    %2213 = vmatprep.subr.mxu0 0.0
    %2214 = vmatpush1.xpose.msra.mxu0 0.0
    %2215 = vmatprep.subr.mxu0 0.0
    %2216 = vmatpush1.xpose.msra.mxu0 0.0
    %2217 = vmatprep.subr.mxu0 0.0
    %2218 = vmatpush1.xpose.msra.mxu0 0.0
    %2219 = vmatprep.subr.mxu0 0.0
    %2220 = vmatpush1.xpose.msra.mxu0 0.0
    %2221 = vmatprep.subr.mxu0 0.0
    %2222 = vmatpush1.xpose.msra.mxu0 0.0
    %2223 = vmatprep.subr.mxu0 0.0
    %2224 = vmatpush1.xpose.msra.mxu0 0.0
    %2225 = vmatprep.subr.mxu0 0.0
    %2226 = vmatpush1.xpose.msra.mxu0 0.0
    %2227 = vmatprep.subr.mxu0 0.0
    %2228 = vmatpush1.xpose.msra.mxu0 0.0
    %2229 = vmatprep.subr.mxu0 0.0
    %2230 = vmatpush1.xpose.msra.mxu0 0.0
    %2231 = vmatprep.subr.mxu0 0.0
    %2232 = vmatpush1.xpose.msra.mxu0 0.0
    %2233 = vmatprep.subr.mxu0 0.0
    %2234 = vmatpush1.xpose.msra.mxu0 0.0
    %2235 = vmatprep.mubr.f32.mxu0 0.0
    %2236 = vmatmul.mubr.f32.gmra.mrb[0].mxu0 %v2167
    %v2237 = vpop.f32.mrb[0].mxu0
    %v2238 = vadd.f32 0.0, %v2237
    %v2239 = vpop.f32.mrb[0].mxu0
    %2240 = vdwg.mxu0
    %2241 = vrot.lane.b32.xlu0 %v1833, 112
    %v2242 = vpop.permute.xlu0 %2241
    %2243 = vrot.lane.b32.xlu0 %v1833, 48
    %v2244 = vpop.permute.xlu0 %2243
    %v2245 = vsel %vm1840, %v2242, 0
    %v2247 = vsel %vm1840, %v2244, 0
    %2249 = vmatprep.subr.mxu0 0.0
    %2250 = vmatpush1.xpose.msra.mxu0 %v2247
    %2251 = vmatprep.subr.mxu0 0.0
    %2252 = vmatpush1.xpose.msra.mxu0 0.0
    %2253 = vmatprep.subr.mxu0 0.0
    %2254 = vmatpush1.xpose.msra.mxu0 0.0
    %2255 = vmatprep.subr.mxu0 0.0
    %2256 = vmatpush1.xpose.msra.mxu0 0.0
    %2257 = vmatprep.subr.mxu0 0.0
    %2258 = vmatpush1.xpose.msra.mxu0 0.0
    %2259 = vmatprep.subr.mxu0 0.0
    %2260 = vmatpush1.xpose.msra.mxu0 0.0
    %2261 = vmatprep.subr.mxu0 0.0
    %2262 = vmatpush1.xpose.msra.mxu0 0.0
    %2263 = vmatprep.subr.mxu0 0.0
    %2264 = vmatpush1.xpose.msra.mxu0 0.0
    %2265 = vmatprep.subr.mxu0 0.0
    %2266 = vmatpush1.xpose.msra.mxu0 0.0
    %2267 = vmatprep.subr.mxu0 0.0
    %2268 = vmatpush1.xpose.msra.mxu0 0.0
    %2269 = vmatprep.subr.mxu0 0.0
    %2270 = vmatpush1.xpose.msra.mxu0 0.0
    %2271 = vmatprep.subr.mxu0 0.0
    %2272 = vmatpush1.xpose.msra.mxu0 0.0
    %2273 = vmatprep.subr.mxu0 0.0
    %2274 = vmatpush1.xpose.msra.mxu0 0.0
    %2275 = vmatprep.subr.mxu0 0.0
    %2276 = vmatpush1.xpose.msra.mxu0 0.0
    %2277 = vmatprep.subr.mxu0 0.0
    %2278 = vmatpush1.xpose.msra.mxu0 0.0
    %2279 = vmatprep.subr.mxu0 0.0
    %2280 = vmatpush1.xpose.msra.mxu0 0.0
    %2281 = vmatprep.subr.mxu0 0.0
    %2282 = vmatpush1.xpose.msra.mxu0 0.0
    %2283 = vmatprep.subr.mxu0 0.0
    %2284 = vmatpush1.xpose.msra.mxu0 0.0
    %2285 = vmatprep.subr.mxu0 0.0
    %2286 = vmatpush1.xpose.msra.mxu0 0.0
    %2287 = vmatprep.subr.mxu0 0.0
    %2288 = vmatpush1.xpose.msra.mxu0 0.0
    %2289 = vmatprep.subr.mxu0 0.0
    %2290 = vmatpush1.xpose.msra.mxu0 0.0
    %2291 = vmatprep.subr.mxu0 0.0
    %2292 = vmatpush1.xpose.msra.mxu0 0.0
    %2293 = vmatprep.subr.mxu0 0.0
    %2294 = vmatpush1.xpose.msra.mxu0 0.0
    %2295 = vmatprep.subr.mxu0 0.0
    %2296 = vmatpush1.xpose.msra.mxu0 0.0
    %2297 = vmatprep.subr.mxu0 0.0
    %2298 = vmatpush1.xpose.msra.mxu0 0.0
    %2299 = vmatprep.subr.mxu0 0.0
    %2300 = vmatpush1.xpose.msra.mxu0 0.0
    %2301 = vmatprep.subr.mxu0 0.0
    %2302 = vmatpush1.xpose.msra.mxu0 0.0
    %2303 = vmatprep.subr.mxu0 0.0
    %2304 = vmatpush1.xpose.msra.mxu0 0.0
    %2305 = vmatprep.subr.mxu0 0.0
    %2306 = vmatpush1.xpose.msra.mxu0 0.0
    %2307 = vmatprep.subr.mxu0 0.0
    %2308 = vmatpush1.xpose.msra.mxu0 0.0
    %2309 = vmatprep.subr.mxu0 0.0
    %2310 = vmatpush1.xpose.msra.mxu0 0.0
    %2311 = vmatprep.subr.mxu0 0.0
    %2312 = vmatpush1.xpose.msra.mxu0 0.0
    %2313 = vmatprep.mubr.f32.mxu0 0.0
    %2314 = vmatmul.mubr.f32.gmra.mrb[0].mxu0 %v2245
    %v2315 = vpop.f32.mrb[0].mxu0
    %v2316 = vadd.f32 0.0, %v2315
    %v2317 = vpop.f32.mrb[0].mxu0
    %2318 = vdwg.mxu0
    %v2319 = vmul.f32 %v2238, 0.25
    %v2320 = vmul.f32 %v2316, 0.25
    %v2321 = vsel %vm1994, %v2319, -inf
    %2322 = vmax.xlane.f32.xlu0 %v2321
    %v2323 = vpop.xlane.xlu0 %2322
    %v2324 = vsel %vm1994, %v2320, -inf
    %2325 = vmax.xlane.f32.xlu0 %v2324
    %v2326 = vpop.xlane.xlu0 %2325
    %v2327 = vsub.f32 %v2319, %v2323
    %v2328 = vsub.f32 %v2320, %v2326
    %v2329 = vmul.f32 %v2327, 1.442695
    %v2330 = vpow.pop %v2329
    %v2331 = vmul.f32 %v2328, 1.442695
    %v2332 = vpow.pop %v2331
    %v2333 = vsel %vm1994, %v2330, 0.0
    %2334 = vadd.xlane.f32.xlu0 %v2333
    %v2335 = vpop.xlane.xlu0 %2334
    %v2336 = vsel %vm1994, %v2332, 0.0
    %2337 = vadd.xlane.f32.xlu0 %v2336
    %v2338 = vpop.xlane.xlu0 %2337
    %v2339 = vrcp.pop %v2335
    %v2340 = vrcp.pop %v2338
    %v2341 = vmul.f32 %v2330, %v2339
    %v2342 = vmul.f32 %v2332, %v2340
    %2344 = vrot.lane.b32.xlu0 %v1829, 112
    %v2345 = vpop.permute.xlu0 %2344
    %v2348 = vsel %vm1994, %v2341, 0
    %2350 = vmatprep.subr.mxu0 0.0
    %2351 = vmatpush1.msra.mxu0 %v2345
    %2352 = vmatprep.subr.mxu0 0.0
    %2353 = vmatpush1.msra.mxu0 0.0
    %2354 = vmatprep.subr.mxu0 0.0
    %2355 = vmatpush1.msra.mxu0 0.0
    %2356 = vmatprep.subr.mxu0 0.0
    %2357 = vmatpush1.msra.mxu0 0.0
    %2358 = vmatprep.subr.mxu0 0.0
    %2359 = vmatpush1.msra.mxu0 0.0
    %2360 = vmatprep.subr.mxu0 0.0
    %2361 = vmatpush1.msra.mxu0 0.0
    %2362 = vmatprep.subr.mxu0 0.0
    %2363 = vmatpush1.msra.mxu0 0.0
    %2364 = vmatprep.subr.mxu0 0.0
    %2365 = vmatpush1.msra.mxu0 0.0
    %2366 = vmatprep.subr.mxu0 0.0
    %2367 = vmatpush1.msra.mxu0 0.0
    %2368 = vmatprep.subr.mxu0 0.0
    %2369 = vmatpush1.msra.mxu0 0.0
    %2370 = vmatprep.subr.mxu0 0.0
    %2371 = vmatpush1.msra.mxu0 0.0
    %2372 = vmatprep.subr.mxu0 0.0
    %2373 = vmatpush1.msra.mxu0 0.0
    %2374 = vmatprep.subr.mxu0 0.0
    %2375 = vmatpush1.msra.mxu0 0.0
    %2376 = vmatprep.subr.mxu0 0.0
    %2377 = vmatpush1.msra.mxu0 0.0
    %2378 = vmatprep.subr.mxu0 0.0
    %2379 = vmatpush1.msra.mxu0 0.0
    %2380 = vmatprep.subr.mxu0 0.0
    %2381 = vmatpush1.msra.mxu0 0.0
    %2382 = vmatprep.subr.mxu0 0.0
    %2383 = vmatpush1.msra.mxu0 0.0
    %2384 = vmatprep.subr.mxu0 0.0
    %2385 = vmatpush1.msra.mxu0 0.0
    %2386 = vmatprep.subr.mxu0 0.0
    %2387 = vmatpush1.msra.mxu0 0.0
    %2388 = vmatprep.subr.mxu0 0.0
    %2389 = vmatpush1.msra.mxu0 0.0
    %2390 = vmatprep.subr.mxu0 0.0
    %2391 = vmatpush1.msra.mxu0 0.0
    %2392 = vmatprep.subr.mxu0 0.0
    %2393 = vmatpush1.msra.mxu0 0.0
    %2394 = vmatprep.subr.mxu0 0.0
    %2395 = vmatpush1.msra.mxu0 0.0
    %2396 = vmatprep.subr.mxu0 0.0
    %2397 = vmatpush1.msra.mxu0 0.0
    %2398 = vmatprep.subr.mxu0 0.0
    %2399 = vmatpush1.msra.mxu0 0.0
    %2400 = vmatprep.subr.mxu0 0.0
    %2401 = vmatpush1.msra.mxu0 0.0
    %2402 = vmatprep.subr.mxu0 0.0
    %2403 = vmatpush1.msra.mxu0 0.0
    %2404 = vmatprep.subr.mxu0 0.0
    %2405 = vmatpush1.msra.mxu0 0.0
    %2406 = vmatprep.subr.mxu0 0.0
    %2407 = vmatpush1.msra.mxu0 0.0
    %2408 = vmatprep.subr.mxu0 0.0
    %2409 = vmatpush1.msra.mxu0 0.0
    %2410 = vmatprep.subr.mxu0 0.0
    %2411 = vmatpush1.msra.mxu0 0.0
    %2412 = vmatprep.subr.mxu0 0.0
    %2413 = vmatpush1.msra.mxu0 0.0
    %2414 = vmatprep.mubr.f32.mxu0 0.0
    %2415 = vmatmul.mubr.f32.gmra.mrb[0].mxu0 %v2348
    %v2416 = vpop.f32.mrb[0].mxu0
    %v2417 = vadd.f32 0.0, %v2416
    %v2418 = vpop.f32.mrb[0].mxu0
    %2419 = vdwg.mxu0
    %2421 = vrot.lane.b32.xlu0 %v1835, 112
    %v2422 = vpop.permute.xlu0 %2421
    %v2425 = vsel %vm1994, %v2342, 0
    %2427 = vmatprep.subr.mxu0 0.0
    %2428 = vmatpush1.msra.mxu0 %v2422
    %2429 = vmatprep.subr.mxu0 0.0
    %2430 = vmatpush1.msra.mxu0 0.0
    %2431 = vmatprep.subr.mxu0 0.0
    %2432 = vmatpush1.msra.mxu0 0.0
    %2433 = vmatprep.subr.mxu0 0.0
    %2434 = vmatpush1.msra.mxu0 0.0
    %2435 = vmatprep.subr.mxu0 0.0
    %2436 = vmatpush1.msra.mxu0 0.0
    %2437 = vmatprep.subr.mxu0 0.0
    %2438 = vmatpush1.msra.mxu0 0.0
    %2439 = vmatprep.subr.mxu0 0.0
    %2440 = vmatpush1.msra.mxu0 0.0
    %2441 = vmatprep.subr.mxu0 0.0
    %2442 = vmatpush1.msra.mxu0 0.0
    %2443 = vmatprep.subr.mxu0 0.0
    %2444 = vmatpush1.msra.mxu0 0.0
    %2445 = vmatprep.subr.mxu0 0.0
    %2446 = vmatpush1.msra.mxu0 0.0
    %2447 = vmatprep.subr.mxu0 0.0
    %2448 = vmatpush1.msra.mxu0 0.0
    %2449 = vmatprep.subr.mxu0 0.0
    %2450 = vmatpush1.msra.mxu0 0.0
    %2451 = vmatprep.subr.mxu0 0.0
    %2452 = vmatpush1.msra.mxu0 0.0
    %2453 = vmatprep.subr.mxu0 0.0
    %2454 = vmatpush1.msra.mxu0 0.0
    %2455 = vmatprep.subr.mxu0 0.0
    %2456 = vmatpush1.msra.mxu0 0.0
    %2457 = vmatprep.subr.mxu0 0.0
    %2458 = vmatpush1.msra.mxu0 0.0
    %2459 = vmatprep.subr.mxu0 0.0
    %2460 = vmatpush1.msra.mxu0 0.0
    %2461 = vmatprep.subr.mxu0 0.0
    %2462 = vmatpush1.msra.mxu0 0.0
    %2463 = vmatprep.subr.mxu0 0.0
    %2464 = vmatpush1.msra.mxu0 0.0
    %2465 = vmatprep.subr.mxu0 0.0
    %2466 = vmatpush1.msra.mxu0 0.0
    %2467 = vmatprep.subr.mxu0 0.0
    %2468 = vmatpush1.msra.mxu0 0.0
    %2469 = vmatprep.subr.mxu0 0.0
    %2470 = vmatpush1.msra.mxu0 0.0
    %2471 = vmatprep.subr.mxu0 0.0
    %2472 = vmatpush1.msra.mxu0 0.0
    %2473 = vmatprep.subr.mxu0 0.0
    %2474 = vmatpush1.msra.mxu0 0.0
    %2475 = vmatprep.subr.mxu0 0.0
    %2476 = vmatpush1.msra.mxu0 0.0
    %2477 = vmatprep.subr.mxu0 0.0
    %2478 = vmatpush1.msra.mxu0 0.0
    %2479 = vmatprep.subr.mxu0 0.0
    %2480 = vmatpush1.msra.mxu0 0.0
    %2481 = vmatprep.subr.mxu0 0.0
    %2482 = vmatpush1.msra.mxu0 0.0
    %2483 = vmatprep.subr.mxu0 0.0
    %2484 = vmatpush1.msra.mxu0 0.0
    %2485 = vmatprep.subr.mxu0 0.0
    %2486 = vmatpush1.msra.mxu0 0.0
    %2487 = vmatprep.subr.mxu0 0.0
    %2488 = vmatpush1.msra.mxu0 0.0
    %2489 = vmatprep.subr.mxu0 0.0
    %2490 = vmatpush1.msra.mxu0 0.0
    %2491 = vmatprep.mubr.f32.mxu0 0.0
    %2492 = vmatmul.mubr.f32.gmra.mrb[0].mxu0 %v2425
    %v2493 = vpop.f32.mrb[0].mxu0
    %v2494 = vadd.f32 0.0, %v2493
    %v2495 = vpop.f32.mrb[0].mxu0
    %2496 = vdwg.mxu0
    %2497 = vrot.lane.b32.xlu0 %v1827, 96
    %v2498 = vpop.permute.xlu0 %2497
    %2499 = vrot.lane.b32.xlu0 %v1827, 32
    %v2500 = vpop.permute.xlu0 %2499
    %v2501 = vsel %vm1840, %v2498, 0
    %v2503 = vsel %vm1840, %v2500, 0
    %2505 = vmatprep.subr.mxu0 0.0
    %2506 = vmatpush1.xpose.msra.mxu0 %v2503
    %2507 = vmatprep.subr.mxu0 0.0
    %2508 = vmatpush1.xpose.msra.mxu0 0.0
    %2509 = vmatprep.subr.mxu0 0.0
    %2510 = vmatpush1.xpose.msra.mxu0 0.0
    %2511 = vmatprep.subr.mxu0 0.0
    %2512 = vmatpush1.xpose.msra.mxu0 0.0
    %2513 = vmatprep.subr.mxu0 0.0
    %2514 = vmatpush1.xpose.msra.mxu0 0.0
    %2515 = vmatprep.subr.mxu0 0.0
    %2516 = vmatpush1.xpose.msra.mxu0 0.0
    %2517 = vmatprep.subr.mxu0 0.0
    %2518 = vmatpush1.xpose.msra.mxu0 0.0
    %2519 = vmatprep.subr.mxu0 0.0
    %2520 = vmatpush1.xpose.msra.mxu0 0.0
    %2521 = vmatprep.subr.mxu0 0.0
    %2522 = vmatpush1.xpose.msra.mxu0 0.0
    %2523 = vmatprep.subr.mxu0 0.0
    %2524 = vmatpush1.xpose.msra.mxu0 0.0
    %2525 = vmatprep.subr.mxu0 0.0
    %2526 = vmatpush1.xpose.msra.mxu0 0.0
    %2527 = vmatprep.subr.mxu0 0.0
    %2528 = vmatpush1.xpose.msra.mxu0 0.0
    %2529 = vmatprep.subr.mxu0 0.0
    %2530 = vmatpush1.xpose.msra.mxu0 0.0
    %2531 = vmatprep.subr.mxu0 0.0
    %2532 = vmatpush1.xpose.msra.mxu0 0.0
    %2533 = vmatprep.subr.mxu0 0.0
    %2534 = vmatpush1.xpose.msra.mxu0 0.0
    %2535 = vmatprep.subr.mxu0 0.0
    %2536 = vmatpush1.xpose.msra.mxu0 0.0
    %2537 = vmatprep.subr.mxu0 0.0
    %2538 = vmatpush1.xpose.msra.mxu0 0.0
    %2539 = vmatprep.subr.mxu0 0.0
    %2540 = vmatpush1.xpose.msra.mxu0 0.0
    %2541 = vmatprep.subr.mxu0 0.0
    %2542 = vmatpush1.xpose.msra.mxu0 0.0
    %2543 = vmatprep.subr.mxu0 0.0
    %2544 = vmatpush1.xpose.msra.mxu0 0.0
    %2545 = vmatprep.subr.mxu0 0.0
    %2546 = vmatpush1.xpose.msra.mxu0 0.0
    %2547 = vmatprep.subr.mxu0 0.0
    %2548 = vmatpush1.xpose.msra.mxu0 0.0
    %2549 = vmatprep.subr.mxu0 0.0
    %2550 = vmatpush1.xpose.msra.mxu0 0.0
    %2551 = vmatprep.subr.mxu0 0.0
    %2552 = vmatpush1.xpose.msra.mxu0 0.0
    %2553 = vmatprep.subr.mxu0 0.0
    %2554 = vmatpush1.xpose.msra.mxu0 0.0
    %2555 = vmatprep.subr.mxu0 0.0
    %2556 = vmatpush1.xpose.msra.mxu0 0.0
    %2557 = vmatprep.subr.mxu0 0.0
    %2558 = vmatpush1.xpose.msra.mxu0 0.0
    %2559 = vmatprep.subr.mxu0 0.0
    %2560 = vmatpush1.xpose.msra.mxu0 0.0
    %2561 = vmatprep.subr.mxu0 0.0
    %2562 = vmatpush1.xpose.msra.mxu0 0.0
    %2563 = vmatprep.subr.mxu0 0.0
    %2564 = vmatpush1.xpose.msra.mxu0 0.0
    %2565 = vmatprep.subr.mxu0 0.0
    %2566 = vmatpush1.xpose.msra.mxu0 0.0
    %2567 = vmatprep.subr.mxu0 0.0
    %2568 = vmatpush1.xpose.msra.mxu0 0.0
    %2569 = vmatprep.mubr.f32.mxu0 0.0
    %2570 = vmatmul.mubr.f32.gmra.mrb[0].mxu0 %v2501
    %v2571 = vpop.f32.mrb[0].mxu0
    %v2572 = vadd.f32 0.0, %v2571
    %v2573 = vpop.f32.mrb[0].mxu0
    %2574 = vdwg.mxu0
    %2575 = vrot.lane.b32.xlu0 %v1833, 96
    %v2576 = vpop.permute.xlu0 %2575
    %2577 = vrot.lane.b32.xlu0 %v1833, 32
    %v2578 = vpop.permute.xlu0 %2577
    %v2579 = vsel %vm1840, %v2576, 0
    %v2581 = vsel %vm1840, %v2578, 0
    %2583 = vmatprep.subr.mxu0 0.0
    %2584 = vmatpush1.xpose.msra.mxu0 %v2581
    %2585 = vmatprep.subr.mxu0 0.0
    %2586 = vmatpush1.xpose.msra.mxu0 0.0
    %2587 = vmatprep.subr.mxu0 0.0
    %2588 = vmatpush1.xpose.msra.mxu0 0.0
    %2589 = vmatprep.subr.mxu0 0.0
    %2590 = vmatpush1.xpose.msra.mxu0 0.0
    %2591 = vmatprep.subr.mxu0 0.0
    %2592 = vmatpush1.xpose.msra.mxu0 0.0
    %2593 = vmatprep.subr.mxu0 0.0
    %2594 = vmatpush1.xpose.msra.mxu0 0.0
    %2595 = vmatprep.subr.mxu0 0.0
    %2596 = vmatpush1.xpose.msra.mxu0 0.0
    %2597 = vmatprep.subr.mxu0 0.0
    %2598 = vmatpush1.xpose.msra.mxu0 0.0
    %2599 = vmatprep.subr.mxu0 0.0
    %2600 = vmatpush1.xpose.msra.mxu0 0.0
    %2601 = vmatprep.subr.mxu0 0.0
    %2602 = vmatpush1.xpose.msra.mxu0 0.0
    %2603 = vmatprep.subr.mxu0 0.0
    %2604 = vmatpush1.xpose.msra.mxu0 0.0
    %2605 = vmatprep.subr.mxu0 0.0
    %2606 = vmatpush1.xpose.msra.mxu0 0.0
    %2607 = vmatprep.subr.mxu0 0.0
    %2608 = vmatpush1.xpose.msra.mxu0 0.0
    %2609 = vmatprep.subr.mxu0 0.0
    %2610 = vmatpush1.xpose.msra.mxu0 0.0
    %2611 = vmatprep.subr.mxu0 0.0
    %2612 = vmatpush1.xpose.msra.mxu0 0.0
    %2613 = vmatprep.subr.mxu0 0.0
    %2614 = vmatpush1.xpose.msra.mxu0 0.0
    %2615 = vmatprep.subr.mxu0 0.0
    %2616 = vmatpush1.xpose.msra.mxu0 0.0
    %2617 = vmatprep.subr.mxu0 0.0
    %2618 = vmatpush1.xpose.msra.mxu0 0.0
    %2619 = vmatprep.subr.mxu0 0.0
    %2620 = vmatpush1.xpose.msra.mxu0 0.0
    %2621 = vmatprep.subr.mxu0 0.0
    %2622 = vmatpush1.xpose.msra.mxu0 0.0
    %2623 = vmatprep.subr.mxu0 0.0
    %2624 = vmatpush1.xpose.msra.mxu0 0.0
    %2625 = vmatprep.subr.mxu0 0.0
    %2626 = vmatpush1.xpose.msra.mxu0 0.0
    %2627 = vmatprep.subr.mxu0 0.0
    %2628 = vmatpush1.xpose.msra.mxu0 0.0
    %2629 = vmatprep.subr.mxu0 0.0
    %2630 = vmatpush1.xpose.msra.mxu0 0.0
    %2631 = vmatprep.subr.mxu0 0.0
    %2632 = vmatpush1.xpose.msra.mxu0 0.0
    %2633 = vmatprep.subr.mxu0 0.0
    %2634 = vmatpush1.xpose.msra.mxu0 0.0
    %2635 = vmatprep.subr.mxu0 0.0
    %2636 = vmatpush1.xpose.msra.mxu0 0.0
    %2637 = vmatprep.subr.mxu0 0.0
    %2638 = vmatpush1.xpose.msra.mxu0 0.0
    %2639 = vmatprep.subr.mxu0 0.0
    %2640 = vmatpush1.xpose.msra.mxu0 0.0
    %2641 = vmatprep.subr.mxu0 0.0
    %2642 = vmatpush1.xpose.msra.mxu0 0.0
    %2643 = vmatprep.subr.mxu0 0.0
    %2644 = vmatpush1.xpose.msra.mxu0 0.0
    %2645 = vmatprep.subr.mxu0 0.0
    %2646 = vmatpush1.xpose.msra.mxu0 0.0
    %2647 = vmatprep.mubr.f32.mxu0 0.0
    %2648 = vmatmul.mubr.f32.gmra.mrb[0].mxu0 %v2579
    %v2649 = vpop.f32.mrb[0].mxu0
    %v2650 = vadd.f32 0.0, %v2649
    %v2651 = vpop.f32.mrb[0].mxu0
    %2652 = vdwg.mxu0
    %v2653 = vmul.f32 %v2572, 0.25
    %v2654 = vmul.f32 %v2650, 0.25
    %v2655 = vsel %vm1994, %v2653, -inf
    %2656 = vmax.xlane.f32.xlu0 %v2655
    %v2657 = vpop.xlane.xlu0 %2656
    %v2658 = vsel %vm1994, %v2654, -inf
    %2659 = vmax.xlane.f32.xlu0 %v2658
    %v2660 = vpop.xlane.xlu0 %2659
    %v2661 = vsub.f32 %v2653, %v2657
    %v2662 = vsub.f32 %v2654, %v2660
    %v2663 = vmul.f32 %v2661, 1.442695
    %v2664 = vpow.pop %v2663
    %v2665 = vmul.f32 %v2662, 1.442695
    %v2666 = vpow.pop %v2665
    %v2667 = vsel %vm1994, %v2664, 0.0
    %2668 = vadd.xlane.f32.xlu0 %v2667
    %v2669 = vpop.xlane.xlu0 %2668
    %v2670 = vsel %vm1994, %v2666, 0.0
    %2671 = vadd.xlane.f32.xlu0 %v2670
    %v2672 = vpop.xlane.xlu0 %2671
    %v2673 = vrcp.pop %v2669
    %v2674 = vrcp.pop %v2672
    %v2675 = vmul.f32 %v2664, %v2673
    %v2676 = vmul.f32 %v2666, %v2674
    %2677 = vrot.lane.b32.xlu0 %v1829, 96
    %v2678 = vpop.permute.xlu0 %2677
    %v2681 = vsel %vm1994, %v2675, 0
    %2683 = vmatprep.subr.mxu0 0.0
    %2684 = vmatpush1.msra.mxu0 %v2678
    %2685 = vmatprep.subr.mxu0 0.0
    %2686 = vmatpush1.msra.mxu0 0.0
    %2687 = vmatprep.subr.mxu0 0.0
    %2688 = vmatpush1.msra.mxu0 0.0
    %2689 = vmatprep.subr.mxu0 0.0
    %2690 = vmatpush1.msra.mxu0 0.0
    %2691 = vmatprep.subr.mxu0 0.0
    %2692 = vmatpush1.msra.mxu0 0.0
    %2693 = vmatprep.subr.mxu0 0.0
    %2694 = vmatpush1.msra.mxu0 0.0
    %2695 = vmatprep.subr.mxu0 0.0
    %2696 = vmatpush1.msra.mxu0 0.0
    %2697 = vmatprep.subr.mxu0 0.0
    %2698 = vmatpush1.msra.mxu0 0.0
    %2699 = vmatprep.subr.mxu0 0.0
    %2700 = vmatpush1.msra.mxu0 0.0
    %2701 = vmatprep.subr.mxu0 0.0
    %2702 = vmatpush1.msra.mxu0 0.0
    %2703 = vmatprep.subr.mxu0 0.0
    %2704 = vmatpush1.msra.mxu0 0.0
    %2705 = vmatprep.subr.mxu0 0.0
    %2706 = vmatpush1.msra.mxu0 0.0
    %2707 = vmatprep.subr.mxu0 0.0
    %2708 = vmatpush1.msra.mxu0 0.0
    %2709 = vmatprep.subr.mxu0 0.0
    %2710 = vmatpush1.msra.mxu0 0.0
    %2711 = vmatprep.subr.mxu0 0.0
    %2712 = vmatpush1.msra.mxu0 0.0
    %2713 = vmatprep.subr.mxu0 0.0
    %2714 = vmatpush1.msra.mxu0 0.0
    %2715 = vmatprep.subr.mxu0 0.0
    %2716 = vmatpush1.msra.mxu0 0.0
    %2717 = vmatprep.subr.mxu0 0.0
    %2718 = vmatpush1.msra.mxu0 0.0
    %2719 = vmatprep.subr.mxu0 0.0
    %2720 = vmatpush1.msra.mxu0 0.0
    %2721 = vmatprep.subr.mxu0 0.0
    %2722 = vmatpush1.msra.mxu0 0.0
    %2723 = vmatprep.subr.mxu0 0.0
    %2724 = vmatpush1.msra.mxu0 0.0
    %2725 = vmatprep.subr.mxu0 0.0
    %2726 = vmatpush1.msra.mxu0 0.0
    %2727 = vmatprep.subr.mxu0 0.0
    %2728 = vmatpush1.msra.mxu0 0.0
    %2729 = vmatprep.subr.mxu0 0.0
    %2730 = vmatpush1.msra.mxu0 0.0
    %2731 = vmatprep.subr.mxu0 0.0
    %2732 = vmatpush1.msra.mxu0 0.0
    %2733 = vmatprep.subr.mxu0 0.0
    %2734 = vmatpush1.msra.mxu0 0.0
    %2735 = vmatprep.subr.mxu0 0.0
    %2736 = vmatpush1.msra.mxu0 0.0
    %2737 = vmatprep.subr.mxu0 0.0
    %2738 = vmatpush1.msra.mxu0 0.0
    %2739 = vmatprep.subr.mxu0 0.0
    %2740 = vmatpush1.msra.mxu0 0.0
    %2741 = vmatprep.subr.mxu0 0.0
    %2742 = vmatpush1.msra.mxu0 0.0
    %2743 = vmatprep.subr.mxu0 0.0
    %2744 = vmatpush1.msra.mxu0 0.0
    %2745 = vmatprep.subr.mxu0 0.0
    %2746 = vmatpush1.msra.mxu0 0.0
    %2747 = vmatprep.mubr.f32.mxu0 0.0
    %2748 = vmatmul.mubr.f32.gmra.mrb[0].mxu0 %v2681
    %v2749 = vpop.f32.mrb[0].mxu0
    %v2750 = vadd.f32 0.0, %v2749
    %v2751 = vpop.f32.mrb[0].mxu0
    %2752 = vdwg.mxu0
    %2753 = vrot.lane.b32.xlu0 %v1835, 96
    %v2754 = vpop.permute.xlu0 %2753
    %v2757 = vsel %vm1994, %v2676, 0
    %2759 = vmatprep.subr.mxu0 0.0
    %2760 = vmatpush1.msra.mxu0 %v2754
    %2761 = vmatprep.subr.mxu0 0.0
    %2762 = vmatpush1.msra.mxu0 0.0
    %2763 = vmatprep.subr.mxu0 0.0
    %2764 = vmatpush1.msra.mxu0 0.0
    %2765 = vmatprep.subr.mxu0 0.0
    %2766 = vmatpush1.msra.mxu0 0.0
    %2767 = vmatprep.subr.mxu0 0.0
    %2768 = vmatpush1.msra.mxu0 0.0
    %2769 = vmatprep.subr.mxu0 0.0
    %2770 = vmatpush1.msra.mxu0 0.0
    %2771 = vmatprep.subr.mxu0 0.0
    %2772 = vmatpush1.msra.mxu0 0.0
    %2773 = vmatprep.subr.mxu0 0.0
    %2774 = vmatpush1.msra.mxu0 0.0
    %2775 = vmatprep.subr.mxu0 0.0
    %2776 = vmatpush1.msra.mxu0 0.0
    %2777 = vmatprep.subr.mxu0 0.0
    %2778 = vmatpush1.msra.mxu0 0.0
    %2779 = vmatprep.subr.mxu0 0.0
    %2780 = vmatpush1.msra.mxu0 0.0
    %2781 = vmatprep.subr.mxu0 0.0
    %2782 = vmatpush1.msra.mxu0 0.0
    %2783 = vmatprep.subr.mxu0 0.0
    %2784 = vmatpush1.msra.mxu0 0.0
    %2785 = vmatprep.subr.mxu0 0.0
    %2786 = vmatpush1.msra.mxu0 0.0
    %2787 = vmatprep.subr.mxu0 0.0
    %2788 = vmatpush1.msra.mxu0 0.0
    %2789 = vmatprep.subr.mxu0 0.0
    %2790 = vmatpush1.msra.mxu0 0.0
    %2791 = vmatprep.subr.mxu0 0.0
    %2792 = vmatpush1.msra.mxu0 0.0
    %2793 = vmatprep.subr.mxu0 0.0
    %2794 = vmatpush1.msra.mxu0 0.0
    %2795 = vmatprep.subr.mxu0 0.0
    %2796 = vmatpush1.msra.mxu0 0.0
    %2797 = vmatprep.subr.mxu0 0.0
    %2798 = vmatpush1.msra.mxu0 0.0
    %2799 = vmatprep.subr.mxu0 0.0
    %2800 = vmatpush1.msra.mxu0 0.0
    %2801 = vmatprep.subr.mxu0 0.0
    %2802 = vmatpush1.msra.mxu0 0.0
    %2803 = vmatprep.subr.mxu0 0.0
    %2804 = vmatpush1.msra.mxu0 0.0
    %2805 = vmatprep.subr.mxu0 0.0
    %2806 = vmatpush1.msra.mxu0 0.0
    %2807 = vmatprep.subr.mxu0 0.0
    %2808 = vmatpush1.msra.mxu0 0.0
    %2809 = vmatprep.subr.mxu0 0.0
    %2810 = vmatpush1.msra.mxu0 0.0
    %2811 = vmatprep.subr.mxu0 0.0
    %2812 = vmatpush1.msra.mxu0 0.0
    %2813 = vmatprep.subr.mxu0 0.0
    %2814 = vmatpush1.msra.mxu0 0.0
    %2815 = vmatprep.subr.mxu0 0.0
    %2816 = vmatpush1.msra.mxu0 0.0
    %2817 = vmatprep.subr.mxu0 0.0
    %2818 = vmatpush1.msra.mxu0 0.0
    %2819 = vmatprep.subr.mxu0 0.0
    %2820 = vmatpush1.msra.mxu0 0.0
    %2821 = vmatprep.subr.mxu0 0.0
    %2822 = vmatpush1.msra.mxu0 0.0
    %2823 = vmatprep.mubr.f32.mxu0 0.0
    %2824 = vmatmul.mubr.f32.gmra.mrb[0].mxu0 %v2757
    %v2825 = vpop.f32.mrb[0].mxu0
    %v2826 = vadd.f32 0.0, %v2825
    %v2827 = vpop.f32.mrb[0].mxu0
    %2828 = vdwg.mxu0
    %2829 = vrot.lane.b32.xlu0 %v1827, 80
    %v2830 = vpop.permute.xlu0 %2829
    %2831 = vrot.lane.b32.xlu0 %v1827, 16
    %v2832 = vpop.permute.xlu0 %2831
    %v2833 = vsel %vm1840, %v2830, 0
    %v2835 = vsel %vm1840, %v2832, 0
    %2837 = vmatprep.subr.mxu0 0.0
    %2838 = vmatpush1.xpose.msra.mxu0 %v2835
    %2839 = vmatprep.subr.mxu0 0.0
    %2840 = vmatpush1.xpose.msra.mxu0 0.0
    %2841 = vmatprep.subr.mxu0 0.0
    %2842 = vmatpush1.xpose.msra.mxu0 0.0
    %2843 = vmatprep.subr.mxu0 0.0
    %2844 = vmatpush1.xpose.msra.mxu0 0.0
    %2845 = vmatprep.subr.mxu0 0.0
    %2846 = vmatpush1.xpose.msra.mxu0 0.0
    %2847 = vmatprep.subr.mxu0 0.0
    %2848 = vmatpush1.xpose.msra.mxu0 0.0
    %2849 = vmatprep.subr.mxu0 0.0
    %2850 = vmatpush1.xpose.msra.mxu0 0.0
    %2851 = vmatprep.subr.mxu0 0.0
    %2852 = vmatpush1.xpose.msra.mxu0 0.0
    %2853 = vmatprep.subr.mxu0 0.0
    %2854 = vmatpush1.xpose.msra.mxu0 0.0
    %2855 = vmatprep.subr.mxu0 0.0
    %2856 = vmatpush1.xpose.msra.mxu0 0.0
    %2857 = vmatprep.subr.mxu0 0.0
    %2858 = vmatpush1.xpose.msra.mxu0 0.0
    %2859 = vmatprep.subr.mxu0 0.0
    %2860 = vmatpush1.xpose.msra.mxu0 0.0
    %2861 = vmatprep.subr.mxu0 0.0
    %2862 = vmatpush1.xpose.msra.mxu0 0.0
    %2863 = vmatprep.subr.mxu0 0.0
    %2864 = vmatpush1.xpose.msra.mxu0 0.0
    %2865 = vmatprep.subr.mxu0 0.0
    %2866 = vmatpush1.xpose.msra.mxu0 0.0
    %2867 = vmatprep.subr.mxu0 0.0
    %2868 = vmatpush1.xpose.msra.mxu0 0.0
    %2869 = vmatprep.subr.mxu0 0.0
    %2870 = vmatpush1.xpose.msra.mxu0 0.0
    %2871 = vmatprep.subr.mxu0 0.0
    %2872 = vmatpush1.xpose.msra.mxu0 0.0
    %2873 = vmatprep.subr.mxu0 0.0
    %2874 = vmatpush1.xpose.msra.mxu0 0.0
    %2875 = vmatprep.subr.mxu0 0.0
    %2876 = vmatpush1.xpose.msra.mxu0 0.0
    %2877 = vmatprep.subr.mxu0 0.0
    %2878 = vmatpush1.xpose.msra.mxu0 0.0
    %2879 = vmatprep.subr.mxu0 0.0
    %2880 = vmatpush1.xpose.msra.mxu0 0.0
    %2881 = vmatprep.subr.mxu0 0.0
    %2882 = vmatpush1.xpose.msra.mxu0 0.0
    %2883 = vmatprep.subr.mxu0 0.0
    %2884 = vmatpush1.xpose.msra.mxu0 0.0
    %2885 = vmatprep.subr.mxu0 0.0
    %2886 = vmatpush1.xpose.msra.mxu0 0.0
    %2887 = vmatprep.subr.mxu0 0.0
    %2888 = vmatpush1.xpose.msra.mxu0 0.0
    %2889 = vmatprep.subr.mxu0 0.0
    %2890 = vmatpush1.xpose.msra.mxu0 0.0
    %2891 = vmatprep.subr.mxu0 0.0
    %2892 = vmatpush1.xpose.msra.mxu0 0.0
    %2893 = vmatprep.subr.mxu0 0.0
    %2894 = vmatpush1.xpose.msra.mxu0 0.0
    %2895 = vmatprep.subr.mxu0 0.0
    %2896 = vmatpush1.xpose.msra.mxu0 0.0
    %2897 = vmatprep.subr.mxu0 0.0
    %2898 = vmatpush1.xpose.msra.mxu0 0.0
    %2899 = vmatprep.subr.mxu0 0.0
    %2900 = vmatpush1.xpose.msra.mxu0 0.0
    %2901 = vmatprep.mubr.f32.mxu0 0.0
    %2902 = vmatmul.mubr.f32.gmra.mrb[0].mxu0 %v2833
    %v2903 = vpop.f32.mrb[0].mxu0
    %v2904 = vadd.f32 0.0, %v2903
    %v2905 = vpop.f32.mrb[0].mxu0
    %2906 = vdwg.mxu0
    %2907 = vrot.lane.b32.xlu0 %v1833, 80
    %v2908 = vpop.permute.xlu0 %2907
    %2909 = vrot.lane.b32.xlu0 %v1833, 16
    %v2910 = vpop.permute.xlu0 %2909
    %v2911 = vsel %vm1840, %v2908, 0
    %v2913 = vsel %vm1840, %v2910, 0
    %2915 = vmatprep.subr.mxu0 0.0
    %2916 = vmatpush1.xpose.msra.mxu0 %v2913
    %2917 = vmatprep.subr.mxu0 0.0
    %2918 = vmatpush1.xpose.msra.mxu0 0.0
    %2919 = vmatprep.subr.mxu0 0.0
    %2920 = vmatpush1.xpose.msra.mxu0 0.0
    %2921 = vmatprep.subr.mxu0 0.0
    %2922 = vmatpush1.xpose.msra.mxu0 0.0
    %2923 = vmatprep.subr.mxu0 0.0
    %2924 = vmatpush1.xpose.msra.mxu0 0.0
    %2925 = vmatprep.subr.mxu0 0.0
    %2926 = vmatpush1.xpose.msra.mxu0 0.0
    %2927 = vmatprep.subr.mxu0 0.0
    %2928 = vmatpush1.xpose.msra.mxu0 0.0
    %2929 = vmatprep.subr.mxu0 0.0
    %2930 = vmatpush1.xpose.msra.mxu0 0.0
    %2931 = vmatprep.subr.mxu0 0.0
    %2932 = vmatpush1.xpose.msra.mxu0 0.0
    %2933 = vmatprep.subr.mxu0 0.0
    %2934 = vmatpush1.xpose.msra.mxu0 0.0
    %2935 = vmatprep.subr.mxu0 0.0
    %2936 = vmatpush1.xpose.msra.mxu0 0.0
    %2937 = vmatprep.subr.mxu0 0.0
    %2938 = vmatpush1.xpose.msra.mxu0 0.0
    %2939 = vmatprep.subr.mxu0 0.0
    %2940 = vmatpush1.xpose.msra.mxu0 0.0
    %2941 = vmatprep.subr.mxu0 0.0
    %2942 = vmatpush1.xpose.msra.mxu0 0.0
    %2943 = vmatprep.subr.mxu0 0.0
    %2944 = vmatpush1.xpose.msra.mxu0 0.0
    %2945 = vmatprep.subr.mxu0 0.0
    %2946 = vmatpush1.xpose.msra.mxu0 0.0
    %2947 = vmatprep.subr.mxu0 0.0
    %2948 = vmatpush1.xpose.msra.mxu0 0.0
    %2949 = vmatprep.subr.mxu0 0.0
    %2950 = vmatpush1.xpose.msra.mxu0 0.0
    %2951 = vmatprep.subr.mxu0 0.0
    %2952 = vmatpush1.xpose.msra.mxu0 0.0
    %2953 = vmatprep.subr.mxu0 0.0
    %2954 = vmatpush1.xpose.msra.mxu0 0.0
    %2955 = vmatprep.subr.mxu0 0.0
    %2956 = vmatpush1.xpose.msra.mxu0 0.0
    %2957 = vmatprep.subr.mxu0 0.0
    %2958 = vmatpush1.xpose.msra.mxu0 0.0
    %2959 = vmatprep.subr.mxu0 0.0
    %2960 = vmatpush1.xpose.msra.mxu0 0.0
    %2961 = vmatprep.subr.mxu0 0.0
    %2962 = vmatpush1.xpose.msra.mxu0 0.0
    %2963 = vmatprep.subr.mxu0 0.0
    %2964 = vmatpush1.xpose.msra.mxu0 0.0
    %2965 = vmatprep.subr.mxu0 0.0
    %2966 = vmatpush1.xpose.msra.mxu0 0.0
    %2967 = vmatprep.subr.mxu0 0.0
    %2968 = vmatpush1.xpose.msra.mxu0 0.0
    %2969 = vmatprep.subr.mxu0 0.0
    %2970 = vmatpush1.xpose.msra.mxu0 0.0
    %2971 = vmatprep.subr.mxu0 0.0
    %2972 = vmatpush1.xpose.msra.mxu0 0.0
    %2973 = vmatprep.subr.mxu0 0.0
    %2974 = vmatpush1.xpose.msra.mxu0 0.0
    %2975 = vmatprep.subr.mxu0 0.0
    %2976 = vmatpush1.xpose.msra.mxu0 0.0
    %2977 = vmatprep.subr.mxu0 0.0
    %2978 = vmatpush1.xpose.msra.mxu0 0.0
    %2979 = vmatprep.mubr.f32.mxu0 0.0
    %2980 = vmatmul.mubr.f32.gmra.mrb[0].mxu0 %v2911
    %v2981 = vpop.f32.mrb[0].mxu0
    %v2982 = vadd.f32 0.0, %v2981
    %v2983 = vpop.f32.mrb[0].mxu0
    %2984 = vdwg.mxu0
    %v2985 = vmul.f32 %v2904, 0.25
    %v2986 = vmul.f32 %v2982, 0.25
    %v2987 = vsel %vm1994, %v2985, -inf
    %2988 = vmax.xlane.f32.xlu0 %v2987
    %v2989 = vpop.xlane.xlu0 %2988
    %v2990 = vsel %vm1994, %v2986, -inf
    %2991 = vmax.xlane.f32.xlu0 %v2990
    %v2992 = vpop.xlane.xlu0 %2991
    %v2993 = vsub.f32 %v2985, %v2989
    %v2994 = vsub.f32 %v2986, %v2992
    %v2995 = vmul.f32 %v2993, 1.442695
    %v2996 = vpow.pop %v2995
    %v2997 = vmul.f32 %v2994, 1.442695
    %v2998 = vpow.pop %v2997
    %v2999 = vsel %vm1994, %v2996, 0.0
    %3000 = vadd.xlane.f32.xlu0 %v2999
    %v3001 = vpop.xlane.xlu0 %3000
    %v3002 = vsel %vm1994, %v2998, 0.0
    %3003 = vadd.xlane.f32.xlu0 %v3002
    %v3004 = vpop.xlane.xlu0 %3003
    %v3005 = vrcp.pop %v3001
    %v3006 = vrcp.pop %v3004
    %v3007 = vmul.f32 %v2996, %v3005
    %v3008 = vmul.f32 %v2998, %v3006
    %3009 = vrot.lane.b32.xlu0 %v1829, 80
    %v3010 = vpop.permute.xlu0 %3009
    %v3013 = vsel %vm1994, %v3007, 0
    %3015 = vmatprep.subr.mxu0 0.0
    %3016 = vmatpush1.msra.mxu0 %v3010
    %3017 = vmatprep.subr.mxu0 0.0
    %3018 = vmatpush1.msra.mxu0 0.0
    %3019 = vmatprep.subr.mxu0 0.0
    %3020 = vmatpush1.msra.mxu0 0.0
    %3021 = vmatprep.subr.mxu0 0.0
    %3022 = vmatpush1.msra.mxu0 0.0
    %3023 = vmatprep.subr.mxu0 0.0
    %3024 = vmatpush1.msra.mxu0 0.0
    %3025 = vmatprep.subr.mxu0 0.0
    %3026 = vmatpush1.msra.mxu0 0.0
    %3027 = vmatprep.subr.mxu0 0.0
    %3028 = vmatpush1.msra.mxu0 0.0
    %3029 = vmatprep.subr.mxu0 0.0
    %3030 = vmatpush1.msra.mxu0 0.0
    %3031 = vmatprep.subr.mxu0 0.0
    %3032 = vmatpush1.msra.mxu0 0.0
    %3033 = vmatprep.subr.mxu0 0.0
    %3034 = vmatpush1.msra.mxu0 0.0
    %3035 = vmatprep.subr.mxu0 0.0
    %3036 = vmatpush1.msra.mxu0 0.0
    %3037 = vmatprep.subr.mxu0 0.0
    %3038 = vmatpush1.msra.mxu0 0.0
    %3039 = vmatprep.subr.mxu0 0.0
    %3040 = vmatpush1.msra.mxu0 0.0
    %3041 = vmatprep.subr.mxu0 0.0
    %3042 = vmatpush1.msra.mxu0 0.0
    %3043 = vmatprep.subr.mxu0 0.0
    %3044 = vmatpush1.msra.mxu0 0.0
    %3045 = vmatprep.subr.mxu0 0.0
    %3046 = vmatpush1.msra.mxu0 0.0
    %3047 = vmatprep.subr.mxu0 0.0
    %3048 = vmatpush1.msra.mxu0 0.0
    %3049 = vmatprep.subr.mxu0 0.0
    %3050 = vmatpush1.msra.mxu0 0.0
    %3051 = vmatprep.subr.mxu0 0.0
    %3052 = vmatpush1.msra.mxu0 0.0
    %3053 = vmatprep.subr.mxu0 0.0
    %3054 = vmatpush1.msra.mxu0 0.0
    %3055 = vmatprep.subr.mxu0 0.0
    %3056 = vmatpush1.msra.mxu0 0.0
    %3057 = vmatprep.subr.mxu0 0.0
    %3058 = vmatpush1.msra.mxu0 0.0
    %3059 = vmatprep.subr.mxu0 0.0
    %3060 = vmatpush1.msra.mxu0 0.0
    %3061 = vmatprep.subr.mxu0 0.0
    %3062 = vmatpush1.msra.mxu0 0.0
    %3063 = vmatprep.subr.mxu0 0.0
    %3064 = vmatpush1.msra.mxu0 0.0
    %3065 = vmatprep.subr.mxu0 0.0
    %3066 = vmatpush1.msra.mxu0 0.0
    %3067 = vmatprep.subr.mxu0 0.0
    %3068 = vmatpush1.msra.mxu0 0.0
    %3069 = vmatprep.subr.mxu0 0.0
    %3070 = vmatpush1.msra.mxu0 0.0
    %3071 = vmatprep.subr.mxu0 0.0
    %3072 = vmatpush1.msra.mxu0 0.0
    %3073 = vmatprep.subr.mxu0 0.0
    %3074 = vmatpush1.msra.mxu0 0.0
    %3075 = vmatprep.subr.mxu0 0.0
    %3076 = vmatpush1.msra.mxu0 0.0
    %3077 = vmatprep.subr.mxu0 0.0
    %3078 = vmatpush1.msra.mxu0 0.0
    %3079 = vmatprep.mubr.f32.mxu0 0.0
    %3080 = vmatmul.mubr.f32.gmra.mrb[0].mxu0 %v3013
    %v3081 = vpop.f32.mrb[0].mxu0
    %v3082 = vadd.f32 0.0, %v3081
    %v3083 = vpop.f32.mrb[0].mxu0
    %3084 = vdwg.mxu0
    %3085 = vrot.lane.b32.xlu0 %v1835, 80
    %v3086 = vpop.permute.xlu0 %3085
    %v3089 = vsel %vm1994, %v3008, 0
    %3091 = vmatprep.subr.mxu0 0.0
    %3092 = vmatpush1.msra.mxu0 %v3086
    %3093 = vmatprep.subr.mxu0 0.0
    %3094 = vmatpush1.msra.mxu0 0.0
    %3095 = vmatprep.subr.mxu0 0.0
    %3096 = vmatpush1.msra.mxu0 0.0
    %3097 = vmatprep.subr.mxu0 0.0
    %3098 = vmatpush1.msra.mxu0 0.0
    %3099 = vmatprep.subr.mxu0 0.0
    %3100 = vmatpush1.msra.mxu0 0.0
    %3101 = vmatprep.subr.mxu0 0.0
    %3102 = vmatpush1.msra.mxu0 0.0
    %3103 = vmatprep.subr.mxu0 0.0
    %3104 = vmatpush1.msra.mxu0 0.0
    %3105 = vmatprep.subr.mxu0 0.0
    %3106 = vmatpush1.msra.mxu0 0.0
    %3107 = vmatprep.subr.mxu0 0.0
    %3108 = vmatpush1.msra.mxu0 0.0
    %3109 = vmatprep.subr.mxu0 0.0
    %3110 = vmatpush1.msra.mxu0 0.0
    %3111 = vmatprep.subr.mxu0 0.0
    %3112 = vmatpush1.msra.mxu0 0.0
    %3113 = vmatprep.subr.mxu0 0.0
    %3114 = vmatpush1.msra.mxu0 0.0
    %3115 = vmatprep.subr.mxu0 0.0
    %3116 = vmatpush1.msra.mxu0 0.0
    %3117 = vmatprep.subr.mxu0 0.0
    %3118 = vmatpush1.msra.mxu0 0.0
    %3119 = vmatprep.subr.mxu0 0.0
    %3120 = vmatpush1.msra.mxu0 0.0
    %3121 = vmatprep.subr.mxu0 0.0
    %3122 = vmatpush1.msra.mxu0 0.0
    %3123 = vmatprep.subr.mxu0 0.0
    %3124 = vmatpush1.msra.mxu0 0.0
    %3125 = vmatprep.subr.mxu0 0.0
    %3126 = vmatpush1.msra.mxu0 0.0
    %3127 = vmatprep.subr.mxu0 0.0
    %3128 = vmatpush1.msra.mxu0 0.0
    %3129 = vmatprep.subr.mxu0 0.0
    %3130 = vmatpush1.msra.mxu0 0.0
    %3131 = vmatprep.subr.mxu0 0.0
    %3132 = vmatpush1.msra.mxu0 0.0
    %3133 = vmatprep.subr.mxu0 0.0
    %3134 = vmatpush1.msra.mxu0 0.0
    %3135 = vmatprep.subr.mxu0 0.0
    %3136 = vmatpush1.msra.mxu0 0.0
    %3137 = vmatprep.subr.mxu0 0.0
    %3138 = vmatpush1.msra.mxu0 0.0
    %3139 = vmatprep.subr.mxu0 0.0
    %3140 = vmatpush1.msra.mxu0 0.0
    %3141 = vmatprep.subr.mxu0 0.0
    %3142 = vmatpush1.msra.mxu0 0.0
    %3143 = vmatprep.subr.mxu0 0.0
    %3144 = vmatpush1.msra.mxu0 0.0
    %3145 = vmatprep.subr.mxu0 0.0
    %3146 = vmatpush1.msra.mxu0 0.0
    %3147 = vmatprep.subr.mxu0 0.0
    %3148 = vmatpush1.msra.mxu0 0.0
    %3149 = vmatprep.subr.mxu0 0.0
    %3150 = vmatpush1.msra.mxu0 0.0
    %3151 = vmatprep.subr.mxu0 0.0
    %3152 = vmatpush1.msra.mxu0 0.0
    %3153 = vmatprep.subr.mxu0 0.0
    %3154 = vmatpush1.msra.mxu0 0.0
    %3155 = vmatprep.mubr.f32.mxu0 0.0
    %3156 = vmatmul.mubr.f32.gmra.mrb[0].mxu0 %v3089
    %v3157 = vpop.f32.mrb[0].mxu0
    %v3158 = vadd.f32 0.0, %v3157
    %v3159 = vpop.f32.mrb[0].mxu0
    %3160 = vdwg.mxu0
    %3163 = vrot.lane.b32.xlu0 %v2417, 16
    %v3164 = vpop.permute.xlu0 %3163
    %3165 = vrot.lane.b32.xlu0 %v2494, 16
    %v3166 = vpop.permute.xlu0 %3165
    %3171 = vrot.lane.b32.xlu0 %v2750, 32
    %v3172 = vpop.permute.xlu0 %3171
    %3173 = vrot.lane.b32.xlu0 %v2826, 32
    %v3174 = vpop.permute.xlu0 %3173
    %3179 = vrot.lane.b32.xlu0 %v3082, 48
    %v3180 = vpop.permute.xlu0 %3179
    %3181 = vrot.lane.b32.xlu0 %v3158, 48
    %v3182 = vpop.permute.xlu0 %3181
    %v3185 = vsel %vm1840, %v2087, %v3164
    %v3186 = vsel %vm1840, %v2160, %v3166
    %v3187 = vsel %vm122, %v3185, %v3172
    %v3188 = vsel %vm122, %v3186, %v3174
    %vm3189 = vcmask 392192
    %v3190 = vsel %vm3189, %v3187, %v3180
    %v3191 = vsel %vm3189, %v3188, %v3182
    %v3192 = vld [vmem:[%s8] sm:$0xff]
    %v3193 = vld [vmem:[%s8 + $0x8] sm:$0xff]
    %v3194 = vld [vmem:[%s8 + $0x10] sm:$0xff]
    %v3195 = vld [vmem:[%s8 + $0x18] sm:$0xff]
    %v3196 = vld [vmem:[%s8 + $0x20] sm:$0xff]
    %v3197 = vld [vmem:[%s8 + $0x28] sm:$0xff]
    %v3198 = vld [vmem:[%s8 + $0x30] sm:$0xff]
    %v3199 = vld [vmem:[%s8 + $0x38] sm:$0xff]
    %v3200 = vld [vmem:[%s9] sm:$0x1]
    %v3202 = vlaneseq
    %v3203 = vshrl.u32 %v3202, 7
    %v3204 = vsub.s32 0, %v3203
    %v3205 = vrot.slane %v3200, %v3204
    %v3208 = vsel %vm1753, %v3190, 0
    %v3211 = vsel %vm1753, %v3191, 0
    %3213 = vmatprep.subr.mxu0 0.0
    %3214 = vmatpush1.msra.mxu0 %v3192
    %3215 = vmatprep.subr.mxu0 0.0
    %3216 = vmatpush1.msra.mxu0 %v3193
    %3217 = vmatprep.subr.mxu0 0.0
    %3218 = vmatpush1.msra.mxu0 %v3194
    %3219 = vmatprep.subr.mxu0 0.0
    %3220 = vmatpush1.msra.mxu0 %v3195
    %3221 = vmatprep.subr.mxu0 0.0
    %3222 = vmatpush1.msra.mxu0 %v3196
    %3223 = vmatprep.subr.mxu0 0.0
    %3224 = vmatpush1.msra.mxu0 %v3197
    %3225 = vmatprep.subr.mxu0 0.0
    %3226 = vmatpush1.msra.mxu0 %v3198
    %3227 = vmatprep.subr.mxu0 0.0
    %3228 = vmatpush1.msra.mxu0 %v3199
    %3229 = vmatprep.subr.mxu0 0.0
    %3230 = vmatpush1.msra.mxu0 0.0
    %3231 = vmatprep.subr.mxu0 0.0
    %3232 = vmatpush1.msra.mxu0 0.0
    %3233 = vmatprep.subr.mxu0 0.0
    %3234 = vmatpush1.msra.mxu0 0.0
    %3235 = vmatprep.subr.mxu0 0.0
    %3236 = vmatpush1.msra.mxu0 0.0
    %3237 = vmatprep.subr.mxu0 0.0
    %3238 = vmatpush1.msra.mxu0 0.0
    %3239 = vmatprep.subr.mxu0 0.0
    %3240 = vmatpush1.msra.mxu0 0.0
    %3241 = vmatprep.subr.mxu0 0.0
    %3242 = vmatpush1.msra.mxu0 0.0
    %3243 = vmatprep.subr.mxu0 0.0
    %3244 = vmatpush1.msra.mxu0 0.0
    %3245 = vmatprep.subr.mxu0 0.0
    %3246 = vmatpush1.msra.mxu0 0.0
    %3247 = vmatprep.subr.mxu0 0.0
    %3248 = vmatpush1.msra.mxu0 0.0
    %3249 = vmatprep.subr.mxu0 0.0
    %3250 = vmatpush1.msra.mxu0 0.0
    %3251 = vmatprep.subr.mxu0 0.0
    %3252 = vmatpush1.msra.mxu0 0.0
    %3253 = vmatprep.subr.mxu0 0.0
    %3254 = vmatpush1.msra.mxu0 0.0
    %3255 = vmatprep.subr.mxu0 0.0
    %3256 = vmatpush1.msra.mxu0 0.0
    %3257 = vmatprep.subr.mxu0 0.0
    %3258 = vmatpush1.msra.mxu0 0.0
    %3259 = vmatprep.subr.mxu0 0.0
    %3260 = vmatpush1.msra.mxu0 0.0
    %3261 = vmatprep.subr.mxu0 0.0
    %3262 = vmatpush1.msra.mxu0 0.0
    %3263 = vmatprep.subr.mxu0 0.0
    %3264 = vmatpush1.msra.mxu0 0.0
    %3265 = vmatprep.subr.mxu0 0.0
    %3266 = vmatpush1.msra.mxu0 0.0
    %3267 = vmatprep.subr.mxu0 0.0
    %3268 = vmatpush1.msra.mxu0 0.0
    %3269 = vmatprep.subr.mxu0 0.0
    %3270 = vmatpush1.msra.mxu0 0.0
    %3271 = vmatprep.subr.mxu0 0.0
    %3272 = vmatpush1.msra.mxu0 0.0
    %3273 = vmatprep.subr.mxu0 0.0
    %3274 = vmatpush1.msra.mxu0 0.0
    %3275 = vmatprep.subr.mxu0 0.0
    %3276 = vmatpush1.msra.mxu0 0.0
    %3277 = vmatprep.mubr.f32.mxu0 0.0
    %3278 = vmatmul.mubr.f32.gmra.mrb[0].mxu0 %v3208
    %v3279 = vpop.f32.mrb[0].mxu0
    %v3280 = vadd.f32 %v3205, %v3279
    %v3281 = vpop.f32.mrb[0].mxu0
    %3282 = vmatprep.mubr.f32.mxu0 0.0
    %3283 = vmatmul.mubr.f32.gmra.mrb[0].mxu0 %v3211
    %v3284 = vpop.f32.mrb[0].mxu0
    %v3285 = vadd.f32 %v3205, %v3284
    %v3286 = vpop.f32.mrb[0].mxu0
    %3287 = vdwg.mxu0
    %v3288 = vsel %vm1753, %v3280, 0.0
    %v3289 = vrot.slane %v3288, 4
    %v3290 = vadd.f32 %v3288, %v3289
    %v3291 = vrot.slane %v3290, 2
    %v3292 = vadd.f32 %v3290, %v3291
    %v3293 = vrot.slane %v3292, 1
    %v3294 = vadd.f32 %v3292, %v3293
    %v3295 = vsel %vm1753, %v3285, 0.0
    %v3296 = vrot.slane %v3295, 4
    %v3297 = vadd.f32 %v3295, %v3296
    %v3298 = vrot.slane %v3297, 2
    %v3299 = vadd.f32 %v3297, %v3298
    %v3300 = vrot.slane %v3299, 1
    %v3301 = vadd.f32 %v3299, %v3300
    %v3302 = vrcp.pop 8.0
    %v3303 = vmul.f32 %v3294, %v3302
    %v3304 = vmul.f32 %v3301, %v3302
    %v3305 = vsel %vm1753, %v3280, -inf
    %v3306 = vrot.slane %v3305, 4
    %v3307 = vmax.f32 %v3305, %v3306
    %v3308 = vrot.slane %v3307, 2
    %v3309 = vmax.f32 %v3307, %v3308
    %v3310 = vrot.slane %v3309, 1
    %v3311 = vmax.f32 %v3309, %v3310
    %v3312 = vsel %vm1753, %v3285, -inf
    %v3313 = vrot.slane %v3312, 4
    %v3314 = vmax.f32 %v3312, %v3313
    %v3315 = vrot.slane %v3314, 2
    %v3316 = vmax.f32 %v3314, %v3315
    %v3317 = vrot.slane %v3316, 1
    %v3318 = vmax.f32 %v3316, %v3317
    %vm3321 = vcmask 1041409
    %v3322 = vsel %vm3321, %v3304, %v3303
    %v3326 = vsel %vm3321, %v3318, %v3311
    %3327 = vrot.lane.b32.xlu0 %v3326, 64
    %v3328 = vpop.permute.xlu0 %3327
    %v3330 = vsel %vm1753, %v3322, %v3328
    %v3331 = vld [vmem:[%s10] sm:$0xff]
    %v3332 = vld [vmem:[%s10 + $0x8] sm:$0xff]
    %v3333 = vld [vmem:[%s10 + $0x10] sm:$0xff]
    %v3334 = vld [vmem:[%s10 + $0x18] sm:$0xff]
    %v3335 = vld [vmem:[%s10 + $0x20] sm:$0xff]
    %v3336 = vld [vmem:[%s10 + $0x28] sm:$0xff]
    %v3337 = vld [vmem:[%s10 + $0x30] sm:$0xff]
    %v3338 = vld [vmem:[%s10 + $0x38] sm:$0xff]
    %v3339 = vld [vmem:[%s10 + $0x40] sm:$0xff]
    %v3340 = vld [vmem:[%s10 + $0x48] sm:$0xff]
    %v3341 = vld [vmem:[%s10 + $0x50] sm:$0xff]
    %v3342 = vld [vmem:[%s10 + $0x58] sm:$0xff]
    %v3343 = vld [vmem:[%s10 + $0x60] sm:$0xff]
    %v3344 = vld [vmem:[%s10 + $0x68] sm:$0xff]
    %v3345 = vld [vmem:[%s10 + $0x70] sm:$0xff]
    %v3346 = vld [vmem:[%s10 + $0x78] sm:$0xff]
    %v3347 = vld [vmem:[%s11] sm:$0x1]
    %v3349 = vlaneseq
    %v3350 = vshrl.u32 %v3349, 7
    %v3351 = vsub.s32 0, %v3350
    %v3352 = vrot.slane %v3347, %v3351
    %3354 = vmatprep.subr.mxu0 0.0
    %3355 = vmatpush1.msra.mxu0 %v3331
    %3356 = vmatprep.subr.mxu0 0.0
    %3357 = vmatpush1.msra.mxu0 %v3332
    %3358 = vmatprep.subr.mxu0 0.0
    %3359 = vmatpush1.msra.mxu0 %v3333
    %3360 = vmatprep.subr.mxu0 0.0
    %3361 = vmatpush1.msra.mxu0 %v3334
    %3362 = vmatprep.subr.mxu0 0.0
    %3363 = vmatpush1.msra.mxu0 %v3335
    %3364 = vmatprep.subr.mxu0 0.0
    %3365 = vmatpush1.msra.mxu0 %v3336
    %3366 = vmatprep.subr.mxu0 0.0
    %3367 = vmatpush1.msra.mxu0 %v3337
    %3368 = vmatprep.subr.mxu0 0.0
    %3369 = vmatpush1.msra.mxu0 %v3338
    %3370 = vmatprep.subr.mxu0 0.0
    %3371 = vmatpush1.msra.mxu0 %v3339
    %3372 = vmatprep.subr.mxu0 0.0
    %3373 = vmatpush1.msra.mxu0 %v3340
    %3374 = vmatprep.subr.mxu0 0.0
    %3375 = vmatpush1.msra.mxu0 %v3341
    %3376 = vmatprep.subr.mxu0 0.0
    %3377 = vmatpush1.msra.mxu0 %v3342
    %3378 = vmatprep.subr.mxu0 0.0
    %3379 = vmatpush1.msra.mxu0 %v3343
    %3380 = vmatprep.subr.mxu0 0.0
    %3381 = vmatpush1.msra.mxu0 %v3344
    %3382 = vmatprep.subr.mxu0 0.0
    %3383 = vmatpush1.msra.mxu0 %v3345
    %3384 = vmatprep.subr.mxu0 0.0
    %3385 = vmatpush1.msra.mxu0 %v3346
    %3386 = vmatprep.subr.mxu0 0.0
    %3387 = vmatpush1.msra.mxu0 0.0
    %3388 = vmatprep.subr.mxu0 0.0
    %3389 = vmatpush1.msra.mxu0 0.0
    %3390 = vmatprep.subr.mxu0 0.0
    %3391 = vmatpush1.msra.mxu0 0.0
    %3392 = vmatprep.subr.mxu0 0.0
    %3393 = vmatpush1.msra.mxu0 0.0
    %3394 = vmatprep.subr.mxu0 0.0
    %3395 = vmatpush1.msra.mxu0 0.0
    %3396 = vmatprep.subr.mxu0 0.0
    %3397 = vmatpush1.msra.mxu0 0.0
    %3398 = vmatprep.subr.mxu0 0.0
    %3399 = vmatpush1.msra.mxu0 0.0
    %3400 = vmatprep.subr.mxu0 0.0
    %3401 = vmatpush1.msra.mxu0 0.0
    %3402 = vmatprep.subr.mxu0 0.0
    %3403 = vmatpush1.msra.mxu0 0.0
    %3404 = vmatprep.subr.mxu0 0.0
    %3405 = vmatpush1.msra.mxu0 0.0
    %3406 = vmatprep.subr.mxu0 0.0
    %3407 = vmatpush1.msra.mxu0 0.0
    %3408 = vmatprep.subr.mxu0 0.0
    %3409 = vmatpush1.msra.mxu0 0.0
    %3410 = vmatprep.subr.mxu0 0.0
    %3411 = vmatpush1.msra.mxu0 0.0
    %3412 = vmatprep.subr.mxu0 0.0
    %3413 = vmatpush1.msra.mxu0 0.0
    %3414 = vmatprep.subr.mxu0 0.0
    %3415 = vmatpush1.msra.mxu0 0.0
    %3416 = vmatprep.subr.mxu0 0.0
    %3417 = vmatpush1.msra.mxu0 0.0
    %3418 = vmatprep.mubr.f32.mxu0 0.0
    %3419 = vmatmul.mubr.f32.gmra.mrb[0].mxu0 %v3330
    %v3420 = vpop.f32.mrb[0].mxu0
    %v3421 = vadd.f32 %v3352, %v3420
    %v3422 = vpop.f32.mrb[0].mxu0
    %3423 = vdwg.mxu0
    %v3424 = vmax.f32 %v3421, 0.0
    %v3425 = vld [vmem:[%s12] sm:$0xff]
    %v3426 = vld [vmem:[%s12 + $0x8] sm:$0xff]
    %v3427 = vld [vmem:[%s12 + $0x10] sm:$0xff]
    %v3428 = vld [vmem:[%s12 + $0x18] sm:$0xff]
    %v3429 = vld [vmem:[%s13] sm:$0x1]
    %v3431 = vlaneseq
    %v3432 = vshrl.u32 %v3431, 7
    %v3433 = vsub.s32 0, %v3432
    %v3434 = vrot.slane %v3429, %v3433
    %v3437 = vsel %vm122, %v3424, 0
    %3439 = vmatprep.subr.mxu0 0.0
    %3440 = vmatpush1.msra.mxu0 %v3425
    %3441 = vmatprep.subr.mxu0 0.0
    %3442 = vmatpush1.msra.mxu0 %v3426
    %3443 = vmatprep.subr.mxu0 0.0
    %3444 = vmatpush1.msra.mxu0 %v3427
    %3445 = vmatprep.subr.mxu0 0.0
    %3446 = vmatpush1.msra.mxu0 %v3428
    %3447 = vmatprep.subr.mxu0 0.0
    %3448 = vmatpush1.msra.mxu0 0.0
    %3449 = vmatprep.subr.mxu0 0.0
    %3450 = vmatpush1.msra.mxu0 0.0
    %3451 = vmatprep.subr.mxu0 0.0
    %3452 = vmatpush1.msra.mxu0 0.0
    %3453 = vmatprep.subr.mxu0 0.0
    %3454 = vmatpush1.msra.mxu0 0.0
    %3455 = vmatprep.subr.mxu0 0.0
    %3456 = vmatpush1.msra.mxu0 0.0
    %3457 = vmatprep.subr.mxu0 0.0
    %3458 = vmatpush1.msra.mxu0 0.0
    %3459 = vmatprep.subr.mxu0 0.0
    %3460 = vmatpush1.msra.mxu0 0.0
    %3461 = vmatprep.subr.mxu0 0.0
    %3462 = vmatpush1.msra.mxu0 0.0
    %3463 = vmatprep.subr.mxu0 0.0
    %3464 = vmatpush1.msra.mxu0 0.0
    %3465 = vmatprep.subr.mxu0 0.0
    %3466 = vmatpush1.msra.mxu0 0.0
    %3467 = vmatprep.subr.mxu0 0.0
    %3468 = vmatpush1.msra.mxu0 0.0
    %3469 = vmatprep.subr.mxu0 0.0
    %3470 = vmatpush1.msra.mxu0 0.0
    %3471 = vmatprep.subr.mxu0 0.0
    %3472 = vmatpush1.msra.mxu0 0.0
    %3473 = vmatprep.subr.mxu0 0.0
    %3474 = vmatpush1.msra.mxu0 0.0
    %3475 = vmatprep.subr.mxu0 0.0
    %3476 = vmatpush1.msra.mxu0 0.0
    %3477 = vmatprep.subr.mxu0 0.0
    %3478 = vmatpush1.msra.mxu0 0.0
    %3479 = vmatprep.subr.mxu0 0.0
    %3480 = vmatpush1.msra.mxu0 0.0
    %3481 = vmatprep.subr.mxu0 0.0
    %3482 = vmatpush1.msra.mxu0 0.0
    %3483 = vmatprep.subr.mxu0 0.0
    %3484 = vmatpush1.msra.mxu0 0.0
    %3485 = vmatprep.subr.mxu0 0.0
    %3486 = vmatpush1.msra.mxu0 0.0
    %3487 = vmatprep.subr.mxu0 0.0
    %3488 = vmatpush1.msra.mxu0 0.0
    %3489 = vmatprep.subr.mxu0 0.0
    %3490 = vmatpush1.msra.mxu0 0.0
    %3491 = vmatprep.subr.mxu0 0.0
    %3492 = vmatpush1.msra.mxu0 0.0
    %3493 = vmatprep.subr.mxu0 0.0
    %3494 = vmatpush1.msra.mxu0 0.0
    %3495 = vmatprep.subr.mxu0 0.0
    %3496 = vmatpush1.msra.mxu0 0.0
    %3497 = vmatprep.subr.mxu0 0.0
    %3498 = vmatpush1.msra.mxu0 0.0
    %3499 = vmatprep.subr.mxu0 0.0
    %3500 = vmatpush1.msra.mxu0 0.0
    %3501 = vmatprep.subr.mxu0 0.0
    %3502 = vmatpush1.msra.mxu0 0.0
    %3503 = vmatprep.mubr.f32.mxu0 0.0
    %3504 = vmatmul.mubr.f32.gmra.mrb[0].mxu0 %v3437
    %v3505 = vpop.f32.mrb[0].mxu0
    %v3506 = vadd.f32 %v3434, %v3505
    %v3507 = vpop.f32.mrb[0].mxu0
    %3508 = vdwg.mxu0
    %vm3509 = vcmask 41984
    %3510 = vst.msk [vmem:[#allocation3] sm:$0x3] %vm3509, %v3506
    // Predicated region
    $region58: #{forward.1} parent=1 // pred_check
      _
    $region59: #{forward.1} parent=1 // pred_check_branch
      %3512 = sbr.rel (0) target = $region61
    $region60: #{forward.1} parent=1 // pred_region
      %s3514 = ssub.s32 32, 32
      %3515 = vsyncadd [#allocation4], %s3514
      %s3517 = sshll.u32 [#allocation3], 4
      %s3518 = int_to_ptr.vmem [resolvable:$true] %s3517
      %3520 = dma.vmem_to_hbm [thread:$0]  %s3518, 32, %s14, [#allocation4]
    $region61: #{forward.1} parent=1 // pred_fallthru
      _
    // Predicated region
    $region62: #{forward.1} parent=1 // pred_check
      _
    $region63: #{forward.1} parent=1 // pred_check_branch
      %3522 = sbr.rel (0) target = $region65
    $region64: #{forward.1} parent=1 // pred_region
      %3523 = dma.done [#allocation4], 32
    $region65: #{forward.1} parent=1 // pred_fallthru
      _
    %3524 = vsyncpa [#allocation4], 1

</llo_original>
